<compile_context>
chip_gen: v7x
topology: tpu7x:2x2x1
jax: 0.10.0
libtpu: 0.0.40
codegen_flags: <defaults>
</compile_context>

<pallas_src>
import numpy as np
import jax
import jax.numpy as jnp
from jax import lax
from jax.experimental import pallas as pl
from jax.experimental.pallas import tpu as pltpu

B = 8  # batch tile per grid step


# ----------------------------- fused Pallas kernel -----------------------------

def _hal9000_kernel(x_ref, a1_ref, b1_ref, cc1_ref, rr1_ref,
                    a2_ref, b2_ref, cc2_ref, rr2_ref,
                    w1r_ref, fb1_ref, w2p_ref, fb2_ref, o_ref):
    f32 = jnp.float32

    # conv1 (5x5, 1->6) + bias + relu.  x rows are (h*8 + b); output rows (oh*8 + b),
    # columns (ow*6 + co).  Each row tap di is a contiguous 192-row slice of x.
    y1 = jnp.dot(x_ref[pl.ds(0, 192), :], a1_ref[0], preferred_element_type=f32)
    for di in range(1, 5):
        y1 = y1 + jnp.dot(x_ref[pl.ds(di * 8, 192), :], a1_ref[di],
                          preferred_element_type=f32)
    y1 = jnp.maximum(y1 + b1_ref[...], 0.0)                       # (192, 144)

    # maxpool1 2x2: column (ow) pairs via one-hot column-select matmuls, then
    # row (oh) pairs via one-hot row-select matmuls.  bn1 is folded into conv2.
    c1 = jnp.maximum(jnp.dot(y1, cc1_ref[0], preferred_element_type=f32),
                     jnp.dot(y1, cc1_ref[1], preferred_element_type=f32))   # (192, 72)
    z1 = jnp.maximum(jnp.dot(rr1_ref[0], c1, preferred_element_type=f32),
                     jnp.dot(rr1_ref[1], c1, preferred_element_type=f32))   # (96, 72)

    # conv2 (3x3, 6->12) + bias + relu (bn1 scale folded into A2, shift into bias).
    # z1 rows are (ph*8 + b); each row tap di2 is a contiguous 80-row slice.
    y2 = jnp.dot(z1[0:80, :], a2_ref[0], preferred_element_type=f32)
    for di in range(1, 3):
        y2 = y2 + jnp.dot(z1[di * 8:di * 8 + 80, :], a2_ref[di],
                          preferred_element_type=f32)
    y2 = jnp.maximum(y2 + b2_ref[...], 0.0)                       # (80, 120)

    # maxpool2 2x2 (bn2 folded into fc1).
    c2 = jnp.maximum(jnp.dot(y2, cc2_ref[0], preferred_element_type=f32),
                     jnp.dot(y2, cc2_ref[1], preferred_element_type=f32))   # (80, 60)
    z2 = jnp.maximum(jnp.dot(rr2_ref[0], c2, preferred_element_type=f32),
                     jnp.dot(rr2_ref[1], c2, preferred_element_type=f32))   # (40, 60)

    # fc1 + relu.  Torch's channel-major view(-1, 300) and bn2 are folded into the
    # host-permuted per-ph2 weight blocks.  z2 rows are (ph2*8 + b): tile-aligned slices.
    # TODO(synk): Dropout(0.5) is the identity in inference mode; training-mode
    # stochastic masking is not implemented here.
    h = jnp.dot(z2[0:8, :], w1r_ref[0], preferred_element_type=f32)
    for ph in range(1, 5):
        h = h + jnp.dot(z2[ph * 8:ph * 8 + 8, :], w1r_ref[ph],
                        preferred_element_type=f32)
    h = jnp.maximum(h + fb1_ref[...], 0.0)                        # (8, 150)

    # fc2 + softmax, padded to 128 lanes (padded logits are -1e30 -> prob exactly 0),
    # so the HBM store is a full, unmasked (8, 128) block.
    logits = jnp.dot(h, w2p_ref[...], preferred_element_type=f32) + fb2_ref[...]
    m = jnp.max(logits, axis=-1, keepdims=True)
    e = jnp.exp(logits - m)
    o_ref[...] = e / jnp.sum(e, axis=-1, keepdims=True)


# --------------------- host-side constant / weight preparation ---------------------

def build_constants(p, eps=1e-5):
    w1 = np.asarray(p["conv1_w"], np.float32)       # (6, 1, 5, 5)
    b1 = np.asarray(p["conv1_b"], np.float32)       # (6,)
    w2 = np.asarray(p["conv2_w"], np.float32)       # (12, 6, 3, 3)
    b2 = np.asarray(p["conv2_b"], np.float32)       # (12,)
    W1 = np.asarray(p["fc1_w"], np.float32)         # (150, 300)
    bf1 = np.asarray(p["fc1_b"], np.float32)        # (150,)
    W2 = np.asarray(p["fc2_w"], np.float32)         # (10, 150)
    bf2 = np.asarray(p["fc2_b"], np.float32)        # (10,)
    # Inference-mode BN folded to scale/shift.
    s1 = np.asarray(p["bn1_gamma"], np.float32) / np.sqrt(np.asarray(p["bn1_var"], np.float32) + eps)
    t1 = np.asarray(p["bn1_beta"], np.float32) - np.asarray(p["bn1_mean"], np.float32) * s1
    s2 = np.asarray(p["bn2_gamma"], np.float32) / np.sqrt(np.asarray(p["bn2_var"], np.float32) + eps)
    t2 = np.asarray(p["bn2_beta"], np.float32) - np.asarray(p["bn2_mean"], np.float32) * s2

    # conv1: per-row-tap matrices  (w_in) -> (ow*6 + co)
    A1 = np.zeros((5, 28, 144), np.float32)
    for di in range(5):
        for ow in range(24):
            for dj in range(5):
                for co in range(6):
                    A1[di, ow + dj, ow * 6 + co] = w1[co, 0, di, dj]
    b1row = np.tile(b1, 24)[None, :]                                   # (1, 144)

    # maxpool1 column selectors (ow pairs) and row selectors (oh pairs, batch-minor rows)
    CC1 = np.zeros((2, 144, 72), np.float32)
    for pw in range(12):
        for co in range(6):
            CC1[0, (2 * pw) * 6 + co, pw * 6 + co] = 1.0
            CC1[1, (2 * pw + 1) * 6 + co, pw * 6 + co] = 1.0
    RR1 = np.zeros((2, 96, 192), np.float32)
    r = np.arange(96); ph = r // 8; bb = r % 8
    RR1[0, r, 16 * ph + bb] = 1.0
    RR1[1, r, 16 * ph + bb + 8] = 1.0

    # conv2 (bn1 scale folded): per-row-tap matrices  (pw*6 + ci) -> (ow2*12 + co2)
    A2 = np.zeros((3, 72, 120), np.float32)
    for di2 in range(3):
        for ow2 in range(10):
            for dj2 in range(3):
                pw = ow2 + dj2
                for ci in range(6):
                    for co2 in range(12):
                        A2[di2, pw * 6 + ci, ow2 * 12 + co2] = s1[ci] * w2[co2, ci, di2, dj2]
    b2_eff = b2 + w2.sum(axis=(2, 3)) @ t1                             # bn1 shift folded
    b2row = np.tile(b2_eff.astype(np.float32), 10)[None, :]            # (1, 120)

    CC2 = np.zeros((2, 120, 60), np.float32)
    for pw2 in range(5):
        for co2 in range(12):
            CC2[0, (2 * pw2) * 12 + co2, pw2 * 12 + co2] = 1.0
            CC2[1, (2 * pw2 + 1) * 12 + co2, pw2 * 12 + co2] = 1.0
    RR2 = np.zeros((2, 40, 80), np.float32)
    r = np.arange(40); ph2 = r // 8; bb = r % 8
    RR2[0, r, 16 * ph2 + bb] = 1.0
    RR2[1, r, 16 * ph2 + bb + 8] = 1.0

    # fc1: torch channel-major flatten (k = co2*25 + ph2*5 + pw2) + bn2 scale folded.
    W1r = np.zeros((5, 60, 150), np.float32)
    for ph2 in range(5):
        for pw2 in range(5):
            for co2 in range(12):
                W1r[ph2, pw2 * 12 + co2, :] = s2[co2] * W1[:, co2 * 25 + ph2 * 5 + pw2]
    fb1 = (bf1 + W1.reshape(150, 12, 25).sum(axis=2) @ t2)[None, :]    # (1, 150)

    # fc2 padded to 128 lanes: zero weight columns, -1e30 bias -> padded probs are 0.
    W2p = np.zeros((150, 128), np.float32); W2p[:, :10] = W2.T
    fb2 = np.full((1, 128), -1e30, np.float32); fb2[0, :10] = bf2

    c = dict(A1=A1, b1row=b1row, CC1=CC1, RR1=RR1, A2=A2, b2row=b2row,
             CC2=CC2, RR2=RR2, W1r=W1r, fb1=fb1, W2p=W2p, fb2=fb2)
    return {k: jnp.asarray(v, jnp.float32) for k, v in c.items()}


# ------------------------------ forward wrapper ------------------------------

@jax.jit
def hal9000_forward(x_nchw, consts):
    n = x_nchw.shape[0]
    nb = -(-n // B)
    npad = nb * B
    x = x_nchw.reshape(n, 28, 28).astype(jnp.float32)
    if npad != n:
        x = jnp.pad(x, ((0, npad - n), (0, 0), (0, 0)))
    # Pack rows as (tile, h, b) so every conv row tap / fc1 row gather is a contiguous,
    # sublane-tile-aligned slice inside the kernel (batch is the fastest row index).
    x2h = x.reshape(nb, B, 28, 28).transpose(0, 2, 1, 3).reshape(nb * 28 * B, 28)

    out = pl.pallas_call(
        _hal9000_kernel,
        out_shape=jax.ShapeDtypeStruct((npad, 128), jnp.float32),
        grid=(nb,),
        in_specs=[
            pl.BlockSpec((28 * B, 28), lambda i: (i, 0)),        # input tile (h*8+b rows)
            pl.BlockSpec((5, 28, 144), lambda i: (0, 0, 0)),     # A1 conv1 taps
            pl.BlockSpec((1, 144), lambda i: (0, 0)),            # conv1 bias row
            pl.BlockSpec((2, 144, 72), lambda i: (0, 0, 0)),     # pool1 column selectors
            pl.BlockSpec((2, 96, 192), lambda i: (0, 0, 0)),     # pool1 row selectors
            pl.BlockSpec((3, 72, 120), lambda i: (0, 0, 0)),     # A2 conv2 taps (bn1 folded)
            pl.BlockSpec((1, 120), lambda i: (0, 0)),            # conv2 bias row (bn1 folded)
            pl.BlockSpec((2, 120, 60), lambda i: (0, 0, 0)),     # pool2 column selectors
            pl.BlockSpec((2, 40, 80), lambda i: (0, 0, 0)),      # pool2 row selectors
            pl.BlockSpec((5, 60, 150), lambda i: (0, 0, 0)),     # fc1 blocks (flatten+bn2 folded)
            pl.BlockSpec((1, 150), lambda i: (0, 0)),            # fc1 bias (bn2 folded)
            pl.BlockSpec((150, 128), lambda i: (0, 0)),          # fc2 weight (padded to 128)
            pl.BlockSpec((1, 128), lambda i: (0, 0)),            # fc2 bias (padded, -1e30)
        ],
        out_specs=pl.BlockSpec((B, 128), lambda i: (i, 0)),
        compiler_params=pltpu.CompilerParams(dimension_semantics=("parallel",)),
    )(x2h, consts["A1"], consts["b1row"], consts["CC1"], consts["RR1"],
      consts["A2"], consts["b2row"], consts["CC2"], consts["RR2"],
      consts["W1r"], consts["fb1"], consts["W2p"], consts["fb2"])
    return out[:n, :10]


# ------------------------------ parameters ------------------------------

def init_params(key):
    ks = jax.random.split(key, 10)
    p = {
        "conv1_w": 0.2 * jax.random.normal(ks[0], (6, 1, 5, 5), jnp.float32),
        "conv1_b": 0.1 * jax.random.normal(ks[1], (6,), jnp.float32),
        "conv2_w": 0.2 * jax.random.normal(ks[2], (12, 6, 3, 3), jnp.float32),
        "conv2_b": 0.1 * jax.random.normal(ks[3], (12,), jnp.float32),
        "fc1_w": 0.1 * jax.random.normal(ks[4], (150, 300), jnp.float32),
        "fc1_b": 0.1 * jax.random.normal(ks[5], (150,), jnp.float32),
        "fc2_w": 0.1 * jax.random.normal(ks[6], (10, 150), jnp.float32),
        "fc2_b": 0.1 * jax.random.normal(ks[7], (10,), jnp.float32),
    }
    # Inference-mode BatchNorm with non-trivial running stats / affine params
    # (exercises the BN folding).
    # TODO(synk): training-mode BatchNorm (batch statistics) is not implemented.
    for i, (name, c) in enumerate((("bn1", 6), ("bn2", 12))):
        k = jax.random.split(ks[8 + i], 4)
        p[f"{name}_gamma"] = 1.0 + 0.1 * jax.random.normal(k[0], (c,), jnp.float32)
        p[f"{name}_beta"] = 0.1 * jax.random.normal(k[1], (c,), jnp.float32)
        p[f"{name}_mean"] = 0.1 * jax.random.normal(k[2], (c,), jnp.float32)
        p[f"{name}_var"] = 1.0 + 0.5 * jax.random.uniform(k[3], (c,), jnp.float32)
    return p


# ------------------------------ pure-JAX reference ------------------------------

def reference_forward(x_nchw, p):
    dn = ("NCHW", "OIHW", "NCHW")
    y = lax.conv_general_dilated(x_nchw, p["conv1_w"], (1, 1), "VALID", dimension_numbers=dn)
    y = jnp.maximum(y + p["conv1_b"][None, :, None, None], 0.0)
    y = lax.reduce_window(y, -jnp.inf, lax.max, (1, 1, 2, 2), (1, 1, 2, 2), "VALID")
    s1 = p["bn1_gamma"] / jnp.sqrt(p["bn1_var"] + 1e-5)
    y = y * s1[None, :, None, None] + (p["bn1_beta"] - p["bn1_mean"] * s1)[None, :, None, None]
    y = lax.conv_general_dilated(y, p["conv2_w"], (1, 1), "VALID", dimension_numbers=dn)
    y = jnp.maximum(y + p["conv2_b"][None, :, None, None], 0.0)
    y = lax.reduce_window(y, -jnp.inf, lax.max, (1, 1, 2, 2), (1, 1, 2, 2), "VALID")
    s2 = p["bn2_gamma"] / jnp.sqrt(p["bn2_var"] + 1e-5)
    y = y * s2[None, :, None, None] + (p["bn2_beta"] - p["bn2_mean"] * s2)[None, :, None, None]
    flat = y.reshape(y.shape[0], -1)
    h = jnp.maximum(flat @ p["fc1_w"].T + p["fc1_b"], 0.0)
    logits = h @ p["fc2_w"].T + p["fc2_b"]
    return jax.nn.softmax(logits, axis=1)


if __name__ == "__main__":
    key = jax.random.PRNGKey(0)
    pkey, xkey = jax.random.split(key)
    params = init_params(pkey)
    consts = build_constants(params)

    # NCHW input, 28x28 (=> fc1 in_features = 300).  16 examples = 2 parallel grid
    # steps of 8, so both v7x TensorCores get work.
    x = jax.random.normal(xkey, (16, 1, 28, 28), jnp.float32)

    out = jax.block_until_ready(hal9000_forward(x, consts))
    assert out.shape == (16, 10) and out.dtype == jnp.float32

    ref = jax.block_until_ready(reference_forward(x, params))
    assert jnp.allclose(out, ref, rtol=1e-3, atol=1e-3), float(jnp.max(jnp.abs(out - ref)))
    assert jnp.allclose(jnp.sum(out, axis=1), 1.0, atol=1e-4)
    print("KERNEL_OK")
</pallas_src>

<mosaic_0001>
module attributes {stable_mosaic.version = 11 : i64} {
  func.func @_hal9000_kernel(%arg0: i32, %arg1: memref<224x28xf32, #tpu.memory_space<vmem>>, %arg2: memref<5x28x144xf32, #tpu.memory_space<vmem>>, %arg3: memref<1x144xf32, #tpu.memory_space<vmem>>, %arg4: memref<2x144x72xf32, #tpu.memory_space<vmem>>, %arg5: memref<2x96x192xf32, #tpu.memory_space<vmem>>, %arg6: memref<3x72x120xf32, #tpu.memory_space<vmem>>, %arg7: memref<1x120xf32, #tpu.memory_space<vmem>>, %arg8: memref<2x120x60xf32, #tpu.memory_space<vmem>>, %arg9: memref<2x40x80xf32, #tpu.memory_space<vmem>>, %arg10: memref<5x60x150xf32, #tpu.memory_space<vmem>>, %arg11: memref<1x150xf32, #tpu.memory_space<vmem>>, %arg12: memref<150x128xf32, #tpu.memory_space<vmem>>, %arg13: memref<1x128xf32, #tpu.memory_space<vmem>>, %arg14: memref<8x128xf32, #tpu.memory_space<vmem>>) attributes {dimension_semantics = [#tpu.dimension_semantics<parallel>], iteration_bounds = array<i64: 2>, scalar_prefetch = 0 : i64, scratch_operands = 0 : i64, tpu.core_type = #tpu.core_type<tc>, window_params = [{transform_indices = @transform_0, window_bounds = array<i64: 224, 28>}, {pipeline_mode = #tpu.pipeline_mode<synchronous>, transform_indices = @transform_1, window_bounds = array<i64: 5, 28, 144>}, {pipeline_mode = #tpu.pipeline_mode<synchronous>, transform_indices = @transform_2, window_bounds = array<i64: 1, 144>}, {pipeline_mode = #tpu.pipeline_mode<synchronous>, transform_indices = @transform_3, window_bounds = array<i64: 2, 144, 72>}, {pipeline_mode = #tpu.pipeline_mode<synchronous>, transform_indices = @transform_4, window_bounds = array<i64: 2, 96, 192>}, {pipeline_mode = #tpu.pipeline_mode<synchronous>, transform_indices = @transform_5, window_bounds = array<i64: 3, 72, 120>}, {pipeline_mode = #tpu.pipeline_mode<synchronous>, transform_indices = @transform_6, window_bounds = array<i64: 1, 120>}, {pipeline_mode = #tpu.pipeline_mode<synchronous>, transform_indices = @transform_7, window_bounds = array<i64: 2, 120, 60>}, {pipeline_mode = #tpu.pipeline_mode<synchronous>, transform_indices = @transform_8, window_bounds = array<i64: 2, 40, 80>}, {pipeline_mode = #tpu.pipeline_mode<synchronous>, transform_indices = @transform_9, window_bounds = array<i64: 5, 60, 150>}, {pipeline_mode = #tpu.pipeline_mode<synchronous>, transform_indices = @transform_10, window_bounds = array<i64: 1, 150>}, {pipeline_mode = #tpu.pipeline_mode<synchronous>, transform_indices = @transform_11, window_bounds = array<i64: 150, 128>}, {pipeline_mode = #tpu.pipeline_mode<synchronous>, transform_indices = @transform_12, window_bounds = array<i64: 1, 128>}, {transform_indices = @transform_13, window_bounds = array<i64: 8, 128>}]} {
    %c0 = arith.constant 0 : index
    %c0_0 = arith.constant 0 : index
    %0 = vector.load %arg1[%c0, %c0_0] : memref<224x28xf32, #tpu.memory_space<vmem>>, vector<192x28xf32>
    %c0_1 = arith.constant 0 : index
    %c0_2 = arith.constant 0 : index
    %c0_3 = arith.constant 0 : index
    %1 = vector.load %arg2[%c0_1, %c0_2, %c0_3] : memref<5x28x144xf32, #tpu.memory_space<vmem>>, vector<1x28x144xf32>
    %2 = vector.shape_cast %1 : vector<1x28x144xf32> to vector<28x144xf32>
    %cst = arith.constant dense<0.000000e+00> : vector<192x144xf32>
    %3 = tpu.matmul %0, %2, %cst {dimension_numbers = #tpu.dot_dimension_numbers<[1], [0], [0], [1], [0, 0, 1, 1], [], []>} : vector<192x28xf32>, vector<28x144xf32>, vector<192x144xf32> -> vector<192x144xf32>
    %c8 = arith.constant 8 : index
    %c0_4 = arith.constant 0 : index
    %4 = vector.load %arg1[%c8, %c0_4] : memref<224x28xf32, #tpu.memory_space<vmem>>, vector<192x28xf32>
    %c1 = arith.constant 1 : index
    %c0_5 = arith.constant 0 : index
    %c0_6 = arith.constant 0 : index
    %5 = vector.load %arg2[%c1, %c0_5, %c0_6] : memref<5x28x144xf32, #tpu.memory_space<vmem>>, vector<1x28x144xf32>
    %6 = vector.shape_cast %5 : vector<1x28x144xf32> to vector<28x144xf32>
    %cst_7 = arith.constant dense<0.000000e+00> : vector<192x144xf32>
    %7 = tpu.matmul %4, %6, %cst_7 {dimension_numbers = #tpu.dot_dimension_numbers<[1], [0], [0], [1], [0, 0, 1, 1], [], []>} : vector<192x28xf32>, vector<28x144xf32>, vector<192x144xf32> -> vector<192x144xf32>
    %8 = arith.addf %3, %7 : vector<192x144xf32>
    %c16 = arith.constant 16 : index
    %c0_8 = arith.constant 0 : index
    %9 = vector.load %arg1[%c16, %c0_8] : memref<224x28xf32, #tpu.memory_space<vmem>>, vector<192x28xf32>
    %c2 = arith.constant 2 : index
    %c0_9 = arith.constant 0 : index
    %c0_10 = arith.constant 0 : index
    %10 = vector.load %arg2[%c2, %c0_9, %c0_10] : memref<5x28x144xf32, #tpu.memory_space<vmem>>, vector<1x28x144xf32>
    %11 = vector.shape_cast %10 : vector<1x28x144xf32> to vector<28x144xf32>
    %cst_11 = arith.constant dense<0.000000e+00> : vector<192x144xf32>
    %12 = tpu.matmul %9, %11, %cst_11 {dimension_numbers = #tpu.dot_dimension_numbers<[1], [0], [0], [1], [0, 0, 1, 1], [], []>} : vector<192x28xf32>, vector<28x144xf32>, vector<192x144xf32> -> vector<192x144xf32>
    %13 = arith.addf %8, %12 : vector<192x144xf32>
    %c24 = arith.constant 24 : index
    %c0_12 = arith.constant 0 : index
    %14 = vector.load %arg1[%c24, %c0_12] : memref<224x28xf32, #tpu.memory_space<vmem>>, vector<192x28xf32>
    %c3 = arith.constant 3 : index
    %c0_13 = arith.constant 0 : index
    %c0_14 = arith.constant 0 : index
    %15 = vector.load %arg2[%c3, %c0_13, %c0_14] : memref<5x28x144xf32, #tpu.memory_space<vmem>>, vector<1x28x144xf32>
    %16 = vector.shape_cast %15 : vector<1x28x144xf32> to vector<28x144xf32>
    %cst_15 = arith.constant dense<0.000000e+00> : vector<192x144xf32>
    %17 = tpu.matmul %14, %16, %cst_15 {dimension_numbers = #tpu.dot_dimension_numbers<[1], [0], [0], [1], [0, 0, 1, 1], [], []>} : vector<192x28xf32>, vector<28x144xf32>, vector<192x144xf32> -> vector<192x144xf32>
    %18 = arith.addf %13, %17 : vector<192x144xf32>
    %c32 = arith.constant 32 : index
    %c0_16 = arith.constant 0 : index
    %19 = vector.load %arg1[%c32, %c0_16] : memref<224x28xf32, #tpu.memory_space<vmem>>, vector<192x28xf32>
    %c4 = arith.constant 4 : index
    %c0_17 = arith.constant 0 : index
    %c0_18 = arith.constant 0 : index
    %20 = vector.load %arg2[%c4, %c0_17, %c0_18] : memref<5x28x144xf32, #tpu.memory_space<vmem>>, vector<1x28x144xf32>
    %21 = vector.shape_cast %20 : vector<1x28x144xf32> to vector<28x144xf32>
    %cst_19 = arith.constant dense<0.000000e+00> : vector<192x144xf32>
    %22 = tpu.matmul %19, %21, %cst_19 {dimension_numbers = #tpu.dot_dimension_numbers<[1], [0], [0], [1], [0, 0, 1, 1], [], []>} : vector<192x28xf32>, vector<28x144xf32>, vector<192x144xf32> -> vector<192x144xf32>
    %23 = arith.addf %18, %22 : vector<192x144xf32>
    %c0_20 = arith.constant 0 : index
    %c0_21 = arith.constant 0 : index
    %24 = vector.load %arg3[%c0_20, %c0_21] : memref<1x144xf32, #tpu.memory_space<vmem>>, vector<1x144xf32>
    %25 = vector.broadcast %24 : vector<1x144xf32> to vector<192x144xf32>
    %26 = arith.addf %23, %25 : vector<192x144xf32>
    %cst_22 = arith.constant 0.000000e+00 : f32
    %27 = vector.broadcast %cst_22 : f32 to vector<192x144xf32>
    %28 = arith.maximumf %26, %27 : vector<192x144xf32>
    %c0_23 = arith.constant 0 : index
    %c0_24 = arith.constant 0 : index
    %c0_25 = arith.constant 0 : index
    %29 = vector.load %arg4[%c0_23, %c0_24, %c0_25] : memref<2x144x72xf32, #tpu.memory_space<vmem>>, vector<1x144x72xf32>
    %30 = vector.shape_cast %29 : vector<1x144x72xf32> to vector<144x72xf32>
    %cst_26 = arith.constant dense<0.000000e+00> : vector<192x72xf32>
    %31 = tpu.matmul %28, %30, %cst_26 {dimension_numbers = #tpu.dot_dimension_numbers<[1], [0], [0], [1], [0, 0, 1, 1], [], []>} : vector<192x144xf32>, vector<144x72xf32>, vector<192x72xf32> -> vector<192x72xf32>
    %c1_27 = arith.constant 1 : index
    %c0_28 = arith.constant 0 : index
    %c0_29 = arith.constant 0 : index
    %32 = vector.load %arg4[%c1_27, %c0_28, %c0_29] : memref<2x144x72xf32, #tpu.memory_space<vmem>>, vector<1x144x72xf32>
    %33 = vector.shape_cast %32 : vector<1x144x72xf32> to vector<144x72xf32>
    %cst_30 = arith.constant dense<0.000000e+00> : vector<192x72xf32>
    %34 = tpu.matmul %28, %33, %cst_30 {dimension_numbers = #tpu.dot_dimension_numbers<[1], [0], [0], [1], [0, 0, 1, 1], [], []>} : vector<192x144xf32>, vector<144x72xf32>, vector<192x72xf32> -> vector<192x72xf32>
    %35 = arith.maximumf %31, %34 : vector<192x72xf32>
    %c0_31 = arith.constant 0 : index
    %c0_32 = arith.constant 0 : index
    %c0_33 = arith.constant 0 : index
    %36 = vector.load %arg5[%c0_31, %c0_32, %c0_33] : memref<2x96x192xf32, #tpu.memory_space<vmem>>, vector<1x96x192xf32>
    %37 = vector.shape_cast %36 : vector<1x96x192xf32> to vector<96x192xf32>
    %cst_34 = arith.constant dense<0.000000e+00> : vector<96x72xf32>
    %38 = tpu.matmul %37, %35, %cst_34 {dimension_numbers = #tpu.dot_dimension_numbers<[1], [0], [0], [1], [0, 0, 1, 1], [], []>} : vector<96x192xf32>, vector<192x72xf32>, vector<96x72xf32> -> vector<96x72xf32>
    %c1_35 = arith.constant 1 : index
    %c0_36 = arith.constant 0 : index
    %c0_37 = arith.constant 0 : index
    %39 = vector.load %arg5[%c1_35, %c0_36, %c0_37] : memref<2x96x192xf32, #tpu.memory_space<vmem>>, vector<1x96x192xf32>
    %40 = vector.shape_cast %39 : vector<1x96x192xf32> to vector<96x192xf32>
    %cst_38 = arith.constant dense<0.000000e+00> : vector<96x72xf32>
    %41 = tpu.matmul %40, %35, %cst_38 {dimension_numbers = #tpu.dot_dimension_numbers<[1], [0], [0], [1], [0, 0, 1, 1], [], []>} : vector<96x192xf32>, vector<192x72xf32>, vector<96x72xf32> -> vector<96x72xf32>
    %42 = arith.maximumf %38, %41 : vector<96x72xf32>
    %43 = vector.extract_strided_slice %42 {offsets = [0, 0], sizes = [80, 72], strides = [1, 1]} : vector<96x72xf32> to vector<80x72xf32>
    %c0_39 = arith.constant 0 : index
    %c0_40 = arith.constant 0 : index
    %c0_41 = arith.constant 0 : index
    %44 = vector.load %arg6[%c0_39, %c0_40, %c0_41] : memref<3x72x120xf32, #tpu.memory_space<vmem>>, vector<1x72x120xf32>
    %45 = vector.shape_cast %44 : vector<1x72x120xf32> to vector<72x120xf32>
    %cst_42 = arith.constant dense<0.000000e+00> : vector<80x120xf32>
    %46 = tpu.matmul %43, %45, %cst_42 {dimension_numbers = #tpu.dot_dimension_numbers<[1], [0], [0], [1], [0, 0, 1, 1], [], []>} : vector<80x72xf32>, vector<72x120xf32>, vector<80x120xf32> -> vector<80x120xf32>
    %47 = vector.extract_strided_slice %42 {offsets = [8, 0], sizes = [80, 72], strides = [1, 1]} : vector<96x72xf32> to vector<80x72xf32>
    %c1_43 = arith.constant 1 : index
    %c0_44 = arith.constant 0 : index
    %c0_45 = arith.constant 0 : index
    %48 = vector.load %arg6[%c1_43, %c0_44, %c0_45] : memref<3x72x120xf32, #tpu.memory_space<vmem>>, vector<1x72x120xf32>
    %49 = vector.shape_cast %48 : vector<1x72x120xf32> to vector<72x120xf32>
    %cst_46 = arith.constant dense<0.000000e+00> : vector<80x120xf32>
    %50 = tpu.matmul %47, %49, %cst_46 {dimension_numbers = #tpu.dot_dimension_numbers<[1], [0], [0], [1], [0, 0, 1, 1], [], []>} : vector<80x72xf32>, vector<72x120xf32>, vector<80x120xf32> -> vector<80x120xf32>
    %51 = arith.addf %46, %50 : vector<80x120xf32>
    %52 = vector.extract_strided_slice %42 {offsets = [16, 0], sizes = [80, 72], strides = [1, 1]} : vector<96x72xf32> to vector<80x72xf32>
    %c2_47 = arith.constant 2 : index
    %c0_48 = arith.constant 0 : index
    %c0_49 = arith.constant 0 : index
    %53 = vector.load %arg6[%c2_47, %c0_48, %c0_49] : memref<3x72x120xf32, #tpu.memory_space<vmem>>, vector<1x72x120xf32>
    %54 = vector.shape_cast %53 : vector<1x72x120xf32> to vector<72x120xf32>
    %cst_50 = arith.constant dense<0.000000e+00> : vector<80x120xf32>
    %55 = tpu.matmul %52, %54, %cst_50 {dimension_numbers = #tpu.dot_dimension_numbers<[1], [0], [0], [1], [0, 0, 1, 1], [], []>} : vector<80x72xf32>, vector<72x120xf32>, vector<80x120xf32> -> vector<80x120xf32>
    %56 = arith.addf %51, %55 : vector<80x120xf32>
    %c0_51 = arith.constant 0 : index
    %c0_52 = arith.constant 0 : index
    %57 = vector.load %arg7[%c0_51, %c0_52] : memref<1x120xf32, #tpu.memory_space<vmem>>, vector<1x120xf32>
    %58 = vector.broadcast %57 : vector<1x120xf32> to vector<80x120xf32>
    %59 = arith.addf %56, %58 : vector<80x120xf32>
    %cst_53 = arith.constant 0.000000e+00 : f32
    %60 = vector.broadcast %cst_53 : f32 to vector<80x120xf32>
    %61 = arith.maximumf %59, %60 : vector<80x120xf32>
    %c0_54 = arith.constant 0 : index
    %c0_55 = arith.constant 0 : index
    %c0_56 = arith.constant 0 : index
    %62 = vector.load %arg8[%c0_54, %c0_55, %c0_56] : memref<2x120x60xf32, #tpu.memory_space<vmem>>, vector<1x120x60xf32>
    %63 = vector.shape_cast %62 : vector<1x120x60xf32> to vector<120x60xf32>
    %cst_57 = arith.constant dense<0.000000e+00> : vector<80x60xf32>
    %64 = tpu.matmul %61, %63, %cst_57 {dimension_numbers = #tpu.dot_dimension_numbers<[1], [0], [0], [1], [0, 0, 1, 1], [], []>} : vector<80x120xf32>, vector<120x60xf32>, vector<80x60xf32> -> vector<80x60xf32>
    %c1_58 = arith.constant 1 : index
    %c0_59 = arith.constant 0 : index
    %c0_60 = arith.constant 0 : index
    %65 = vector.load %arg8[%c1_58, %c0_59, %c0_60] : memref<2x120x60xf32, #tpu.memory_space<vmem>>, vector<1x120x60xf32>
    %66 = vector.shape_cast %65 : vector<1x120x60xf32> to vector<120x60xf32>
    %cst_61 = arith.constant dense<0.000000e+00> : vector<80x60xf32>
    %67 = tpu.matmul %61, %66, %cst_61 {dimension_numbers = #tpu.dot_dimension_numbers<[1], [0], [0], [1], [0, 0, 1, 1], [], []>} : vector<80x120xf32>, vector<120x60xf32>, vector<80x60xf32> -> vector<80x60xf32>
    %68 = arith.maximumf %64, %67 : vector<80x60xf32>
    %c0_62 = arith.constant 0 : index
    %c0_63 = arith.constant 0 : index
    %c0_64 = arith.constant 0 : index
    %69 = vector.load %arg9[%c0_62, %c0_63, %c0_64] : memref<2x40x80xf32, #tpu.memory_space<vmem>>, vector<1x40x80xf32>
    %70 = vector.shape_cast %69 : vector<1x40x80xf32> to vector<40x80xf32>
    %cst_65 = arith.constant dense<0.000000e+00> : vector<40x60xf32>
    %71 = tpu.matmul %70, %68, %cst_65 {dimension_numbers = #tpu.dot_dimension_numbers<[1], [0], [0], [1], [0, 0, 1, 1], [], []>} : vector<40x80xf32>, vector<80x60xf32>, vector<40x60xf32> -> vector<40x60xf32>
    %c1_66 = arith.constant 1 : index
    %c0_67 = arith.constant 0 : index
    %c0_68 = arith.constant 0 : index
    %72 = vector.load %arg9[%c1_66, %c0_67, %c0_68] : memref<2x40x80xf32, #tpu.memory_space<vmem>>, vector<1x40x80xf32>
    %73 = vector.shape_cast %72 : vector<1x40x80xf32> to vector<40x80xf32>
    %cst_69 = arith.constant dense<0.000000e+00> : vector<40x60xf32>
    %74 = tpu.matmul %73, %68, %cst_69 {dimension_numbers = #tpu.dot_dimension_numbers<[1], [0], [0], [1], [0, 0, 1, 1], [], []>} : vector<40x80xf32>, vector<80x60xf32>, vector<40x60xf32> -> vector<40x60xf32>
    %75 = arith.maximumf %71, %74 : vector<40x60xf32>
    %76 = vector.extract_strided_slice %75 {offsets = [0, 0], sizes = [8, 60], strides = [1, 1]} : vector<40x60xf32> to vector<8x60xf32>
    %c0_70 = arith.constant 0 : index
    %c0_71 = arith.constant 0 : index
    %c0_72 = arith.constant 0 : index
    %77 = vector.load %arg10[%c0_70, %c0_71, %c0_72] : memref<5x60x150xf32, #tpu.memory_space<vmem>>, vector<1x60x150xf32>
    %78 = vector.shape_cast %77 : vector<1x60x150xf32> to vector<60x150xf32>
    %cst_73 = arith.constant dense<0.000000e+00> : vector<8x150xf32>
    %79 = tpu.matmul %76, %78, %cst_73 {dimension_numbers = #tpu.dot_dimension_numbers<[1], [0], [0], [1], [0, 0, 1, 1], [], []>} : vector<8x60xf32>, vector<60x150xf32>, vector<8x150xf32> -> vector<8x150xf32>
    %80 = vector.extract_strided_slice %75 {offsets = [8, 0], sizes = [8, 60], strides = [1, 1]} : vector<40x60xf32> to vector<8x60xf32>
    %c1_74 = arith.constant 1 : index
    %c0_75 = arith.constant 0 : index
    %c0_76 = arith.constant 0 : index
    %81 = vector.load %arg10[%c1_74, %c0_75, %c0_76] : memref<5x60x150xf32, #tpu.memory_space<vmem>>, vector<1x60x150xf32>
    %82 = vector.shape_cast %81 : vector<1x60x150xf32> to vector<60x150xf32>
    %cst_77 = arith.constant dense<0.000000e+00> : vector<8x150xf32>
    %83 = tpu.matmul %80, %82, %cst_77 {dimension_numbers = #tpu.dot_dimension_numbers<[1], [0], [0], [1], [0, 0, 1, 1], [], []>} : vector<8x60xf32>, vector<60x150xf32>, vector<8x150xf32> -> vector<8x150xf32>
    %84 = arith.addf %79, %83 : vector<8x150xf32>
    %85 = vector.extract_strided_slice %75 {offsets = [16, 0], sizes = [8, 60], strides = [1, 1]} : vector<40x60xf32> to vector<8x60xf32>
    %c2_78 = arith.constant 2 : index
    %c0_79 = arith.constant 0 : index
    %c0_80 = arith.constant 0 : index
    %86 = vector.load %arg10[%c2_78, %c0_79, %c0_80] : memref<5x60x150xf32, #tpu.memory_space<vmem>>, vector<1x60x150xf32>
    %87 = vector.shape_cast %86 : vector<1x60x150xf32> to vector<60x150xf32>
    %cst_81 = arith.constant dense<0.000000e+00> : vector<8x150xf32>
    %88 = tpu.matmul %85, %87, %cst_81 {dimension_numbers = #tpu.dot_dimension_numbers<[1], [0], [0], [1], [0, 0, 1, 1], [], []>} : vector<8x60xf32>, vector<60x150xf32>, vector<8x150xf32> -> vector<8x150xf32>
    %89 = arith.addf %84, %88 : vector<8x150xf32>
    %90 = vector.extract_strided_slice %75 {offsets = [24, 0], sizes = [8, 60], strides = [1, 1]} : vector<40x60xf32> to vector<8x60xf32>
    %c3_82 = arith.constant 3 : index
    %c0_83 = arith.constant 0 : index
    %c0_84 = arith.constant 0 : index
    %91 = vector.load %arg10[%c3_82, %c0_83, %c0_84] : memref<5x60x150xf32, #tpu.memory_space<vmem>>, vector<1x60x150xf32>
    %92 = vector.shape_cast %91 : vector<1x60x150xf32> to vector<60x150xf32>
    %cst_85 = arith.constant dense<0.000000e+00> : vector<8x150xf32>
    %93 = tpu.matmul %90, %92, %cst_85 {dimension_numbers = #tpu.dot_dimension_numbers<[1], [0], [0], [1], [0, 0, 1, 1], [], []>} : vector<8x60xf32>, vector<60x150xf32>, vector<8x150xf32> -> vector<8x150xf32>
    %94 = arith.addf %89, %93 : vector<8x150xf32>
    %95 = vector.extract_strided_slice %75 {offsets = [32, 0], sizes = [8, 60], strides = [1, 1]} : vector<40x60xf32> to vector<8x60xf32>
    %c4_86 = arith.constant 4 : index
    %c0_87 = arith.constant 0 : index
    %c0_88 = arith.constant 0 : index
    %96 = vector.load %arg10[%c4_86, %c0_87, %c0_88] : memref<5x60x150xf32, #tpu.memory_space<vmem>>, vector<1x60x150xf32>
    %97 = vector.shape_cast %96 : vector<1x60x150xf32> to vector<60x150xf32>
    %cst_89 = arith.constant dense<0.000000e+00> : vector<8x150xf32>
    %98 = tpu.matmul %95, %97, %cst_89 {dimension_numbers = #tpu.dot_dimension_numbers<[1], [0], [0], [1], [0, 0, 1, 1], [], []>} : vector<8x60xf32>, vector<60x150xf32>, vector<8x150xf32> -> vector<8x150xf32>
    %99 = arith.addf %94, %98 : vector<8x150xf32>
    %c0_90 = arith.constant 0 : index
    %c0_91 = arith.constant 0 : index
    %100 = vector.load %arg11[%c0_90, %c0_91] : memref<1x150xf32, #tpu.memory_space<vmem>>, vector<1x150xf32>
    %101 = vector.broadcast %100 : vector<1x150xf32> to vector<8x150xf32>
    %102 = arith.addf %99, %101 : vector<8x150xf32>
    %cst_92 = arith.constant 0.000000e+00 : f32
    %103 = vector.broadcast %cst_92 : f32 to vector<8x150xf32>
    %104 = arith.maximumf %102, %103 : vector<8x150xf32>
    %c0_93 = arith.constant 0 : index
    %c0_94 = arith.constant 0 : index
    %105 = vector.load %arg12[%c0_93, %c0_94] : memref<150x128xf32, #tpu.memory_space<vmem>>, vector<150x128xf32>
    %cst_95 = arith.constant dense<0.000000e+00> : vector<8x128xf32>
    %106 = tpu.matmul %104, %105, %cst_95 {dimension_numbers = #tpu.dot_dimension_numbers<[1], [0], [0], [1], [0, 0, 1, 1], [], []>} : vector<8x150xf32>, vector<150x128xf32>, vector<8x128xf32> -> vector<8x128xf32>
    %c0_96 = arith.constant 0 : index
    %c0_97 = arith.constant 0 : index
    %107 = vector.load %arg13[%c0_96, %c0_97] : memref<1x128xf32, #tpu.memory_space<vmem>>, vector<1x128xf32>
    %108 = vector.broadcast %107 : vector<1x128xf32> to vector<8x128xf32>
    %109 = arith.addf %106, %108 : vector<8x128xf32>
    %cst_98 = arith.constant dense<0xFF800000> : vector<8xf32>
    %110 = vector.multi_reduction <maximumf>, %109, %cst_98 [1] : vector<8x128xf32> to vector<8xf32>
    %111 = vector.shape_cast %110 : vector<8xf32> to vector<8x1xf32>
    %112 = vector.broadcast %111 : vector<8x1xf32> to vector<8x128xf32>
    %113 = arith.subf %109, %112 : vector<8x128xf32>
    %114 = math.exp %113 : vector<8x128xf32>
    %cst_99 = arith.constant dense<0.000000e+00> : vector<8xf32>
    %115 = vector.multi_reduction <add>, %114, %cst_99 [1] : vector<8x128xf32> to vector<8xf32>
    %116 = vector.shape_cast %115 : vector<8xf32> to vector<8x1xf32>
    %117 = vector.broadcast %116 : vector<8x1xf32> to vector<8x128xf32>
    %118 = arith.divf %114, %117 : vector<8x128xf32>
    %c0_100 = arith.constant 0 : index
    %c0_101 = arith.constant 0 : index
    %119 = vector.load %arg14[%c0_100, %c0_101] : memref<8x128xf32, #tpu.memory_space<vmem>>, vector<8x128xf32>
    tpu.vector_store %arg14[%c0_100, %c0_101], %118 {strides = array<i32>} : memref<8x128xf32, #tpu.memory_space<vmem>>, vector<8x128xf32>,
    return
  }
  func.func @transform_0(%arg0: i32) -> (i32, i32) {
    %c0_i32 = arith.constant 0 : i32
    %c0_i32_0 = arith.constant 0 : i32
    return %arg0, %c0_i32 : i32, i32
  }
  func.func @transform_1(%arg0: i32) -> (i32, i32, i32) {
    %c0_i32 = arith.constant 0 : i32
    %c0_i32_0 = arith.constant 0 : i32
    %c0_i32_1 = arith.constant 0 : i32
    %c0_i32_2 = arith.constant 0 : i32
    return %c0_i32, %c0_i32_0, %c0_i32_1 : i32, i32, i32
  }
  func.func @transform_2(%arg0: i32) -> (i32, i32) {
    %c0_i32 = arith.constant 0 : i32
    %c0_i32_0 = arith.constant 0 : i32
    %c0_i32_1 = arith.constant 0 : i32
    return %c0_i32, %c0_i32_0 : i32, i32
  }
  func.func @transform_3(%arg0: i32) -> (i32, i32, i32) {
    %c0_i32 = arith.constant 0 : i32
    %c0_i32_0 = arith.constant 0 : i32
    %c0_i32_1 = arith.constant 0 : i32
    %c0_i32_2 = arith.constant 0 : i32
    return %c0_i32, %c0_i32_0, %c0_i32_1 : i32, i32, i32
  }
  func.func @transform_4(%arg0: i32) -> (i32, i32, i32) {
    %c0_i32 = arith.constant 0 : i32
    %c0_i32_0 = arith.constant 0 : i32
    %c0_i32_1 = arith.constant 0 : i32
    %c0_i32_2 = arith.constant 0 : i32
    return %c0_i32, %c0_i32_0, %c0_i32_1 : i32, i32, i32
  }
  func.func @transform_5(%arg0: i32) -> (i32, i32, i32) {
    %c0_i32 = arith.constant 0 : i32
    %c0_i32_0 = arith.constant 0 : i32
    %c0_i32_1 = arith.constant 0 : i32
    %c0_i32_2 = arith.constant 0 : i32
    return %c0_i32, %c0_i32_0, %c0_i32_1 : i32, i32, i32
  }
  func.func @transform_6(%arg0: i32) -> (i32, i32) {
    %c0_i32 = arith.constant 0 : i32
    %c0_i32_0 = arith.constant 0 : i32
    %c0_i32_1 = arith.constant 0 : i32
    return %c0_i32, %c0_i32_0 : i32, i32
  }
  func.func @transform_7(%arg0: i32) -> (i32, i32, i32) {
    %c0_i32 = arith.constant 0 : i32
    %c0_i32_0 = arith.constant 0 : i32
    %c0_i32_1 = arith.constant 0 : i32
    %c0_i32_2 = arith.constant 0 : i32
    return %c0_i32, %c0_i32_0, %c0_i32_1 : i32, i32, i32
  }
  func.func @transform_8(%arg0: i32) -> (i32, i32, i32) {
    %c0_i32 = arith.constant 0 : i32
    %c0_i32_0 = arith.constant 0 : i32
    %c0_i32_1 = arith.constant 0 : i32
    %c0_i32_2 = arith.constant 0 : i32
    return %c0_i32, %c0_i32_0, %c0_i32_1 : i32, i32, i32
  }
  func.func @transform_9(%arg0: i32) -> (i32, i32, i32) {
    %c0_i32 = arith.constant 0 : i32
    %c0_i32_0 = arith.constant 0 : i32
    %c0_i32_1 = arith.constant 0 : i32
    %c0_i32_2 = arith.constant 0 : i32
    return %c0_i32, %c0_i32_0, %c0_i32_1 : i32, i32, i32
  }
  func.func @transform_10(%arg0: i32) -> (i32, i32) {
    %c0_i32 = arith.constant 0 : i32
    %c0_i32_0 = arith.constant 0 : i32
    %c0_i32_1 = arith.constant 0 : i32
    return %c0_i32, %c0_i32_0 : i32, i32
  }
  func.func @transform_11(%arg0: i32) -> (i32, i32) {
    %c0_i32 = arith.constant 0 : i32
    %c0_i32_0 = arith.constant 0 : i32
    %c0_i32_1 = arith.constant 0 : i32
    return %c0_i32, %c0_i32_0 : i32, i32
  }
  func.func @transform_12(%arg0: i32) -> (i32, i32) {
    %c0_i32 = arith.constant 0 : i32
    %c0_i32_0 = arith.constant 0 : i32
    %c0_i32_1 = arith.constant 0 : i32
    return %c0_i32, %c0_i32_0 : i32, i32
  }
  func.func @transform_13(%arg0: i32) -> (i32, i32) {
    %c0_i32 = arith.constant 0 : i32
    %c0_i32_0 = arith.constant 0 : i32
    return %arg0, %c0_i32 : i32, i32
  }
}

</mosaic_0001>

<llo_original>
// kernel: hal9000_forward.1
$region0: #{hal9000_forward.1}
  #allocation0 [shape = 'u32[]', space=smem, size = 0x4, offset = 0x4, fixed_abs, tag = 'smem constant byte address 0x4 - core index']
  #allocation1 [shape = 'u32[144,128]{1,0:T(1,128)}', space=vmem, size = 0x12000, scoped, tag = 'internal scratch']
  %s0 = inlined_call_operand.vmem [shape: f32[448,28], index: 0, kind: input, shape index: {}]
  %s1 = inlined_call_operand.vmem [shape: f32[5,28,144], index: 1, kind: input, shape index: {}]
  %s2 = inlined_call_operand.vmem [shape: f32[1,144], index: 2, kind: input, shape index: {}]
  %s3 = inlined_call_operand.vmem [shape: f32[2,144,72], index: 3, kind: input, shape index: {}]
  %s4 = inlined_call_operand.vmem [shape: f32[2,96,192], index: 4, kind: input, shape index: {}]
  %s5 = inlined_call_operand.vmem [shape: f32[3,72,120], index: 5, kind: input, shape index: {}]
  %s6 = inlined_call_operand.vmem [shape: f32[1,120], index: 6, kind: input, shape index: {}]
  %s7 = inlined_call_operand.vmem [shape: f32[2,120,60], index: 7, kind: input, shape index: {}]
  %s8 = inlined_call_operand.hbm [shape: f32[2,40,80], index: 8, kind: input, shape index: {}]
  %s9 = inlined_call_operand.vmem [shape: f32[5,60,150], index: 9, kind: input, shape index: {}]
  %s10 = inlined_call_operand.vmem [shape: f32[1,150], index: 10, kind: input, shape index: {}]
  %s11 = inlined_call_operand.vmem [shape: f32[150,128], index: 11, kind: input, shape index: {}]
  %s12 = inlined_call_operand.vmem [shape: f32[1,128], index: 12, kind: input, shape index: {}]
  %s13 = inlined_call_operand.hbm [shape: f32[16,128], index: 13, kind: output, shape index: {}]
  %s14 = sld [smem:[#allocation0]]
  $region89: #{hal9000_forward.1} parent=0
    _
  %s16 = ssub.s32 1, %s14
  %s17 = scalar_select 0, %s16, %s14
  $region1: #{hal9000_forward.1} parent=0
    #allocation2 [shape = 'u8[40960]{0}', space=vmem, size = 0xa000, scoped, tag = 'input window, operand 8, single buffered']
    #allocation3 [shape = 's32[2]{0}', space=sflag, size = 0x8, scoped, tag = 'scoped memory for hal9000_forward.1']
    #allocation4 [shape = 's32[2]{0}', space=sflag, size = 0x8, scoped, tag = 'scoped memory for hal9000_forward.1']
    #allocation5 [shape = 'u8[8192]{0}', space=vmem, size = 0x2000, scoped, tag = 'output window, operand 0']
    %18 = vsyncpa [#allocation3], 0
    %19 = vsyncpa [#allocation4], 0
    %s20 = scalar_lea.sflag [#allocation4], 1
    %21 = vsyncpa %s20, 0
    loop: start=0, step=1, limit=4
    $region2: #{hal9000_forward.1} parent=1 // loop_pre_header
      _
    $region3: #{hal9000_forward.1} parent=1 // loop_header
      %s23 = sphi 0, %s27
      %p24 = scmp.ge.s32.totalorder %s23, 4
      %s33 = sphi 0, %s35
      %s36 = sphi 0, %s33
      %s37 = sphi 0, %s36
      %s53 = sphi 0, %s37
      %s57 = sphi 0, %s57
      %s59 = sphi 0, %s57
      %s60 = sphi 0, %s59
      %s74 = sphi 0, %s60
      %s78 = sphi 0, %s78
      %s80 = sphi 0, %s78
      %s81 = sphi 0, %s80
      %s95 = sphi 0, %s81
      %s99 = sphi 0, %s99
      %s101 = sphi 0, %s99
      %s102 = sphi 0, %s101
      %s116 = sphi 0, %s102
      %s120 = sphi 0, %s120
      %s122 = sphi 0, %s120
      %s123 = sphi 0, %s122
      %s137 = sphi 0, %s123
      %s141 = sphi 0, %s141
      %s143 = sphi 0, %s141
      %s144 = sphi 0, %s143
      %s158 = sphi 0, %s144
      %s162 = sphi 0, %s162
      %s164 = sphi 0, %s162
      %s165 = sphi 0, %s164
      %s179 = sphi 0, %s165
      %s183 = sphi 0, %s183
      %s185 = sphi 0, %s183
      %s186 = sphi 0, %s185
      %s200 = sphi 0, %s186
      %s204 = sphi 0, %s204
      %s206 = sphi 0, %s204
      %s207 = sphi 0, %s206
      %s221 = sphi 0, %s207
      %s225 = sphi 0, %s225
      %s227 = sphi 0, %s225
      %s228 = sphi 0, %s227
      %s242 = sphi 0, %s228
      %s246 = sphi 0, %s246
      %s248 = sphi 0, %s246
      %s249 = sphi 0, %s248
      %s263 = sphi 0, %s249
      %s267 = sphi 0, %s267
      %s269 = sphi 0, %s267
      %s270 = sphi 0, %s269
      %s284 = sphi 0, %s270
      %s288 = sphi 0, %s288
      %s290 = sphi 0, %s288
      %s291 = sphi 0, %s290
      %s305 = sphi 0, %s291
      %s311 = sphi 0, %s313
      %s314 = sphi 0, %s311
      %s315 = sphi 0, %s314
      %s331 = sphi 0, %s315
    $region4: #{hal9000_forward.1} parent=1 // loop_header_branch
      %26 = sbr.rel (%p24) target = $region8
    $region5: #{hal9000_forward.1} parent=1 // loop_body
      %s28 = ssub.s32 %s23, 1
      %s29 = ssub.s32 %s23, 2
      %s30 = sadd.s32 %s23, 1
      %s31 = ssub.s32 %s23, %s30
      %p32 = scmp.eq.s32.totalorder %s31, 0
      %s34 = sadd.s32 %s33, 1
      %s35 = scalar_select %p32, %s33, %s34
      %p38 = pneg %p32
      %p39 = scmp.eq.s32.totalorder %s23, 1
      %p40 = por %p38, %p39
      %p41 = scmp.ne.s32.totalorder %s33, %s36
      %p42 = scmp.eq.s32.totalorder %s23, 0
      %p43 = por %p41, %p42
      %p44 = scmp.ne.s32.totalorder %s33, %s36
      %p45 = scmp.eq.s32.totalorder %s28, 1
      %p46 = por %p44, %p45
      %p47 = scmp.ne.s32.totalorder %s36, %s37
      %p48 = scmp.eq.s32.totalorder %s28, 0
      %p49 = por %p47, %p48
      %p50 = scmp.ne.s32.totalorder %s36, %s37
      %p51 = scmp.eq.s32.totalorder %s29, 1
      %p52 = por %p50, %p51
      %p54 = scmp.ne.s32.totalorder %s37, %s53
      %p55 = scmp.eq.s32.totalorder %s29, 0
      %p56 = por %p54, %p55
      %s58 = sadd.s32 %s57, 1
      %p61 = scmp.eq.s32.totalorder %s23, 1
      %p62 = scmp.ne.s32.totalorder %s57, %s59
      %p63 = scmp.eq.s32.totalorder %s23, 0
      %p64 = por %p62, %p63
      %p65 = scmp.ne.s32.totalorder %s57, %s59
      %p66 = scmp.eq.s32.totalorder %s28, 1
      %p67 = por %p65, %p66
      %p68 = scmp.ne.s32.totalorder %s59, %s60
      %p69 = scmp.eq.s32.totalorder %s28, 0
      %p70 = por %p68, %p69
      %p71 = scmp.ne.s32.totalorder %s59, %s60
      %p72 = scmp.eq.s32.totalorder %s29, 1
      %p73 = por %p71, %p72
      %p75 = scmp.ne.s32.totalorder %s60, %s74
      %p76 = scmp.eq.s32.totalorder %s29, 0
      %p77 = por %p75, %p76
      %s79 = sadd.s32 %s78, 1
      %p82 = scmp.eq.s32.totalorder %s23, 1
      %p83 = scmp.ne.s32.totalorder %s78, %s80
      %p84 = scmp.eq.s32.totalorder %s23, 0
      %p85 = por %p83, %p84
      %p86 = scmp.ne.s32.totalorder %s78, %s80
      %p87 = scmp.eq.s32.totalorder %s28, 1
      %p88 = por %p86, %p87
      %p89 = scmp.ne.s32.totalorder %s80, %s81
      %p90 = scmp.eq.s32.totalorder %s28, 0
      %p91 = por %p89, %p90
      %p92 = scmp.ne.s32.totalorder %s80, %s81
      %p93 = scmp.eq.s32.totalorder %s29, 1
      %p94 = por %p92, %p93
      %p96 = scmp.ne.s32.totalorder %s81, %s95
      %p97 = scmp.eq.s32.totalorder %s29, 0
      %p98 = por %p96, %p97
      %s100 = sadd.s32 %s99, 1
      %p103 = scmp.eq.s32.totalorder %s23, 1
      %p104 = scmp.ne.s32.totalorder %s99, %s101
      %p105 = scmp.eq.s32.totalorder %s23, 0
      %p106 = por %p104, %p105
      %p107 = scmp.ne.s32.totalorder %s99, %s101
      %p108 = scmp.eq.s32.totalorder %s28, 1
      %p109 = por %p107, %p108
      %p110 = scmp.ne.s32.totalorder %s101, %s102
      %p111 = scmp.eq.s32.totalorder %s28, 0
      %p112 = por %p110, %p111
      %p113 = scmp.ne.s32.totalorder %s101, %s102
      %p114 = scmp.eq.s32.totalorder %s29, 1
      %p115 = por %p113, %p114
      %p117 = scmp.ne.s32.totalorder %s102, %s116
      %p118 = scmp.eq.s32.totalorder %s29, 0
      %p119 = por %p117, %p118
      %s121 = sadd.s32 %s120, 1
      %p124 = scmp.eq.s32.totalorder %s23, 1
      %p125 = scmp.ne.s32.totalorder %s120, %s122
      %p126 = scmp.eq.s32.totalorder %s23, 0
      %p127 = por %p125, %p126
      %p128 = scmp.ne.s32.totalorder %s120, %s122
      %p129 = scmp.eq.s32.totalorder %s28, 1
      %p130 = por %p128, %p129
      %p131 = scmp.ne.s32.totalorder %s122, %s123
      %p132 = scmp.eq.s32.totalorder %s28, 0
      %p133 = por %p131, %p132
      %p134 = scmp.ne.s32.totalorder %s122, %s123
      %p135 = scmp.eq.s32.totalorder %s29, 1
      %p136 = por %p134, %p135
      %p138 = scmp.ne.s32.totalorder %s123, %s137
      %p139 = scmp.eq.s32.totalorder %s29, 0
      %p140 = por %p138, %p139
      %s142 = sadd.s32 %s141, 1
      %p145 = scmp.eq.s32.totalorder %s23, 1
      %p146 = scmp.ne.s32.totalorder %s141, %s143
      %p147 = scmp.eq.s32.totalorder %s23, 0
      %p148 = por %p146, %p147
      %p149 = scmp.ne.s32.totalorder %s141, %s143
      %p150 = scmp.eq.s32.totalorder %s28, 1
      %p151 = por %p149, %p150
      %p152 = scmp.ne.s32.totalorder %s143, %s144
      %p153 = scmp.eq.s32.totalorder %s28, 0
      %p154 = por %p152, %p153
      %p155 = scmp.ne.s32.totalorder %s143, %s144
      %p156 = scmp.eq.s32.totalorder %s29, 1
      %p157 = por %p155, %p156
      %p159 = scmp.ne.s32.totalorder %s144, %s158
      %p160 = scmp.eq.s32.totalorder %s29, 0
      %p161 = por %p159, %p160
      %s163 = sadd.s32 %s162, 1
      %p166 = scmp.eq.s32.totalorder %s23, 1
      %p167 = scmp.ne.s32.totalorder %s162, %s164
      %p168 = scmp.eq.s32.totalorder %s23, 0
      %p169 = por %p167, %p168
      %p170 = scmp.ne.s32.totalorder %s162, %s164
      %p171 = scmp.eq.s32.totalorder %s28, 1
      %p172 = por %p170, %p171
      %p173 = scmp.ne.s32.totalorder %s164, %s165
      %p174 = scmp.eq.s32.totalorder %s28, 0
      %p175 = por %p173, %p174
      %p176 = scmp.ne.s32.totalorder %s164, %s165
      %p177 = scmp.eq.s32.totalorder %s29, 1
      %p178 = por %p176, %p177
      %p180 = scmp.ne.s32.totalorder %s165, %s179
      %p181 = scmp.eq.s32.totalorder %s29, 0
      %p182 = por %p180, %p181
      %s184 = sadd.s32 %s183, 1
      %p187 = scmp.eq.s32.totalorder %s23, 1
      %p188 = scmp.ne.s32.totalorder %s183, %s185
      %p189 = scmp.eq.s32.totalorder %s23, 0
      %p190 = por %p188, %p189
      %p191 = scmp.ne.s32.totalorder %s183, %s185
      %p192 = scmp.eq.s32.totalorder %s28, 1
      %p193 = por %p191, %p192
      %p194 = scmp.ne.s32.totalorder %s185, %s186
      %p195 = scmp.eq.s32.totalorder %s28, 0
      %p196 = por %p194, %p195
      %p197 = scmp.ne.s32.totalorder %s185, %s186
      %p198 = scmp.eq.s32.totalorder %s29, 1
      %p199 = por %p197, %p198
      %p201 = scmp.ne.s32.totalorder %s186, %s200
      %p202 = scmp.eq.s32.totalorder %s29, 0
      %p203 = por %p201, %p202
      %s205 = sadd.s32 %s204, 1
      %p208 = scmp.eq.s32.totalorder %s23, 1
      %p209 = scmp.ne.s32.totalorder %s204, %s206
      %p210 = scmp.eq.s32.totalorder %s23, 0
      %p211 = por %p209, %p210
      %p212 = scmp.ne.s32.totalorder %s204, %s206
      %p213 = scmp.eq.s32.totalorder %s28, 1
      %p214 = por %p212, %p213
      %p215 = scmp.ne.s32.totalorder %s206, %s207
      %p216 = scmp.eq.s32.totalorder %s28, 0
      %p217 = por %p215, %p216
      %p218 = scmp.ne.s32.totalorder %s206, %s207
      %p219 = scmp.eq.s32.totalorder %s29, 1
      %p220 = por %p218, %p219
      %p222 = scmp.ne.s32.totalorder %s207, %s221
      %p223 = scmp.eq.s32.totalorder %s29, 0
      %p224 = por %p222, %p223
      %s226 = sadd.s32 %s225, 1
      %p229 = scmp.eq.s32.totalorder %s23, 1
      %p230 = scmp.ne.s32.totalorder %s225, %s227
      %p231 = scmp.eq.s32.totalorder %s23, 0
      %p232 = por %p230, %p231
      %p233 = scmp.ne.s32.totalorder %s225, %s227
      %p234 = scmp.eq.s32.totalorder %s28, 1
      %p235 = por %p233, %p234
      %p236 = scmp.ne.s32.totalorder %s227, %s228
      %p237 = scmp.eq.s32.totalorder %s28, 0
      %p238 = por %p236, %p237
      %p239 = scmp.ne.s32.totalorder %s227, %s228
      %p240 = scmp.eq.s32.totalorder %s29, 1
      %p241 = por %p239, %p240
      %p243 = scmp.ne.s32.totalorder %s228, %s242
      %p244 = scmp.eq.s32.totalorder %s29, 0
      %p245 = por %p243, %p244
      %s247 = sadd.s32 %s246, 1
      %p250 = scmp.eq.s32.totalorder %s23, 1
      %p251 = scmp.ne.s32.totalorder %s246, %s248
      %p252 = scmp.eq.s32.totalorder %s23, 0
      %p253 = por %p251, %p252
      %p254 = scmp.ne.s32.totalorder %s246, %s248
      %p255 = scmp.eq.s32.totalorder %s28, 1
      %p256 = por %p254, %p255
      %p257 = scmp.ne.s32.totalorder %s248, %s249
      %p258 = scmp.eq.s32.totalorder %s28, 0
      %p259 = por %p257, %p258
      %p260 = scmp.ne.s32.totalorder %s248, %s249
      %p261 = scmp.eq.s32.totalorder %s29, 1
      %p262 = por %p260, %p261
      %p264 = scmp.ne.s32.totalorder %s249, %s263
      %p265 = scmp.eq.s32.totalorder %s29, 0
      %p266 = por %p264, %p265
      %s268 = sadd.s32 %s267, 1
      %p271 = scmp.eq.s32.totalorder %s23, 1
      %p272 = scmp.ne.s32.totalorder %s267, %s269
      %p273 = scmp.eq.s32.totalorder %s23, 0
      %p274 = por %p272, %p273
      %p275 = scmp.ne.s32.totalorder %s267, %s269
      %p276 = scmp.eq.s32.totalorder %s28, 1
      %p277 = por %p275, %p276
      %p278 = scmp.ne.s32.totalorder %s269, %s270
      %p279 = scmp.eq.s32.totalorder %s28, 0
      %p280 = por %p278, %p279
      %p281 = scmp.ne.s32.totalorder %s269, %s270
      %p282 = scmp.eq.s32.totalorder %s29, 1
      %p283 = por %p281, %p282
      %p285 = scmp.ne.s32.totalorder %s270, %s284
      %p286 = scmp.eq.s32.totalorder %s29, 0
      %p287 = por %p285, %p286
      %s289 = sadd.s32 %s288, 1
      %p292 = scmp.eq.s32.totalorder %s23, 1
      %p293 = scmp.ne.s32.totalorder %s288, %s290
      %p294 = scmp.eq.s32.totalorder %s23, 0
      %p295 = por %p293, %p294
      %p296 = scmp.ne.s32.totalorder %s288, %s290
      %p297 = scmp.eq.s32.totalorder %s28, 1
      %p298 = por %p296, %p297
      %p299 = scmp.ne.s32.totalorder %s290, %s291
      %p300 = scmp.eq.s32.totalorder %s28, 0
      %p301 = por %p299, %p300
      %p302 = scmp.ne.s32.totalorder %s290, %s291
      %p303 = scmp.eq.s32.totalorder %s29, 1
      %p304 = por %p302, %p303
      %p306 = scmp.ne.s32.totalorder %s291, %s305
      %p307 = scmp.eq.s32.totalorder %s29, 0
      %p308 = por %p306, %p307
      %s309 = ssub.s32 %s23, %s30
      %p310 = scmp.eq.s32.totalorder %s309, 0
      %s312 = sadd.s32 %s311, 1
      %s313 = scalar_select %p310, %s311, %s312
      %p316 = pneg %p310
      %p317 = scmp.eq.s32.totalorder %s23, 1
      %p318 = por %p316, %p317
      %p319 = scmp.ne.s32.totalorder %s311, %s314
      %p320 = scmp.eq.s32.totalorder %s23, 0
      %p321 = por %p319, %p320
      %p322 = scmp.ne.s32.totalorder %s311, %s314
      %p323 = scmp.eq.s32.totalorder %s28, 1
      %p324 = por %p322, %p323
      %p325 = scmp.ne.s32.totalorder %s314, %s315
      %p326 = scmp.eq.s32.totalorder %s28, 0
      %p327 = por %p325, %p326
      %p328 = scmp.ne.s32.totalorder %s314, %s315
      %p329 = scmp.eq.s32.totalorder %s29, 1
      %p330 = por %p328, %p329
      %p332 = scmp.ne.s32.totalorder %s315, %s331
      %p333 = scmp.eq.s32.totalorder %s29, 0
      %p334 = por %p332, %p333
      %p335 = scmp.le.s32.totalorder 1, %s23
      %p336 = scmp.lt.s32.totalorder %s23, 3
      %p337 = pnand %p335, %p336
      %p338 = pneg %p337
      // Predicated region
      $region9: #{hal9000_forward.1} parent=5 // pred_check
        _
      $region10: #{hal9000_forward.1} parent=5 // pred_check_branch
        %340 = sbr.rel (%p337) target = $region12
      $region11: #{hal9000_forward.1} parent=5 // pred_region
        %s341 = ssub.s32 %s23, 1
        // Predicated region
        $region13: #{hal9000_forward.1} parent=11 // pred_check
          %p342 = pneg %p70
        $region14: #{hal9000_forward.1} parent=11 // pred_check_branch
          %344 = sbr.rel (%p342) target = $region16
        $region15: #{hal9000_forward.1} parent=11 // pred_region
          _
        $region16: #{hal9000_forward.1} parent=11 // pred_fallthru
          _
        // Predicated region
        $region17: #{hal9000_forward.1} parent=11 // pred_check
          %p345 = pneg %p91
        $region18: #{hal9000_forward.1} parent=11 // pred_check_branch
          %347 = sbr.rel (%p345) target = $region20
        $region19: #{hal9000_forward.1} parent=11 // pred_region
          _
        $region20: #{hal9000_forward.1} parent=11 // pred_fallthru
          _
        // Predicated region
        $region21: #{hal9000_forward.1} parent=11 // pred_check
          %p348 = pneg %p112
        $region22: #{hal9000_forward.1} parent=11 // pred_check_branch
          %350 = sbr.rel (%p348) target = $region24
        $region23: #{hal9000_forward.1} parent=11 // pred_region
          _
        $region24: #{hal9000_forward.1} parent=11 // pred_fallthru
          _
        // Predicated region
        $region25: #{hal9000_forward.1} parent=11 // pred_check
          %p351 = pneg %p133
        $region26: #{hal9000_forward.1} parent=11 // pred_check_branch
          %353 = sbr.rel (%p351) target = $region28
        $region27: #{hal9000_forward.1} parent=11 // pred_region
          _
        $region28: #{hal9000_forward.1} parent=11 // pred_fallthru
          _
        // Predicated region
        $region29: #{hal9000_forward.1} parent=11 // pred_check
          %p354 = pneg %p154
        $region30: #{hal9000_forward.1} parent=11 // pred_check_branch
          %356 = sbr.rel (%p354) target = $region32
        $region31: #{hal9000_forward.1} parent=11 // pred_region
          _
        $region32: #{hal9000_forward.1} parent=11 // pred_fallthru
          _
        // Predicated region
        $region33: #{hal9000_forward.1} parent=11 // pred_check
          %p357 = pneg %p175
        $region34: #{hal9000_forward.1} parent=11 // pred_check_branch
          %359 = sbr.rel (%p357) target = $region36
        $region35: #{hal9000_forward.1} parent=11 // pred_region
          _
        $region36: #{hal9000_forward.1} parent=11 // pred_fallthru
          _
        // Predicated region
        $region37: #{hal9000_forward.1} parent=11 // pred_check
          %p360 = pneg %p196
        $region38: #{hal9000_forward.1} parent=11 // pred_check_branch
          %362 = sbr.rel (%p360) target = $region40
        $region39: #{hal9000_forward.1} parent=11 // pred_region
          _
        $region40: #{hal9000_forward.1} parent=11 // pred_fallthru
          _
        // Predicated region
        $region41: #{hal9000_forward.1} parent=11 // pred_check
          %p363 = pneg %p217
        $region42: #{hal9000_forward.1} parent=11 // pred_check_branch
          %365 = sbr.rel (%p363) target = $region44
        $region43: #{hal9000_forward.1} parent=11 // pred_region
          %s367 = ssub.s32 1280, 1280
          %368 = vsyncadd [#allocation3], %s367
          %s369 = sshll.u32 [#allocation2], 4
          %s370 = int_to_ptr.vmem [resolvable:$true] %s369
          %375 = dma.hbm_to_vmem [thread:$0]  %s8, 1280, %s370, [#allocation3], 128, 128, 8
        $region44: #{hal9000_forward.1} parent=11 // pred_fallthru
          _
        // Predicated region
        $region45: #{hal9000_forward.1} parent=11 // pred_check
          %p376 = pneg %p238
        $region46: #{hal9000_forward.1} parent=11 // pred_check_branch
          %378 = sbr.rel (%p376) target = $region48
        $region47: #{hal9000_forward.1} parent=11 // pred_region
          _
        $region48: #{hal9000_forward.1} parent=11 // pred_fallthru
          _
        // Predicated region
        $region49: #{hal9000_forward.1} parent=11 // pred_check
          %p379 = pneg %p259
        $region50: #{hal9000_forward.1} parent=11 // pred_check_branch
          %381 = sbr.rel (%p379) target = $region52
        $region51: #{hal9000_forward.1} parent=11 // pred_region
          _
        $region52: #{hal9000_forward.1} parent=11 // pred_fallthru
          _
        // Predicated region
        $region53: #{hal9000_forward.1} parent=11 // pred_check
          %p382 = pneg %p280
        $region54: #{hal9000_forward.1} parent=11 // pred_check_branch
          %384 = sbr.rel (%p382) target = $region56
        $region55: #{hal9000_forward.1} parent=11 // pred_region
          _
        $region56: #{hal9000_forward.1} parent=11 // pred_fallthru
          _
        // Predicated region
        $region57: #{hal9000_forward.1} parent=11 // pred_check
          %p385 = pneg %p301
        $region58: #{hal9000_forward.1} parent=11 // pred_check_branch
          %387 = sbr.rel (%p385) target = $region60
        $region59: #{hal9000_forward.1} parent=11 // pred_region
          _
        $region60: #{hal9000_forward.1} parent=11 // pred_fallthru
          _
      $region12: #{hal9000_forward.1} parent=5 // pred_fallthru
        _
      %p388 = scmp.lt.s32.totalorder %s23, 2
      // Predicated region
      $region61: #{hal9000_forward.1} parent=5 // pred_check
        %p389 = pneg %p388
      $region62: #{hal9000_forward.1} parent=5 // pred_check_branch
        %391 = sbr.rel (%p389) target = $region64
      $region63: #{hal9000_forward.1} parent=5 // pred_region
        // Predicated region
        $region65: #{hal9000_forward.1} parent=63 // pred_check
          %p392 = pneg %p43
        $region66: #{hal9000_forward.1} parent=63 // pred_check_branch
          %394 = sbr.rel (%p392) target = $region68
        $region67: #{hal9000_forward.1} parent=63 // pred_region
          %s395 = smul.u32 28, %s23
          %p396 = scmp.lt.s32.totalorder %s395, 55
          %s397 = scalar_select %p396, %s395, 55
          %s398 = smul.addr %s397, 8
          %s399 = scalar_lea.vmem %s0, %s398
          %s400 = smul.u32 28, %s23
        $region68: #{hal9000_forward.1} parent=63 // pred_fallthru
          _
      $region64: #{hal9000_forward.1} parent=5 // pred_fallthru
        _
      %p401 = scmp.le.s32.totalorder 1, %s23
      %p402 = scmp.lt.s32.totalorder %s23, 3
      %p403 = pnand %p401, %p402
      %p404 = pneg %p403
      // Predicated region
      $region69: #{hal9000_forward.1} parent=5 // pred_check
        _
      $region70: #{hal9000_forward.1} parent=5 // pred_check_branch
        %406 = sbr.rel (%p403) target = $region72
      $region71: #{hal9000_forward.1} parent=5 // pred_region
        %s407 = ssub.s32 %s23, 1
        // Predicated region
        $region73: #{hal9000_forward.1} parent=71 // pred_check
          %p408 = pneg %p217
        $region74: #{hal9000_forward.1} parent=71 // pred_check_branch
          %410 = sbr.rel (%p408) target = $region76
        $region75: #{hal9000_forward.1} parent=71 // pred_region
          %411 = dma.done [#allocation3], 1280
        $region76: #{hal9000_forward.1} parent=71 // pred_fallthru
          _
        %s412 = smul.u32 28, %s28
        %p413 = scmp.lt.s32.totalorder %s412, 55
        %s414 = scalar_select %p413, %s412, 55
        %s415 = smul.addr %s414, 8
        %s416 = scalar_lea.vmem %s0, %s415
        %p417 = pneg %p49
        %p418 = pneg %p46
        %p419 = pneg %p70
        %p420 = pneg %p67
        %p421 = pneg %p91
        %p422 = pneg %p88
        %p423 = pneg %p112
        %p424 = pneg %p109
        %p425 = pneg %p133
        %p426 = pneg %p130
        %p427 = pneg %p154
        %p428 = pneg %p151
        %p429 = pneg %p175
        %p430 = pneg %p172
        %p431 = pneg %p196
        %p432 = pneg %p193
        %p433 = pneg %p217
        %p434 = pneg %p214
        %p435 = pneg %p238
        %p436 = pneg %p235
        %p437 = pneg %p259
        %p438 = pneg %p256
        %p439 = pneg %p280
        %p440 = pneg %p277
        %p441 = pneg %p301
        %p442 = pneg %p298
        %p443 = pneg %p327
        %p444 = pneg %p324
        %s445 = sand.u32 %s314, 1
        %s446 = scalar_lea.sflag [#allocation4], %s445
        %s447 = sand.u32 %s314, 1
        %s448 = smul.addr %s447, 8
        %s449 = scalar_lea.vmem [#allocation5], %s448
        %s450 = smul.u32 28, %s28
        %p451 = scmp.lt.s32.totalorder %s450, 55
        %s452 = scalar_select %p451, %s450, 55
        %s453 = smul.addr %s452, 8
        %s454 = scalar_lea.vmem %s0, %s453
        %s455 = smul.u32 28, %s28
        %v456 = vld [vmem:[%s454] sm:$0xff]
        %v457 = vld [vmem:[%s454 + $0x8] sm:$0xff]
        %v458 = vld [vmem:[%s454 + $0x10] sm:$0xff]
        %v459 = vld [vmem:[%s454 + $0x18] sm:$0xff]
        %v460 = vld [vmem:[%s454 + $0x20] sm:$0xff]
        %v461 = vld [vmem:[%s454 + $0x28] sm:$0xff]
        %v462 = vld [vmem:[%s454 + $0x30] sm:$0xff]
        %v463 = vld [vmem:[%s454 + $0x38] sm:$0xff]
        %v464 = vld [vmem:[%s454 + $0x40] sm:$0xff]
        %v465 = vld [vmem:[%s454 + $0x48] sm:$0xff]
        %v466 = vld [vmem:[%s454 + $0x50] sm:$0xff]
        %v467 = vld [vmem:[%s454 + $0x58] sm:$0xff]
        %v468 = vld [vmem:[%s454 + $0x60] sm:$0xff]
        %v469 = vld [vmem:[%s454 + $0x68] sm:$0xff]
        %v470 = vld [vmem:[%s454 + $0x70] sm:$0xff]
        %v471 = vld [vmem:[%s454 + $0x78] sm:$0xff]
        %v472 = vld [vmem:[%s454 + $0x80] sm:$0xff]
        %v473 = vld [vmem:[%s454 + $0x88] sm:$0xff]
        %v474 = vld [vmem:[%s454 + $0x90] sm:$0xff]
        %v475 = vld [vmem:[%s454 + $0x98] sm:$0xff]
        %v476 = vld [vmem:[%s454 + $0xa0] sm:$0xff]
        %v477 = vld [vmem:[%s454 + $0xa8] sm:$0xff]
        %v478 = vld [vmem:[%s454 + $0xb0] sm:$0xff]
        %v479 = vld [vmem:[%s454 + $0xb8] sm:$0xff]
        %v480 = vld [vmem:[%s1] sm:$0xff]
        %v481 = vld [vmem:[%s1 + $0x8] sm:$0xff]
        %v482 = vld [vmem:[%s1 + $0x10] sm:$0xff]
        %v483 = vld [vmem:[%s1 + $0x18] sm:$0xff]
        %v484 = vld [vmem:[%s1 + $0x20] sm:$0xff]
        %v485 = vld [vmem:[%s1 + $0x28] sm:$0xff]
        %v486 = vld [vmem:[%s1 + $0x30] sm:$0xf]
        %v487 = vld [vmem:[%s1 + $0x38] sm:$0xf]
        %v488 = vld [vmem:[%s454 + $0xc0] sm:$0xff]
        %s489 = scalar_lea.vmem %s1, 64
        %v490 = vld [vmem:[%s489] sm:$0xff]
        %v491 = vld [vmem:[%s489 + $0x8] sm:$0xff]
        %v492 = vld [vmem:[%s489 + $0x10] sm:$0xff]
        %v493 = vld [vmem:[%s489 + $0x18] sm:$0xff]
        %v494 = vld [vmem:[%s489 + $0x20] sm:$0xff]
        %v495 = vld [vmem:[%s489 + $0x28] sm:$0xff]
        %v496 = vld [vmem:[%s489 + $0x30] sm:$0xf]
        %v497 = vld [vmem:[%s489 + $0x38] sm:$0xf]
        %vm498 = vcmask 228352
        %v500 = vsel %vm498, %v457, 0
        %v503 = vsel %vm498, %v458, 0
        %v506 = vsel %vm498, %v459, 0
        %v509 = vsel %vm498, %v460, 0
        %v512 = vsel %vm498, %v461, 0
        %v515 = vsel %vm498, %v462, 0
        %v518 = vsel %vm498, %v463, 0
        %v521 = vsel %vm498, %v464, 0
        %v524 = vsel %vm498, %v465, 0
        %v527 = vsel %vm498, %v466, 0
        %v530 = vsel %vm498, %v467, 0
        %v533 = vsel %vm498, %v468, 0
        %v536 = vsel %vm498, %v469, 0
        %v539 = vsel %vm498, %v470, 0
        %v542 = vsel %vm498, %v471, 0
        %v545 = vsel %vm498, %v472, 0
        %v548 = vsel %vm498, %v473, 0
        %v551 = vsel %vm498, %v474, 0
        %v554 = vsel %vm498, %v475, 0
        %v557 = vsel %vm498, %v476, 0
        %v560 = vsel %vm498, %v477, 0
        %v563 = vsel %vm498, %v478, 0
        %v566 = vsel %vm498, %v479, 0
        %v569 = vsel %vm498, %v488, 0
        %vm571 = vcmask 1043456
        %v573 = vsel %vm571, %v496, 0
        %v576 = vsel %vm571, %v497, 0
        %578 = vmatprep.subr.mxu0 %v491
        %579 = vmatpush1.msra.mxu0 %v490
        %580 = vmatprep.subr.mxu0 %v493
        %581 = vmatpush1.msra.mxu0 %v492
        %582 = vmatprep.subr.mxu0 %v495
        %583 = vmatpush1.msra.mxu0 %v494
        %584 = vmatprep.subr.mxu0 %v576
        %585 = vmatpush1.msra.mxu0 %v573
        %586 = vmatprep.subr.mxu0 0.0
        %587 = vmatpush1.msra.mxu0 0.0
        %588 = vmatprep.subr.mxu0 0.0
        %589 = vmatpush1.msra.mxu0 0.0
        %590 = vmatprep.subr.mxu0 0.0
        %591 = vmatpush1.msra.mxu0 0.0
        %592 = vmatprep.subr.mxu0 0.0
        %593 = vmatpush1.msra.mxu0 0.0
        %594 = vmatprep.subr.mxu0 0.0
        %595 = vmatpush1.msra.mxu0 0.0
        %596 = vmatprep.subr.mxu0 0.0
        %597 = vmatpush1.msra.mxu0 0.0
        %598 = vmatprep.subr.mxu0 0.0
        %599 = vmatpush1.msra.mxu0 0.0
        %600 = vmatprep.subr.mxu0 0.0
        %601 = vmatpush1.msra.mxu0 0.0
        %602 = vmatprep.subr.mxu0 0.0
        %603 = vmatpush1.msra.mxu0 0.0
        %604 = vmatprep.subr.mxu0 0.0
        %605 = vmatpush1.msra.mxu0 0.0
        %606 = vmatprep.subr.mxu0 0.0
        %607 = vmatpush1.msra.mxu0 0.0
        %608 = vmatprep.subr.mxu0 0.0
        %609 = vmatpush1.msra.mxu0 0.0
        %610 = vmatprep.subr.mxu0 0.0
        %611 = vmatpush1.msra.mxu0 0.0
        %612 = vmatprep.subr.mxu0 0.0
        %613 = vmatpush1.msra.mxu0 0.0
        %614 = vmatprep.subr.mxu0 0.0
        %615 = vmatpush1.msra.mxu0 0.0
        %616 = vmatprep.subr.mxu0 0.0
        %617 = vmatpush1.msra.mxu0 0.0
        %618 = vmatprep.subr.mxu0 0.0
        %619 = vmatpush1.msra.mxu0 0.0
        %620 = vmatprep.subr.mxu0 0.0
        %621 = vmatpush1.msra.mxu0 0.0
        %622 = vmatprep.subr.mxu0 0.0
        %623 = vmatpush1.msra.mxu0 0.0
        %624 = vmatprep.subr.mxu0 0.0
        %625 = vmatpush1.msra.mxu0 0.0
        %626 = vmatprep.subr.mxu0 0.0
        %627 = vmatpush1.msra.mxu0 0.0
        %628 = vmatprep.subr.mxu0 0.0
        %629 = vmatpush1.msra.mxu0 0.0
        %630 = vmatprep.subr.mxu0 0.0
        %631 = vmatpush1.msra.mxu0 0.0
        %632 = vmatprep.subr.mxu0 0.0
        %633 = vmatpush1.msra.mxu0 0.0
        %634 = vmatprep.subr.mxu0 0.0
        %635 = vmatpush1.msra.mxu0 0.0
        %636 = vmatprep.subr.mxu0 0.0
        %637 = vmatpush1.msra.mxu0 0.0
        %638 = vmatprep.subr.mxu0 0.0
        %639 = vmatpush1.msra.mxu0 0.0
        %640 = vmatprep.subr.mxu0 0.0
        %641 = vmatpush1.msra.mxu0 0.0
        %642 = vmatprep.mubr.f32.mxu0 0.0
        %643 = vmatmul.mubr.f32.gmra.mrb[0].mxu0 %v500
        %v644 = vpop.f32.mrb[0].mxu0
        %v645 = vadd.f32 0.0, %v644
        %v646 = vpop.f32.mrb[0].mxu0
        %v647 = vadd.f32 0.0, %v646
        %648 = vmatprep.mubr.f32.mxu0 0.0
        %649 = vmatmul.mubr.f32.gmra.mrb[0].mxu0 %v503
        %v650 = vpop.f32.mrb[0].mxu0
        %v651 = vadd.f32 0.0, %v650
        %v652 = vpop.f32.mrb[0].mxu0
        %v653 = vadd.f32 0.0, %v652
        %654 = vmatprep.mubr.f32.mxu0 0.0
        %655 = vmatmul.mubr.f32.gmra.mrb[0].mxu0 %v506
        %v656 = vpop.f32.mrb[0].mxu0
        %v657 = vadd.f32 0.0, %v656
        %v658 = vpop.f32.mrb[0].mxu0
        %v659 = vadd.f32 0.0, %v658
        %660 = vmatprep.mubr.f32.mxu0 0.0
        %661 = vmatmul.mubr.f32.gmra.mrb[0].mxu0 %v509
        %v662 = vpop.f32.mrb[0].mxu0
        %v663 = vadd.f32 0.0, %v662
        %v664 = vpop.f32.mrb[0].mxu0
        %v665 = vadd.f32 0.0, %v664
        %666 = vmatprep.mubr.f32.mxu0 0.0
        %667 = vmatmul.mubr.f32.gmra.mrb[0].mxu0 %v512
        %v668 = vpop.f32.mrb[0].mxu0
        %v669 = vadd.f32 0.0, %v668
        %v670 = vpop.f32.mrb[0].mxu0
        %v671 = vadd.f32 0.0, %v670
        %672 = vmatprep.mubr.f32.mxu0 0.0
        %673 = vmatmul.mubr.f32.gmra.mrb[0].mxu0 %v515
        %v674 = vpop.f32.mrb[0].mxu0
        %v675 = vadd.f32 0.0, %v674
        %v676 = vpop.f32.mrb[0].mxu0
        %v677 = vadd.f32 0.0, %v676
        %678 = vmatprep.mubr.f32.mxu0 0.0
        %679 = vmatmul.mubr.f32.gmra.mrb[0].mxu0 %v518
        %v680 = vpop.f32.mrb[0].mxu0
        %v681 = vadd.f32 0.0, %v680
        %v682 = vpop.f32.mrb[0].mxu0
        %v683 = vadd.f32 0.0, %v682
        %684 = vmatprep.mubr.f32.mxu0 0.0
        %685 = vmatmul.mubr.f32.gmra.mrb[0].mxu0 %v521
        %v686 = vpop.f32.mrb[0].mxu0
        %v687 = vadd.f32 0.0, %v686
        %v688 = vpop.f32.mrb[0].mxu0
        %v689 = vadd.f32 0.0, %v688
        %690 = vmatprep.mubr.f32.mxu0 0.0
        %691 = vmatmul.mubr.f32.gmra.mrb[0].mxu0 %v524
        %v692 = vpop.f32.mrb[0].mxu0
        %v693 = vadd.f32 0.0, %v692
        %v694 = vpop.f32.mrb[0].mxu0
        %v695 = vadd.f32 0.0, %v694
        %696 = vmatprep.mubr.f32.mxu0 0.0
        %697 = vmatmul.mubr.f32.gmra.mrb[0].mxu0 %v527
        %v698 = vpop.f32.mrb[0].mxu0
        %v699 = vadd.f32 0.0, %v698
        %v700 = vpop.f32.mrb[0].mxu0
        %v701 = vadd.f32 0.0, %v700
        %702 = vmatprep.mubr.f32.mxu0 0.0
        %703 = vmatmul.mubr.f32.gmra.mrb[0].mxu0 %v530
        %v704 = vpop.f32.mrb[0].mxu0
        %v705 = vadd.f32 0.0, %v704
        %v706 = vpop.f32.mrb[0].mxu0
        %v707 = vadd.f32 0.0, %v706
        %708 = vmatprep.mubr.f32.mxu0 0.0
        %709 = vmatmul.mubr.f32.gmra.mrb[0].mxu0 %v533
        %v710 = vpop.f32.mrb[0].mxu0
        %v711 = vadd.f32 0.0, %v710
        %v712 = vpop.f32.mrb[0].mxu0
        %v713 = vadd.f32 0.0, %v712
        %714 = vmatprep.mubr.f32.mxu0 0.0
        %715 = vmatmul.mubr.f32.gmra.mrb[0].mxu0 %v536
        %v716 = vpop.f32.mrb[0].mxu0
        %v717 = vadd.f32 0.0, %v716
        %v718 = vpop.f32.mrb[0].mxu0
        %v719 = vadd.f32 0.0, %v718
        %720 = vmatprep.mubr.f32.mxu0 0.0
        %721 = vmatmul.mubr.f32.gmra.mrb[0].mxu0 %v539
        %v722 = vpop.f32.mrb[0].mxu0
        %v723 = vadd.f32 0.0, %v722
        %v724 = vpop.f32.mrb[0].mxu0
        %v725 = vadd.f32 0.0, %v724
        %726 = vmatprep.mubr.f32.mxu0 0.0
        %727 = vmatmul.mubr.f32.gmra.mrb[0].mxu0 %v542
        %v728 = vpop.f32.mrb[0].mxu0
        %v729 = vadd.f32 0.0, %v728
        %v730 = vpop.f32.mrb[0].mxu0
        %v731 = vadd.f32 0.0, %v730
        %732 = vmatprep.mubr.f32.mxu0 0.0
        %733 = vmatmul.mubr.f32.gmra.mrb[0].mxu0 %v545
        %v734 = vpop.f32.mrb[0].mxu0
        %v735 = vadd.f32 0.0, %v734
        %v736 = vpop.f32.mrb[0].mxu0
        %v737 = vadd.f32 0.0, %v736
        %738 = vmatprep.mubr.f32.mxu0 0.0
        %739 = vmatmul.mubr.f32.gmra.mrb[0].mxu0 %v548
        %v740 = vpop.f32.mrb[0].mxu0
        %v741 = vadd.f32 0.0, %v740
        %v742 = vpop.f32.mrb[0].mxu0
        %v743 = vadd.f32 0.0, %v742
        %744 = vmatprep.mubr.f32.mxu0 0.0
        %745 = vmatmul.mubr.f32.gmra.mrb[0].mxu0 %v551
        %v746 = vpop.f32.mrb[0].mxu0
        %v747 = vadd.f32 0.0, %v746
        %v748 = vpop.f32.mrb[0].mxu0
        %v749 = vadd.f32 0.0, %v748
        %750 = vmatprep.mubr.f32.mxu0 0.0
        %751 = vmatmul.mubr.f32.gmra.mrb[0].mxu0 %v554
        %v752 = vpop.f32.mrb[0].mxu0
        %v753 = vadd.f32 0.0, %v752
        %v754 = vpop.f32.mrb[0].mxu0
        %v755 = vadd.f32 0.0, %v754
        %756 = vmatprep.mubr.f32.mxu0 0.0
        %757 = vmatmul.mubr.f32.gmra.mrb[0].mxu0 %v557
        %v758 = vpop.f32.mrb[0].mxu0
        %v759 = vadd.f32 0.0, %v758
        %v760 = vpop.f32.mrb[0].mxu0
        %v761 = vadd.f32 0.0, %v760
        %762 = vmatprep.mubr.f32.mxu0 0.0
        %763 = vmatmul.mubr.f32.gmra.mrb[0].mxu0 %v560
        %v764 = vpop.f32.mrb[0].mxu0
        %v765 = vadd.f32 0.0, %v764
        %v766 = vpop.f32.mrb[0].mxu0
        %v767 = vadd.f32 0.0, %v766
        %768 = vmatprep.mubr.f32.mxu0 0.0
        %769 = vmatmul.mubr.f32.gmra.mrb[0].mxu0 %v563
        %v770 = vpop.f32.mrb[0].mxu0
        %v771 = vadd.f32 0.0, %v770
        %v772 = vpop.f32.mrb[0].mxu0
        %v773 = vadd.f32 0.0, %v772
        %774 = vmatprep.mubr.f32.mxu0 0.0
        %775 = vmatmul.mubr.f32.gmra.mrb[0].mxu0 %v566
        %v776 = vpop.f32.mrb[0].mxu0
        %v777 = vadd.f32 0.0, %v776
        %v778 = vpop.f32.mrb[0].mxu0
        %v779 = vadd.f32 0.0, %v778
        %780 = vmatprep.mubr.f32.mxu0 0.0
        %781 = vmatmul.mubr.f32.gmra.mrb[0].mxu0 %v569
        %v782 = vpop.f32.mrb[0].mxu0
        %v783 = vadd.f32 0.0, %v782
        %v784 = vpop.f32.mrb[0].mxu0
        %v785 = vadd.f32 0.0, %v784
        %786 = vdwg.mxu0
        %v788 = vsel %vm498, %v456, 0
        %v791 = vsel %vm571, %v486, 0
        %v794 = vsel %vm571, %v487, 0
        %796 = vmatprep.subr.mxu0 %v481
        %797 = vmatpush1.msra.mxu0 %v480
        %798 = vmatprep.subr.mxu0 %v483
        %799 = vmatpush1.msra.mxu0 %v482
        %800 = vmatprep.subr.mxu0 %v485
        %801 = vmatpush1.msra.mxu0 %v484
        %802 = vmatprep.subr.mxu0 %v794
        %803 = vmatpush1.msra.mxu0 %v791
        %804 = vmatprep.subr.mxu0 0.0
        %805 = vmatpush1.msra.mxu0 0.0
        %806 = vmatprep.subr.mxu0 0.0
        %807 = vmatpush1.msra.mxu0 0.0
        %808 = vmatprep.subr.mxu0 0.0
        %809 = vmatpush1.msra.mxu0 0.0
        %810 = vmatprep.subr.mxu0 0.0
        %811 = vmatpush1.msra.mxu0 0.0
        %812 = vmatprep.subr.mxu0 0.0
        %813 = vmatpush1.msra.mxu0 0.0
        %814 = vmatprep.subr.mxu0 0.0
        %815 = vmatpush1.msra.mxu0 0.0
        %816 = vmatprep.subr.mxu0 0.0
        %817 = vmatpush1.msra.mxu0 0.0
        %818 = vmatprep.subr.mxu0 0.0
        %819 = vmatpush1.msra.mxu0 0.0
        %820 = vmatprep.subr.mxu0 0.0
        %821 = vmatpush1.msra.mxu0 0.0
        %822 = vmatprep.subr.mxu0 0.0
        %823 = vmatpush1.msra.mxu0 0.0
        %824 = vmatprep.subr.mxu0 0.0
        %825 = vmatpush1.msra.mxu0 0.0
        %826 = vmatprep.subr.mxu0 0.0
        %827 = vmatpush1.msra.mxu0 0.0
        %828 = vmatprep.subr.mxu0 0.0
        %829 = vmatpush1.msra.mxu0 0.0
        %830 = vmatprep.subr.mxu0 0.0
        %831 = vmatpush1.msra.mxu0 0.0
        %832 = vmatprep.subr.mxu0 0.0
        %833 = vmatpush1.msra.mxu0 0.0
        %834 = vmatprep.subr.mxu0 0.0
        %835 = vmatpush1.msra.mxu0 0.0
        %836 = vmatprep.subr.mxu0 0.0
        %837 = vmatpush1.msra.mxu0 0.0
        %838 = vmatprep.subr.mxu0 0.0
        %839 = vmatpush1.msra.mxu0 0.0
        %840 = vmatprep.subr.mxu0 0.0
        %841 = vmatpush1.msra.mxu0 0.0
        %842 = vmatprep.subr.mxu0 0.0
        %843 = vmatpush1.msra.mxu0 0.0
        %844 = vmatprep.subr.mxu0 0.0
        %845 = vmatpush1.msra.mxu0 0.0
        %846 = vmatprep.subr.mxu0 0.0
        %847 = vmatpush1.msra.mxu0 0.0
        %848 = vmatprep.subr.mxu0 0.0
        %849 = vmatpush1.msra.mxu0 0.0
        %850 = vmatprep.subr.mxu0 0.0
        %851 = vmatpush1.msra.mxu0 0.0
        %852 = vmatprep.subr.mxu0 0.0
        %853 = vmatpush1.msra.mxu0 0.0
        %854 = vmatprep.subr.mxu0 0.0
        %855 = vmatpush1.msra.mxu0 0.0
        %856 = vmatprep.subr.mxu0 0.0
        %857 = vmatpush1.msra.mxu0 0.0
        %858 = vmatprep.subr.mxu0 0.0
        %859 = vmatpush1.msra.mxu0 0.0
        %860 = vmatprep.mubr.f32.mxu0 0.0
        %861 = vmatmul.mubr.f32.gmra.mrb[0].mxu0 %v788
        %v862 = vpop.f32.mrb[0].mxu0
        %v863 = vadd.f32 %v645, %v862
        %v864 = vpop.f32.mrb[0].mxu0
        %v865 = vadd.f32 %v647, %v864
        %866 = vmatprep.mubr.f32.mxu0 0.0
        %867 = vmatmul.mubr.f32.gmra.mrb[0].mxu0 %v500
        %v868 = vpop.f32.mrb[0].mxu0
        %v869 = vadd.f32 %v651, %v868
        %v870 = vpop.f32.mrb[0].mxu0
        %v871 = vadd.f32 %v653, %v870
        %872 = vmatprep.mubr.f32.mxu0 0.0
        %873 = vmatmul.mubr.f32.gmra.mrb[0].mxu0 %v503
        %v874 = vpop.f32.mrb[0].mxu0
        %v875 = vadd.f32 %v657, %v874
        %v876 = vpop.f32.mrb[0].mxu0
        %v877 = vadd.f32 %v659, %v876
        %878 = vmatprep.mubr.f32.mxu0 0.0
        %879 = vmatmul.mubr.f32.gmra.mrb[0].mxu0 %v506
        %v880 = vpop.f32.mrb[0].mxu0
        %v881 = vadd.f32 %v663, %v880
        %v882 = vpop.f32.mrb[0].mxu0
        %v883 = vadd.f32 %v665, %v882
        %884 = vmatprep.mubr.f32.mxu0 0.0
        %885 = vmatmul.mubr.f32.gmra.mrb[0].mxu0 %v509
        %v886 = vpop.f32.mrb[0].mxu0
        %v887 = vadd.f32 %v669, %v886
        %v888 = vpop.f32.mrb[0].mxu0
        %v889 = vadd.f32 %v671, %v888
        %890 = vmatprep.mubr.f32.mxu0 0.0
        %891 = vmatmul.mubr.f32.gmra.mrb[0].mxu0 %v512
        %v892 = vpop.f32.mrb[0].mxu0
        %v893 = vadd.f32 %v675, %v892
        %v894 = vpop.f32.mrb[0].mxu0
        %v895 = vadd.f32 %v677, %v894
        %896 = vmatprep.mubr.f32.mxu0 0.0
        %897 = vmatmul.mubr.f32.gmra.mrb[0].mxu0 %v515
        %v898 = vpop.f32.mrb[0].mxu0
        %v899 = vadd.f32 %v681, %v898
        %v900 = vpop.f32.mrb[0].mxu0
        %v901 = vadd.f32 %v683, %v900
        %902 = vmatprep.mubr.f32.mxu0 0.0
        %903 = vmatmul.mubr.f32.gmra.mrb[0].mxu0 %v518
        %v904 = vpop.f32.mrb[0].mxu0
        %v905 = vadd.f32 %v687, %v904
        %v906 = vpop.f32.mrb[0].mxu0
        %v907 = vadd.f32 %v689, %v906
        %908 = vmatprep.mubr.f32.mxu0 0.0
        %909 = vmatmul.mubr.f32.gmra.mrb[0].mxu0 %v521
        %v910 = vpop.f32.mrb[0].mxu0
        %v911 = vadd.f32 %v693, %v910
        %v912 = vpop.f32.mrb[0].mxu0
        %v913 = vadd.f32 %v695, %v912
        %914 = vmatprep.mubr.f32.mxu0 0.0
        %915 = vmatmul.mubr.f32.gmra.mrb[0].mxu0 %v524
        %v916 = vpop.f32.mrb[0].mxu0
        %v917 = vadd.f32 %v699, %v916
        %v918 = vpop.f32.mrb[0].mxu0
        %v919 = vadd.f32 %v701, %v918
        %920 = vmatprep.mubr.f32.mxu0 0.0
        %921 = vmatmul.mubr.f32.gmra.mrb[0].mxu0 %v527
        %v922 = vpop.f32.mrb[0].mxu0
        %v923 = vadd.f32 %v705, %v922
        %v924 = vpop.f32.mrb[0].mxu0
        %v925 = vadd.f32 %v707, %v924
        %926 = vmatprep.mubr.f32.mxu0 0.0
        %927 = vmatmul.mubr.f32.gmra.mrb[0].mxu0 %v530
        %v928 = vpop.f32.mrb[0].mxu0
        %v929 = vadd.f32 %v711, %v928
        %v930 = vpop.f32.mrb[0].mxu0
        %v931 = vadd.f32 %v713, %v930
        %932 = vmatprep.mubr.f32.mxu0 0.0
        %933 = vmatmul.mubr.f32.gmra.mrb[0].mxu0 %v533
        %v934 = vpop.f32.mrb[0].mxu0
        %v935 = vadd.f32 %v717, %v934
        %v936 = vpop.f32.mrb[0].mxu0
        %v937 = vadd.f32 %v719, %v936
        %938 = vmatprep.mubr.f32.mxu0 0.0
        %939 = vmatmul.mubr.f32.gmra.mrb[0].mxu0 %v536
        %v940 = vpop.f32.mrb[0].mxu0
        %v941 = vadd.f32 %v723, %v940
        %v942 = vpop.f32.mrb[0].mxu0
        %v943 = vadd.f32 %v725, %v942
        %944 = vmatprep.mubr.f32.mxu0 0.0
        %945 = vmatmul.mubr.f32.gmra.mrb[0].mxu0 %v539
        %v946 = vpop.f32.mrb[0].mxu0
        %v947 = vadd.f32 %v729, %v946
        %v948 = vpop.f32.mrb[0].mxu0
        %v949 = vadd.f32 %v731, %v948
        %950 = vmatprep.mubr.f32.mxu0 0.0
        %951 = vmatmul.mubr.f32.gmra.mrb[0].mxu0 %v542
        %v952 = vpop.f32.mrb[0].mxu0
        %v953 = vadd.f32 %v735, %v952
        %v954 = vpop.f32.mrb[0].mxu0
        %v955 = vadd.f32 %v737, %v954
        %956 = vmatprep.mubr.f32.mxu0 0.0
        %957 = vmatmul.mubr.f32.gmra.mrb[0].mxu0 %v545
        %v958 = vpop.f32.mrb[0].mxu0
        %v959 = vadd.f32 %v741, %v958
        %v960 = vpop.f32.mrb[0].mxu0
        %v961 = vadd.f32 %v743, %v960
        %962 = vmatprep.mubr.f32.mxu0 0.0
        %963 = vmatmul.mubr.f32.gmra.mrb[0].mxu0 %v548
        %v964 = vpop.f32.mrb[0].mxu0
        %v965 = vadd.f32 %v747, %v964
        %v966 = vpop.f32.mrb[0].mxu0
        %v967 = vadd.f32 %v749, %v966
        %968 = vmatprep.mubr.f32.mxu0 0.0
        %969 = vmatmul.mubr.f32.gmra.mrb[0].mxu0 %v551
        %v970 = vpop.f32.mrb[0].mxu0
        %v971 = vadd.f32 %v753, %v970
        %v972 = vpop.f32.mrb[0].mxu0
        %v973 = vadd.f32 %v755, %v972
        %974 = vmatprep.mubr.f32.mxu0 0.0
        %975 = vmatmul.mubr.f32.gmra.mrb[0].mxu0 %v554
        %v976 = vpop.f32.mrb[0].mxu0
        %v977 = vadd.f32 %v759, %v976
        %v978 = vpop.f32.mrb[0].mxu0
        %v979 = vadd.f32 %v761, %v978
        %980 = vmatprep.mubr.f32.mxu0 0.0
        %981 = vmatmul.mubr.f32.gmra.mrb[0].mxu0 %v557
        %v982 = vpop.f32.mrb[0].mxu0
        %v983 = vadd.f32 %v765, %v982
        %v984 = vpop.f32.mrb[0].mxu0
        %v985 = vadd.f32 %v767, %v984
        %986 = vmatprep.mubr.f32.mxu0 0.0
        %987 = vmatmul.mubr.f32.gmra.mrb[0].mxu0 %v560
        %v988 = vpop.f32.mrb[0].mxu0
        %v989 = vadd.f32 %v771, %v988
        %v990 = vpop.f32.mrb[0].mxu0
        %v991 = vadd.f32 %v773, %v990
        %992 = vmatprep.mubr.f32.mxu0 0.0
        %993 = vmatmul.mubr.f32.gmra.mrb[0].mxu0 %v563
        %v994 = vpop.f32.mrb[0].mxu0
        %v995 = vadd.f32 %v777, %v994
        %v996 = vpop.f32.mrb[0].mxu0
        %v997 = vadd.f32 %v779, %v996
        %998 = vmatprep.mubr.f32.mxu0 0.0
        %999 = vmatmul.mubr.f32.gmra.mrb[0].mxu0 %v566
        %v1000 = vpop.f32.mrb[0].mxu0
        %v1001 = vadd.f32 %v783, %v1000
        %v1002 = vpop.f32.mrb[0].mxu0
        %v1003 = vadd.f32 %v785, %v1002
        %1004 = vdwg.mxu0
        %v1005 = vld [vmem:[%s454 + $0x10] sm:$0xff]
        %v1006 = vld [vmem:[%s454 + $0x18] sm:$0xff]
        %v1007 = vld [vmem:[%s454 + $0x20] sm:$0xff]
        %v1008 = vld [vmem:[%s454 + $0x28] sm:$0xff]
        %v1009 = vld [vmem:[%s454 + $0x30] sm:$0xff]
        %v1010 = vld [vmem:[%s454 + $0x38] sm:$0xff]
        %v1011 = vld [vmem:[%s454 + $0x40] sm:$0xff]
        %v1012 = vld [vmem:[%s454 + $0x48] sm:$0xff]
        %v1013 = vld [vmem:[%s454 + $0x50] sm:$0xff]
        %v1014 = vld [vmem:[%s454 + $0x58] sm:$0xff]
        %v1015 = vld [vmem:[%s454 + $0x60] sm:$0xff]
        %v1016 = vld [vmem:[%s454 + $0x68] sm:$0xff]
        %v1017 = vld [vmem:[%s454 + $0x70] sm:$0xff]
        %v1018 = vld [vmem:[%s454 + $0x78] sm:$0xff]
        %v1019 = vld [vmem:[%s454 + $0x80] sm:$0xff]
        %v1020 = vld [vmem:[%s454 + $0x88] sm:$0xff]
        %v1021 = vld [vmem:[%s454 + $0x90] sm:$0xff]
        %v1022 = vld [vmem:[%s454 + $0x98] sm:$0xff]
        %v1023 = vld [vmem:[%s454 + $0xa0] sm:$0xff]
        %v1024 = vld [vmem:[%s454 + $0xa8] sm:$0xff]
        %v1025 = vld [vmem:[%s454 + $0xb0] sm:$0xff]
        %v1026 = vld [vmem:[%s454 + $0xb8] sm:$0xff]
        %v1027 = vld [vmem:[%s454 + $0xc0] sm:$0xff]
        %v1028 = vld [vmem:[%s454 + $0xc8] sm:$0xff]
        %s1029 = scalar_lea.vmem %s1, 128
        %v1030 = vld [vmem:[%s1029] sm:$0xff]
        %v1031 = vld [vmem:[%s1029 + $0x8] sm:$0xff]
        %v1032 = vld [vmem:[%s1029 + $0x10] sm:$0xff]
        %v1033 = vld [vmem:[%s1029 + $0x18] sm:$0xff]
        %v1034 = vld [vmem:[%s1029 + $0x20] sm:$0xff]
        %v1035 = vld [vmem:[%s1029 + $0x28] sm:$0xff]
        %v1036 = vld [vmem:[%s1029 + $0x30] sm:$0xf]
        %v1037 = vld [vmem:[%s1029 + $0x38] sm:$0xf]
        %v1039 = vsel %vm498, %v1005, 0
        %v1042 = vsel %vm498, %v1006, 0
        %v1045 = vsel %vm498, %v1007, 0
        %v1048 = vsel %vm498, %v1008, 0
        %v1051 = vsel %vm498, %v1009, 0
        %v1054 = vsel %vm498, %v1010, 0
        %v1057 = vsel %vm498, %v1011, 0
        %v1060 = vsel %vm498, %v1012, 0
        %v1063 = vsel %vm498, %v1013, 0
        %v1066 = vsel %vm498, %v1014, 0
        %v1069 = vsel %vm498, %v1015, 0
        %v1072 = vsel %vm498, %v1016, 0
        %v1075 = vsel %vm498, %v1017, 0
        %v1078 = vsel %vm498, %v1018, 0
        %v1081 = vsel %vm498, %v1019, 0
        %v1084 = vsel %vm498, %v1020, 0
        %v1087 = vsel %vm498, %v1021, 0
        %v1090 = vsel %vm498, %v1022, 0
        %v1093 = vsel %vm498, %v1023, 0
        %v1096 = vsel %vm498, %v1024, 0
        %v1099 = vsel %vm498, %v1025, 0
        %v1102 = vsel %vm498, %v1026, 0
        %v1105 = vsel %vm498, %v1027, 0
        %v1108 = vsel %vm498, %v1028, 0
        %v1111 = vsel %vm571, %v1036, 0
        %v1114 = vsel %vm571, %v1037, 0
        %1116 = vmatprep.subr.mxu0 %v1031
        %1117 = vmatpush1.msra.mxu0 %v1030
        %1118 = vmatprep.subr.mxu0 %v1033
        %1119 = vmatpush1.msra.mxu0 %v1032
        %1120 = vmatprep.subr.mxu0 %v1035
        %1121 = vmatpush1.msra.mxu0 %v1034
        %1122 = vmatprep.subr.mxu0 %v1114
        %1123 = vmatpush1.msra.mxu0 %v1111
        %1124 = vmatprep.subr.mxu0 0.0
        %1125 = vmatpush1.msra.mxu0 0.0
        %1126 = vmatprep.subr.mxu0 0.0
        %1127 = vmatpush1.msra.mxu0 0.0
        %1128 = vmatprep.subr.mxu0 0.0
        %1129 = vmatpush1.msra.mxu0 0.0
        %1130 = vmatprep.subr.mxu0 0.0
        %1131 = vmatpush1.msra.mxu0 0.0
        %1132 = vmatprep.subr.mxu0 0.0
        %1133 = vmatpush1.msra.mxu0 0.0
        %1134 = vmatprep.subr.mxu0 0.0
        %1135 = vmatpush1.msra.mxu0 0.0
        %1136 = vmatprep.subr.mxu0 0.0
        %1137 = vmatpush1.msra.mxu0 0.0
        %1138 = vmatprep.subr.mxu0 0.0
        %1139 = vmatpush1.msra.mxu0 0.0
        %1140 = vmatprep.subr.mxu0 0.0
        %1141 = vmatpush1.msra.mxu0 0.0
        %1142 = vmatprep.subr.mxu0 0.0
        %1143 = vmatpush1.msra.mxu0 0.0
        %1144 = vmatprep.subr.mxu0 0.0
        %1145 = vmatpush1.msra.mxu0 0.0
        %1146 = vmatprep.subr.mxu0 0.0
        %1147 = vmatpush1.msra.mxu0 0.0
        %1148 = vmatprep.subr.mxu0 0.0
        %1149 = vmatpush1.msra.mxu0 0.0
        %1150 = vmatprep.subr.mxu0 0.0
        %1151 = vmatpush1.msra.mxu0 0.0
        %1152 = vmatprep.subr.mxu0 0.0
        %1153 = vmatpush1.msra.mxu0 0.0
        %1154 = vmatprep.subr.mxu0 0.0
        %1155 = vmatpush1.msra.mxu0 0.0
        %1156 = vmatprep.subr.mxu0 0.0
        %1157 = vmatpush1.msra.mxu0 0.0
        %1158 = vmatprep.subr.mxu0 0.0
        %1159 = vmatpush1.msra.mxu0 0.0
        %1160 = vmatprep.subr.mxu0 0.0
        %1161 = vmatpush1.msra.mxu0 0.0
        %1162 = vmatprep.subr.mxu0 0.0
        %1163 = vmatpush1.msra.mxu0 0.0
        %1164 = vmatprep.subr.mxu0 0.0
        %1165 = vmatpush1.msra.mxu0 0.0
        %1166 = vmatprep.subr.mxu0 0.0
        %1167 = vmatpush1.msra.mxu0 0.0
        %1168 = vmatprep.subr.mxu0 0.0
        %1169 = vmatpush1.msra.mxu0 0.0
        %1170 = vmatprep.subr.mxu0 0.0
        %1171 = vmatpush1.msra.mxu0 0.0
        %1172 = vmatprep.subr.mxu0 0.0
        %1173 = vmatpush1.msra.mxu0 0.0
        %1174 = vmatprep.subr.mxu0 0.0
        %1175 = vmatpush1.msra.mxu0 0.0
        %1176 = vmatprep.subr.mxu0 0.0
        %1177 = vmatpush1.msra.mxu0 0.0
        %1178 = vmatprep.subr.mxu0 0.0
        %1179 = vmatpush1.msra.mxu0 0.0
        %1180 = vmatprep.mubr.f32.mxu0 0.0
        %1181 = vmatmul.mubr.f32.gmra.mrb[0].mxu0 %v1039
        %v1182 = vpop.f32.mrb[0].mxu0
        %v1183 = vadd.f32 0.0, %v1182
        %v1184 = vpop.f32.mrb[0].mxu0
        %v1185 = vadd.f32 0.0, %v1184
        %1186 = vmatprep.mubr.f32.mxu0 0.0
        %1187 = vmatmul.mubr.f32.gmra.mrb[0].mxu0 %v1042
        %v1188 = vpop.f32.mrb[0].mxu0
        %v1189 = vadd.f32 0.0, %v1188
        %v1190 = vpop.f32.mrb[0].mxu0
        %v1191 = vadd.f32 0.0, %v1190
        %1192 = vmatprep.mubr.f32.mxu0 0.0
        %1193 = vmatmul.mubr.f32.gmra.mrb[0].mxu0 %v1045
        %v1194 = vpop.f32.mrb[0].mxu0
        %v1195 = vadd.f32 0.0, %v1194
        %v1196 = vpop.f32.mrb[0].mxu0
        %v1197 = vadd.f32 0.0, %v1196
        %1198 = vmatprep.mubr.f32.mxu0 0.0
        %1199 = vmatmul.mubr.f32.gmra.mrb[0].mxu0 %v1048
        %v1200 = vpop.f32.mrb[0].mxu0
        %v1201 = vadd.f32 0.0, %v1200
        %v1202 = vpop.f32.mrb[0].mxu0
        %v1203 = vadd.f32 0.0, %v1202
        %1204 = vmatprep.mubr.f32.mxu0 0.0
        %1205 = vmatmul.mubr.f32.gmra.mrb[0].mxu0 %v1051
        %v1206 = vpop.f32.mrb[0].mxu0
        %v1207 = vadd.f32 0.0, %v1206
        %v1208 = vpop.f32.mrb[0].mxu0
        %v1209 = vadd.f32 0.0, %v1208
        %1210 = vmatprep.mubr.f32.mxu0 0.0
        %1211 = vmatmul.mubr.f32.gmra.mrb[0].mxu0 %v1054
        %v1212 = vpop.f32.mrb[0].mxu0
        %v1213 = vadd.f32 0.0, %v1212
        %v1214 = vpop.f32.mrb[0].mxu0
        %v1215 = vadd.f32 0.0, %v1214
        %1216 = vmatprep.mubr.f32.mxu0 0.0
        %1217 = vmatmul.mubr.f32.gmra.mrb[0].mxu0 %v1057
        %v1218 = vpop.f32.mrb[0].mxu0
        %v1219 = vadd.f32 0.0, %v1218
        %v1220 = vpop.f32.mrb[0].mxu0
        %v1221 = vadd.f32 0.0, %v1220
        %1222 = vmatprep.mubr.f32.mxu0 0.0
        %1223 = vmatmul.mubr.f32.gmra.mrb[0].mxu0 %v1060
        %v1224 = vpop.f32.mrb[0].mxu0
        %v1225 = vadd.f32 0.0, %v1224
        %v1226 = vpop.f32.mrb[0].mxu0
        %v1227 = vadd.f32 0.0, %v1226
        %1228 = vmatprep.mubr.f32.mxu0 0.0
        %1229 = vmatmul.mubr.f32.gmra.mrb[0].mxu0 %v1063
        %v1230 = vpop.f32.mrb[0].mxu0
        %v1231 = vadd.f32 0.0, %v1230
        %v1232 = vpop.f32.mrb[0].mxu0
        %v1233 = vadd.f32 0.0, %v1232
        %1234 = vmatprep.mubr.f32.mxu0 0.0
        %1235 = vmatmul.mubr.f32.gmra.mrb[0].mxu0 %v1066
        %v1236 = vpop.f32.mrb[0].mxu0
        %v1237 = vadd.f32 0.0, %v1236
        %v1238 = vpop.f32.mrb[0].mxu0
        %v1239 = vadd.f32 0.0, %v1238
        %1240 = vmatprep.mubr.f32.mxu0 0.0
        %1241 = vmatmul.mubr.f32.gmra.mrb[0].mxu0 %v1069
        %v1242 = vpop.f32.mrb[0].mxu0
        %v1243 = vadd.f32 0.0, %v1242
        %v1244 = vpop.f32.mrb[0].mxu0
        %v1245 = vadd.f32 0.0, %v1244
        %1246 = vmatprep.mubr.f32.mxu0 0.0
        %1247 = vmatmul.mubr.f32.gmra.mrb[0].mxu0 %v1072
        %v1248 = vpop.f32.mrb[0].mxu0
        %v1249 = vadd.f32 0.0, %v1248
        %v1250 = vpop.f32.mrb[0].mxu0
        %v1251 = vadd.f32 0.0, %v1250
        %1252 = vmatprep.mubr.f32.mxu0 0.0
        %1253 = vmatmul.mubr.f32.gmra.mrb[0].mxu0 %v1075
        %v1254 = vpop.f32.mrb[0].mxu0
        %v1255 = vadd.f32 0.0, %v1254
        %v1256 = vpop.f32.mrb[0].mxu0
        %v1257 = vadd.f32 0.0, %v1256
        %1258 = vmatprep.mubr.f32.mxu0 0.0
        %1259 = vmatmul.mubr.f32.gmra.mrb[0].mxu0 %v1078
        %v1260 = vpop.f32.mrb[0].mxu0
        %v1261 = vadd.f32 0.0, %v1260
        %v1262 = vpop.f32.mrb[0].mxu0
        %v1263 = vadd.f32 0.0, %v1262
        %1264 = vmatprep.mubr.f32.mxu0 0.0
        %1265 = vmatmul.mubr.f32.gmra.mrb[0].mxu0 %v1081
        %v1266 = vpop.f32.mrb[0].mxu0
        %v1267 = vadd.f32 0.0, %v1266
        %v1268 = vpop.f32.mrb[0].mxu0
        %v1269 = vadd.f32 0.0, %v1268
        %1270 = vmatprep.mubr.f32.mxu0 0.0
        %1271 = vmatmul.mubr.f32.gmra.mrb[0].mxu0 %v1084
        %v1272 = vpop.f32.mrb[0].mxu0
        %v1273 = vadd.f32 0.0, %v1272
        %v1274 = vpop.f32.mrb[0].mxu0
        %v1275 = vadd.f32 0.0, %v1274
        %1276 = vmatprep.mubr.f32.mxu0 0.0
        %1277 = vmatmul.mubr.f32.gmra.mrb[0].mxu0 %v1087
        %v1278 = vpop.f32.mrb[0].mxu0
        %v1279 = vadd.f32 0.0, %v1278
        %v1280 = vpop.f32.mrb[0].mxu0
        %v1281 = vadd.f32 0.0, %v1280
        %1282 = vmatprep.mubr.f32.mxu0 0.0
        %1283 = vmatmul.mubr.f32.gmra.mrb[0].mxu0 %v1090
        %v1284 = vpop.f32.mrb[0].mxu0
        %v1285 = vadd.f32 0.0, %v1284
        %v1286 = vpop.f32.mrb[0].mxu0
        %v1287 = vadd.f32 0.0, %v1286
        %1288 = vmatprep.mubr.f32.mxu0 0.0
        %1289 = vmatmul.mubr.f32.gmra.mrb[0].mxu0 %v1093
        %v1290 = vpop.f32.mrb[0].mxu0
        %v1291 = vadd.f32 0.0, %v1290
        %v1292 = vpop.f32.mrb[0].mxu0
        %v1293 = vadd.f32 0.0, %v1292
        %1294 = vmatprep.mubr.f32.mxu0 0.0
        %1295 = vmatmul.mubr.f32.gmra.mrb[0].mxu0 %v1096
        %v1296 = vpop.f32.mrb[0].mxu0
        %v1297 = vadd.f32 0.0, %v1296
        %v1298 = vpop.f32.mrb[0].mxu0
        %v1299 = vadd.f32 0.0, %v1298
        %1300 = vmatprep.mubr.f32.mxu0 0.0
        %1301 = vmatmul.mubr.f32.gmra.mrb[0].mxu0 %v1099
        %v1302 = vpop.f32.mrb[0].mxu0
        %v1303 = vadd.f32 0.0, %v1302
        %v1304 = vpop.f32.mrb[0].mxu0
        %v1305 = vadd.f32 0.0, %v1304
        %1306 = vmatprep.mubr.f32.mxu0 0.0
        %1307 = vmatmul.mubr.f32.gmra.mrb[0].mxu0 %v1102
        %v1308 = vpop.f32.mrb[0].mxu0
        %v1309 = vadd.f32 0.0, %v1308
        %v1310 = vpop.f32.mrb[0].mxu0
        %v1311 = vadd.f32 0.0, %v1310
        %1312 = vmatprep.mubr.f32.mxu0 0.0
        %1313 = vmatmul.mubr.f32.gmra.mrb[0].mxu0 %v1105
        %v1314 = vpop.f32.mrb[0].mxu0
        %v1315 = vadd.f32 0.0, %v1314
        %v1316 = vpop.f32.mrb[0].mxu0
        %v1317 = vadd.f32 0.0, %v1316
        %1318 = vmatprep.mubr.f32.mxu0 0.0
        %1319 = vmatmul.mubr.f32.gmra.mrb[0].mxu0 %v1108
        %v1320 = vpop.f32.mrb[0].mxu0
        %v1321 = vadd.f32 0.0, %v1320
        %v1322 = vpop.f32.mrb[0].mxu0
        %v1323 = vadd.f32 0.0, %v1322
        %1324 = vdwg.mxu0
        %v1325 = vadd.f32 %v863, %v1183
        %v1326 = vadd.f32 %v865, %v1185
        %v1327 = vadd.f32 %v869, %v1189
        %v1328 = vadd.f32 %v871, %v1191
        %v1329 = vadd.f32 %v875, %v1195
        %v1330 = vadd.f32 %v877, %v1197
        %v1331 = vadd.f32 %v881, %v1201
        %v1332 = vadd.f32 %v883, %v1203
        %v1333 = vadd.f32 %v887, %v1207
        %v1334 = vadd.f32 %v889, %v1209
        %v1335 = vadd.f32 %v893, %v1213
        %v1336 = vadd.f32 %v895, %v1215
        %v1337 = vadd.f32 %v899, %v1219
        %v1338 = vadd.f32 %v901, %v1221
        %v1339 = vadd.f32 %v905, %v1225
        %v1340 = vadd.f32 %v907, %v1227
        %v1341 = vadd.f32 %v911, %v1231
        %v1342 = vadd.f32 %v913, %v1233
        %v1343 = vadd.f32 %v917, %v1237
        %v1344 = vadd.f32 %v919, %v1239
        %v1345 = vadd.f32 %v923, %v1243
        %v1346 = vadd.f32 %v925, %v1245
        %v1347 = vadd.f32 %v929, %v1249
        %v1348 = vadd.f32 %v931, %v1251
        %v1349 = vadd.f32 %v935, %v1255
        %v1350 = vadd.f32 %v937, %v1257
        %v1351 = vadd.f32 %v941, %v1261
        %v1352 = vadd.f32 %v943, %v1263
        %v1353 = vadd.f32 %v947, %v1267
        %v1354 = vadd.f32 %v949, %v1269
        %v1355 = vadd.f32 %v953, %v1273
        %v1356 = vadd.f32 %v955, %v1275
        %v1357 = vadd.f32 %v959, %v1279
        %v1358 = vadd.f32 %v961, %v1281
        %v1359 = vadd.f32 %v965, %v1285
        %v1360 = vadd.f32 %v967, %v1287
        %v1361 = vadd.f32 %v971, %v1291
        %v1362 = vadd.f32 %v973, %v1293
        %v1363 = vadd.f32 %v977, %v1297
        %v1364 = vadd.f32 %v979, %v1299
        %v1365 = vadd.f32 %v983, %v1303
        %v1366 = vadd.f32 %v985, %v1305
        %v1367 = vadd.f32 %v989, %v1309
        %v1368 = vadd.f32 %v991, %v1311
        %v1369 = vadd.f32 %v995, %v1315
        %v1370 = vadd.f32 %v997, %v1317
        %v1371 = vadd.f32 %v1001, %v1321
        %v1372 = vadd.f32 %v1003, %v1323
        %v1373 = vld [vmem:[%s454 + $0x18] sm:$0xff]
        %v1374 = vld [vmem:[%s454 + $0x20] sm:$0xff]
        %v1375 = vld [vmem:[%s454 + $0x28] sm:$0xff]
        %v1376 = vld [vmem:[%s454 + $0x30] sm:$0xff]
        %v1377 = vld [vmem:[%s454 + $0x38] sm:$0xff]
        %v1378 = vld [vmem:[%s454 + $0x40] sm:$0xff]
        %v1379 = vld [vmem:[%s454 + $0x48] sm:$0xff]
        %v1380 = vld [vmem:[%s454 + $0x50] sm:$0xff]
        %v1381 = vld [vmem:[%s454 + $0x58] sm:$0xff]
        %v1382 = vld [vmem:[%s454 + $0x60] sm:$0xff]
        %v1383 = vld [vmem:[%s454 + $0x68] sm:$0xff]
        %v1384 = vld [vmem:[%s454 + $0x70] sm:$0xff]
        %v1385 = vld [vmem:[%s454 + $0x78] sm:$0xff]
        %v1386 = vld [vmem:[%s454 + $0x80] sm:$0xff]
        %v1387 = vld [vmem:[%s454 + $0x88] sm:$0xff]
        %v1388 = vld [vmem:[%s454 + $0x90] sm:$0xff]
        %v1389 = vld [vmem:[%s454 + $0x98] sm:$0xff]
        %v1390 = vld [vmem:[%s454 + $0xa0] sm:$0xff]
        %v1391 = vld [vmem:[%s454 + $0xa8] sm:$0xff]
        %v1392 = vld [vmem:[%s454 + $0xb0] sm:$0xff]
        %v1393 = vld [vmem:[%s454 + $0xb8] sm:$0xff]
        %v1394 = vld [vmem:[%s454 + $0xc0] sm:$0xff]
        %v1395 = vld [vmem:[%s454 + $0xc8] sm:$0xff]
        %v1396 = vld [vmem:[%s454 + $0xd0] sm:$0xff]
        %s1397 = scalar_lea.vmem %s1, 192
        %v1398 = vld [vmem:[%s1397] sm:$0xff]
        %v1399 = vld [vmem:[%s1397 + $0x8] sm:$0xff]
        %v1400 = vld [vmem:[%s1397 + $0x10] sm:$0xff]
        %v1401 = vld [vmem:[%s1397 + $0x18] sm:$0xff]
        %v1402 = vld [vmem:[%s1397 + $0x20] sm:$0xff]
        %v1403 = vld [vmem:[%s1397 + $0x28] sm:$0xff]
        %v1404 = vld [vmem:[%s1397 + $0x30] sm:$0xf]
        %v1405 = vld [vmem:[%s1397 + $0x38] sm:$0xf]
        %v1407 = vsel %vm498, %v1373, 0
        %v1410 = vsel %vm498, %v1374, 0
        %v1413 = vsel %vm498, %v1375, 0
        %v1416 = vsel %vm498, %v1376, 0
        %v1419 = vsel %vm498, %v1377, 0
        %v1422 = vsel %vm498, %v1378, 0
        %v1425 = vsel %vm498, %v1379, 0
        %v1428 = vsel %vm498, %v1380, 0
        %v1431 = vsel %vm498, %v1381, 0
        %v1434 = vsel %vm498, %v1382, 0
        %v1437 = vsel %vm498, %v1383, 0
        %v1440 = vsel %vm498, %v1384, 0
        %v1443 = vsel %vm498, %v1385, 0
        %v1446 = vsel %vm498, %v1386, 0
        %v1449 = vsel %vm498, %v1387, 0
        %v1452 = vsel %vm498, %v1388, 0
        %v1455 = vsel %vm498, %v1389, 0
        %v1458 = vsel %vm498, %v1390, 0
        %v1461 = vsel %vm498, %v1391, 0
        %v1464 = vsel %vm498, %v1392, 0
        %v1467 = vsel %vm498, %v1393, 0
        %v1470 = vsel %vm498, %v1394, 0
        %v1473 = vsel %vm498, %v1395, 0
        %v1476 = vsel %vm498, %v1396, 0
        %v1479 = vsel %vm571, %v1404, 0
        %v1482 = vsel %vm571, %v1405, 0
        %1484 = vmatprep.subr.mxu0 %v1399
        %1485 = vmatpush1.msra.mxu0 %v1398
        %1486 = vmatprep.subr.mxu0 %v1401
        %1487 = vmatpush1.msra.mxu0 %v1400
        %1488 = vmatprep.subr.mxu0 %v1403
        %1489 = vmatpush1.msra.mxu0 %v1402
        %1490 = vmatprep.subr.mxu0 %v1482
        %1491 = vmatpush1.msra.mxu0 %v1479
        %1492 = vmatprep.subr.mxu0 0.0
        %1493 = vmatpush1.msra.mxu0 0.0
        %1494 = vmatprep.subr.mxu0 0.0
        %1495 = vmatpush1.msra.mxu0 0.0
        %1496 = vmatprep.subr.mxu0 0.0
        %1497 = vmatpush1.msra.mxu0 0.0
        %1498 = vmatprep.subr.mxu0 0.0
        %1499 = vmatpush1.msra.mxu0 0.0
        %1500 = vmatprep.subr.mxu0 0.0
        %1501 = vmatpush1.msra.mxu0 0.0
        %1502 = vmatprep.subr.mxu0 0.0
        %1503 = vmatpush1.msra.mxu0 0.0
        %1504 = vmatprep.subr.mxu0 0.0
        %1505 = vmatpush1.msra.mxu0 0.0
        %1506 = vmatprep.subr.mxu0 0.0
        %1507 = vmatpush1.msra.mxu0 0.0
        %1508 = vmatprep.subr.mxu0 0.0
        %1509 = vmatpush1.msra.mxu0 0.0
        %1510 = vmatprep.subr.mxu0 0.0
        %1511 = vmatpush1.msra.mxu0 0.0
        %1512 = vmatprep.subr.mxu0 0.0
        %1513 = vmatpush1.msra.mxu0 0.0
        %1514 = vmatprep.subr.mxu0 0.0
        %1515 = vmatpush1.msra.mxu0 0.0
        %1516 = vmatprep.subr.mxu0 0.0
        %1517 = vmatpush1.msra.mxu0 0.0
        %1518 = vmatprep.subr.mxu0 0.0
        %1519 = vmatpush1.msra.mxu0 0.0
        %1520 = vmatprep.subr.mxu0 0.0
        %1521 = vmatpush1.msra.mxu0 0.0
        %1522 = vmatprep.subr.mxu0 0.0
        %1523 = vmatpush1.msra.mxu0 0.0
        %1524 = vmatprep.subr.mxu0 0.0
        %1525 = vmatpush1.msra.mxu0 0.0
        %1526 = vmatprep.subr.mxu0 0.0
        %1527 = vmatpush1.msra.mxu0 0.0
        %1528 = vmatprep.subr.mxu0 0.0
        %1529 = vmatpush1.msra.mxu0 0.0
        %1530 = vmatprep.subr.mxu0 0.0
        %1531 = vmatpush1.msra.mxu0 0.0
        %1532 = vmatprep.subr.mxu0 0.0
        %1533 = vmatpush1.msra.mxu0 0.0
        %1534 = vmatprep.subr.mxu0 0.0
        %1535 = vmatpush1.msra.mxu0 0.0
        %1536 = vmatprep.subr.mxu0 0.0
        %1537 = vmatpush1.msra.mxu0 0.0
        %1538 = vmatprep.subr.mxu0 0.0
        %1539 = vmatpush1.msra.mxu0 0.0
        %1540 = vmatprep.subr.mxu0 0.0
        %1541 = vmatpush1.msra.mxu0 0.0
        %1542 = vmatprep.subr.mxu0 0.0
        %1543 = vmatpush1.msra.mxu0 0.0
        %1544 = vmatprep.subr.mxu0 0.0
        %1545 = vmatpush1.msra.mxu0 0.0
        %1546 = vmatprep.subr.mxu0 0.0
        %1547 = vmatpush1.msra.mxu0 0.0
        %1548 = vmatprep.mubr.f32.mxu0 0.0
        %1549 = vmatmul.mubr.f32.gmra.mrb[0].mxu0 %v1407
        %v1550 = vpop.f32.mrb[0].mxu0
        %v1551 = vadd.f32 0.0, %v1550
        %v1552 = vpop.f32.mrb[0].mxu0
        %v1553 = vadd.f32 0.0, %v1552
        %1554 = vmatprep.mubr.f32.mxu0 0.0
        %1555 = vmatmul.mubr.f32.gmra.mrb[0].mxu0 %v1410
        %v1556 = vpop.f32.mrb[0].mxu0
        %v1557 = vadd.f32 0.0, %v1556
        %v1558 = vpop.f32.mrb[0].mxu0
        %v1559 = vadd.f32 0.0, %v1558
        %1560 = vmatprep.mubr.f32.mxu0 0.0
        %1561 = vmatmul.mubr.f32.gmra.mrb[0].mxu0 %v1413
        %v1562 = vpop.f32.mrb[0].mxu0
        %v1563 = vadd.f32 0.0, %v1562
        %v1564 = vpop.f32.mrb[0].mxu0
        %v1565 = vadd.f32 0.0, %v1564
        %1566 = vmatprep.mubr.f32.mxu0 0.0
        %1567 = vmatmul.mubr.f32.gmra.mrb[0].mxu0 %v1416
        %v1568 = vpop.f32.mrb[0].mxu0
        %v1569 = vadd.f32 0.0, %v1568
        %v1570 = vpop.f32.mrb[0].mxu0
        %v1571 = vadd.f32 0.0, %v1570
        %1572 = vmatprep.mubr.f32.mxu0 0.0
        %1573 = vmatmul.mubr.f32.gmra.mrb[0].mxu0 %v1419
        %v1574 = vpop.f32.mrb[0].mxu0
        %v1575 = vadd.f32 0.0, %v1574
        %v1576 = vpop.f32.mrb[0].mxu0
        %v1577 = vadd.f32 0.0, %v1576
        %1578 = vmatprep.mubr.f32.mxu0 0.0
        %1579 = vmatmul.mubr.f32.gmra.mrb[0].mxu0 %v1422
        %v1580 = vpop.f32.mrb[0].mxu0
        %v1581 = vadd.f32 0.0, %v1580
        %v1582 = vpop.f32.mrb[0].mxu0
        %v1583 = vadd.f32 0.0, %v1582
        %1584 = vmatprep.mubr.f32.mxu0 0.0
        %1585 = vmatmul.mubr.f32.gmra.mrb[0].mxu0 %v1425
        %v1586 = vpop.f32.mrb[0].mxu0
        %v1587 = vadd.f32 0.0, %v1586
        %v1588 = vpop.f32.mrb[0].mxu0
        %v1589 = vadd.f32 0.0, %v1588
        %1590 = vmatprep.mubr.f32.mxu0 0.0
        %1591 = vmatmul.mubr.f32.gmra.mrb[0].mxu0 %v1428
        %v1592 = vpop.f32.mrb[0].mxu0
        %v1593 = vadd.f32 0.0, %v1592
        %v1594 = vpop.f32.mrb[0].mxu0
        %v1595 = vadd.f32 0.0, %v1594
        %1596 = vmatprep.mubr.f32.mxu0 0.0
        %1597 = vmatmul.mubr.f32.gmra.mrb[0].mxu0 %v1431
        %v1598 = vpop.f32.mrb[0].mxu0
        %v1599 = vadd.f32 0.0, %v1598
        %v1600 = vpop.f32.mrb[0].mxu0
        %v1601 = vadd.f32 0.0, %v1600
        %1602 = vmatprep.mubr.f32.mxu0 0.0
        %1603 = vmatmul.mubr.f32.gmra.mrb[0].mxu0 %v1434
        %v1604 = vpop.f32.mrb[0].mxu0
        %v1605 = vadd.f32 0.0, %v1604
        %v1606 = vpop.f32.mrb[0].mxu0
        %v1607 = vadd.f32 0.0, %v1606
        %1608 = vmatprep.mubr.f32.mxu0 0.0
        %1609 = vmatmul.mubr.f32.gmra.mrb[0].mxu0 %v1437
        %v1610 = vpop.f32.mrb[0].mxu0
        %v1611 = vadd.f32 0.0, %v1610
        %v1612 = vpop.f32.mrb[0].mxu0
        %v1613 = vadd.f32 0.0, %v1612
        %1614 = vmatprep.mubr.f32.mxu0 0.0
        %1615 = vmatmul.mubr.f32.gmra.mrb[0].mxu0 %v1440
        %v1616 = vpop.f32.mrb[0].mxu0
        %v1617 = vadd.f32 0.0, %v1616
        %v1618 = vpop.f32.mrb[0].mxu0
        %v1619 = vadd.f32 0.0, %v1618
        %1620 = vmatprep.mubr.f32.mxu0 0.0
        %1621 = vmatmul.mubr.f32.gmra.mrb[0].mxu0 %v1443
        %v1622 = vpop.f32.mrb[0].mxu0
        %v1623 = vadd.f32 0.0, %v1622
        %v1624 = vpop.f32.mrb[0].mxu0
        %v1625 = vadd.f32 0.0, %v1624
        %1626 = vmatprep.mubr.f32.mxu0 0.0
        %1627 = vmatmul.mubr.f32.gmra.mrb[0].mxu0 %v1446
        %v1628 = vpop.f32.mrb[0].mxu0
        %v1629 = vadd.f32 0.0, %v1628
        %v1630 = vpop.f32.mrb[0].mxu0
        %v1631 = vadd.f32 0.0, %v1630
        %1632 = vmatprep.mubr.f32.mxu0 0.0
        %1633 = vmatmul.mubr.f32.gmra.mrb[0].mxu0 %v1449
        %v1634 = vpop.f32.mrb[0].mxu0
        %v1635 = vadd.f32 0.0, %v1634
        %v1636 = vpop.f32.mrb[0].mxu0
        %v1637 = vadd.f32 0.0, %v1636
        %1638 = vmatprep.mubr.f32.mxu0 0.0
        %1639 = vmatmul.mubr.f32.gmra.mrb[0].mxu0 %v1452
        %v1640 = vpop.f32.mrb[0].mxu0
        %v1641 = vadd.f32 0.0, %v1640
        %v1642 = vpop.f32.mrb[0].mxu0
        %v1643 = vadd.f32 0.0, %v1642
        %1644 = vmatprep.mubr.f32.mxu0 0.0
        %1645 = vmatmul.mubr.f32.gmra.mrb[0].mxu0 %v1455
        %v1646 = vpop.f32.mrb[0].mxu0
        %v1647 = vadd.f32 0.0, %v1646
        %v1648 = vpop.f32.mrb[0].mxu0
        %v1649 = vadd.f32 0.0, %v1648
        %1650 = vmatprep.mubr.f32.mxu0 0.0
        %1651 = vmatmul.mubr.f32.gmra.mrb[0].mxu0 %v1458
        %v1652 = vpop.f32.mrb[0].mxu0
        %v1653 = vadd.f32 0.0, %v1652
        %v1654 = vpop.f32.mrb[0].mxu0
        %v1655 = vadd.f32 0.0, %v1654
        %1656 = vmatprep.mubr.f32.mxu0 0.0
        %1657 = vmatmul.mubr.f32.gmra.mrb[0].mxu0 %v1461
        %v1658 = vpop.f32.mrb[0].mxu0
        %v1659 = vadd.f32 0.0, %v1658
        %v1660 = vpop.f32.mrb[0].mxu0
        %v1661 = vadd.f32 0.0, %v1660
        %1662 = vmatprep.mubr.f32.mxu0 0.0
        %1663 = vmatmul.mubr.f32.gmra.mrb[0].mxu0 %v1464
        %v1664 = vpop.f32.mrb[0].mxu0
        %v1665 = vadd.f32 0.0, %v1664
        %v1666 = vpop.f32.mrb[0].mxu0
        %v1667 = vadd.f32 0.0, %v1666
        %1668 = vmatprep.mubr.f32.mxu0 0.0
        %1669 = vmatmul.mubr.f32.gmra.mrb[0].mxu0 %v1467
        %v1670 = vpop.f32.mrb[0].mxu0
        %v1671 = vadd.f32 0.0, %v1670
        %v1672 = vpop.f32.mrb[0].mxu0
        %v1673 = vadd.f32 0.0, %v1672
        %1674 = vmatprep.mubr.f32.mxu0 0.0
        %1675 = vmatmul.mubr.f32.gmra.mrb[0].mxu0 %v1470
        %v1676 = vpop.f32.mrb[0].mxu0
        %v1677 = vadd.f32 0.0, %v1676
        %v1678 = vpop.f32.mrb[0].mxu0
        %v1679 = vadd.f32 0.0, %v1678
        %1680 = vmatprep.mubr.f32.mxu0 0.0
        %1681 = vmatmul.mubr.f32.gmra.mrb[0].mxu0 %v1473
        %v1682 = vpop.f32.mrb[0].mxu0
        %v1683 = vadd.f32 0.0, %v1682
        %v1684 = vpop.f32.mrb[0].mxu0
        %v1685 = vadd.f32 0.0, %v1684
        %1686 = vmatprep.mubr.f32.mxu0 0.0
        %1687 = vmatmul.mubr.f32.gmra.mrb[0].mxu0 %v1476
        %v1688 = vpop.f32.mrb[0].mxu0
        %v1689 = vadd.f32 0.0, %v1688
        %v1690 = vpop.f32.mrb[0].mxu0
        %v1691 = vadd.f32 0.0, %v1690
        %1692 = vdwg.mxu0
        %v1693 = vadd.f32 %v1325, %v1551
        %v1694 = vadd.f32 %v1326, %v1553
        %v1695 = vadd.f32 %v1327, %v1557
        %v1696 = vadd.f32 %v1328, %v1559
        %v1697 = vadd.f32 %v1329, %v1563
        %v1698 = vadd.f32 %v1330, %v1565
        %v1699 = vadd.f32 %v1331, %v1569
        %v1700 = vadd.f32 %v1332, %v1571
        %v1701 = vadd.f32 %v1333, %v1575
        %v1702 = vadd.f32 %v1334, %v1577
        %v1703 = vadd.f32 %v1335, %v1581
        %v1704 = vadd.f32 %v1336, %v1583
        %v1705 = vadd.f32 %v1337, %v1587
        %v1706 = vadd.f32 %v1338, %v1589
        %v1707 = vadd.f32 %v1339, %v1593
        %v1708 = vadd.f32 %v1340, %v1595
        %v1709 = vadd.f32 %v1341, %v1599
        %v1710 = vadd.f32 %v1342, %v1601
        %v1711 = vadd.f32 %v1343, %v1605
        %v1712 = vadd.f32 %v1344, %v1607
        %v1713 = vadd.f32 %v1345, %v1611
        %v1714 = vadd.f32 %v1346, %v1613
        %v1715 = vadd.f32 %v1347, %v1617
        %v1716 = vadd.f32 %v1348, %v1619
        %v1717 = vadd.f32 %v1349, %v1623
        %v1718 = vadd.f32 %v1350, %v1625
        %v1719 = vadd.f32 %v1351, %v1629
        %v1720 = vadd.f32 %v1352, %v1631
        %v1721 = vadd.f32 %v1353, %v1635
        %v1722 = vadd.f32 %v1354, %v1637
        %v1723 = vadd.f32 %v1355, %v1641
        %v1724 = vadd.f32 %v1356, %v1643
        %v1725 = vadd.f32 %v1357, %v1647
        %v1726 = vadd.f32 %v1358, %v1649
        %v1727 = vadd.f32 %v1359, %v1653
        %v1728 = vadd.f32 %v1360, %v1655
        %v1729 = vadd.f32 %v1361, %v1659
        %v1730 = vadd.f32 %v1362, %v1661
        %v1731 = vadd.f32 %v1363, %v1665
        %v1732 = vadd.f32 %v1364, %v1667
        %v1733 = vadd.f32 %v1365, %v1671
        %v1734 = vadd.f32 %v1366, %v1673
        %v1735 = vadd.f32 %v1367, %v1677
        %v1736 = vadd.f32 %v1368, %v1679
        %v1737 = vadd.f32 %v1369, %v1683
        %v1738 = vadd.f32 %v1370, %v1685
        %v1739 = vadd.f32 %v1371, %v1689
        %v1740 = vadd.f32 %v1372, %v1691
        %v1741 = vld [vmem:[%s454 + $0x20] sm:$0xff]
        %v1742 = vld [vmem:[%s454 + $0x28] sm:$0xff]
        %v1743 = vld [vmem:[%s454 + $0x30] sm:$0xff]
        %v1744 = vld [vmem:[%s454 + $0x38] sm:$0xff]
        %v1745 = vld [vmem:[%s454 + $0x40] sm:$0xff]
        %v1746 = vld [vmem:[%s454 + $0x48] sm:$0xff]
        %v1747 = vld [vmem:[%s454 + $0x50] sm:$0xff]
        %v1748 = vld [vmem:[%s454 + $0x58] sm:$0xff]
        %v1749 = vld [vmem:[%s454 + $0x60] sm:$0xff]
        %v1750 = vld [vmem:[%s454 + $0x68] sm:$0xff]
        %v1751 = vld [vmem:[%s454 + $0x70] sm:$0xff]
        %v1752 = vld [vmem:[%s454 + $0x78] sm:$0xff]
        %v1753 = vld [vmem:[%s454 + $0x80] sm:$0xff]
        %v1754 = vld [vmem:[%s454 + $0x88] sm:$0xff]
        %v1755 = vld [vmem:[%s454 + $0x90] sm:$0xff]
        %v1756 = vld [vmem:[%s454 + $0x98] sm:$0xff]
        %v1757 = vld [vmem:[%s454 + $0xa0] sm:$0xff]
        %v1758 = vld [vmem:[%s454 + $0xa8] sm:$0xff]
        %v1759 = vld [vmem:[%s454 + $0xb0] sm:$0xff]
        %v1760 = vld [vmem:[%s454 + $0xb8] sm:$0xff]
        %v1761 = vld [vmem:[%s454 + $0xc0] sm:$0xff]
        %v1762 = vld [vmem:[%s454 + $0xc8] sm:$0xff]
        %v1763 = vld [vmem:[%s454 + $0xd0] sm:$0xff]
        %v1764 = vld [vmem:[%s454 + $0xd8] sm:$0xff]
        %s1765 = scalar_lea.vmem %s1, 256
        %v1766 = vld [vmem:[%s1765] sm:$0xff]
        %v1767 = vld [vmem:[%s1765 + $0x8] sm:$0xff]
        %v1768 = vld [vmem:[%s1765 + $0x10] sm:$0xff]
        %v1769 = vld [vmem:[%s1765 + $0x18] sm:$0xff]
        %v1770 = vld [vmem:[%s1765 + $0x20] sm:$0xff]
        %v1771 = vld [vmem:[%s1765 + $0x28] sm:$0xff]
        %v1772 = vld [vmem:[%s1765 + $0x30] sm:$0xf]
        %v1773 = vld [vmem:[%s1765 + $0x38] sm:$0xf]
        %v1775 = vsel %vm498, %v1741, 0
        %v1778 = vsel %vm498, %v1742, 0
        %v1781 = vsel %vm498, %v1743, 0
        %v1784 = vsel %vm498, %v1744, 0
        %v1787 = vsel %vm498, %v1745, 0
        %v1790 = vsel %vm498, %v1746, 0
        %v1793 = vsel %vm498, %v1747, 0
        %v1796 = vsel %vm498, %v1748, 0
        %v1799 = vsel %vm498, %v1749, 0
        %v1802 = vsel %vm498, %v1750, 0
        %v1805 = vsel %vm498, %v1751, 0
        %v1808 = vsel %vm498, %v1752, 0
        %v1811 = vsel %vm498, %v1753, 0
        %v1814 = vsel %vm498, %v1754, 0
        %v1817 = vsel %vm498, %v1755, 0
        %v1820 = vsel %vm498, %v1756, 0
        %v1823 = vsel %vm498, %v1757, 0
        %v1826 = vsel %vm498, %v1758, 0
        %v1829 = vsel %vm498, %v1759, 0
        %v1832 = vsel %vm498, %v1760, 0
        %v1835 = vsel %vm498, %v1761, 0
        %v1838 = vsel %vm498, %v1762, 0
        %v1841 = vsel %vm498, %v1763, 0
        %v1844 = vsel %vm498, %v1764, 0
        %v1847 = vsel %vm571, %v1772, 0
        %v1850 = vsel %vm571, %v1773, 0
        %1852 = vmatprep.subr.mxu0 %v1767
        %1853 = vmatpush1.msra.mxu0 %v1766
        %1854 = vmatprep.subr.mxu0 %v1769
        %1855 = vmatpush1.msra.mxu0 %v1768
        %1856 = vmatprep.subr.mxu0 %v1771
        %1857 = vmatpush1.msra.mxu0 %v1770
        %1858 = vmatprep.subr.mxu0 %v1850
        %1859 = vmatpush1.msra.mxu0 %v1847
        %1860 = vmatprep.subr.mxu0 0.0
        %1861 = vmatpush1.msra.mxu0 0.0
        %1862 = vmatprep.subr.mxu0 0.0
        %1863 = vmatpush1.msra.mxu0 0.0
        %1864 = vmatprep.subr.mxu0 0.0
        %1865 = vmatpush1.msra.mxu0 0.0
        %1866 = vmatprep.subr.mxu0 0.0
        %1867 = vmatpush1.msra.mxu0 0.0
        %1868 = vmatprep.subr.mxu0 0.0
        %1869 = vmatpush1.msra.mxu0 0.0
        %1870 = vmatprep.subr.mxu0 0.0
        %1871 = vmatpush1.msra.mxu0 0.0
        %1872 = vmatprep.subr.mxu0 0.0
        %1873 = vmatpush1.msra.mxu0 0.0
        %1874 = vmatprep.subr.mxu0 0.0
        %1875 = vmatpush1.msra.mxu0 0.0
        %1876 = vmatprep.subr.mxu0 0.0
        %1877 = vmatpush1.msra.mxu0 0.0
        %1878 = vmatprep.subr.mxu0 0.0
        %1879 = vmatpush1.msra.mxu0 0.0
        %1880 = vmatprep.subr.mxu0 0.0
        %1881 = vmatpush1.msra.mxu0 0.0
        %1882 = vmatprep.subr.mxu0 0.0
        %1883 = vmatpush1.msra.mxu0 0.0
        %1884 = vmatprep.subr.mxu0 0.0
        %1885 = vmatpush1.msra.mxu0 0.0
        %1886 = vmatprep.subr.mxu0 0.0
        %1887 = vmatpush1.msra.mxu0 0.0
        %1888 = vmatprep.subr.mxu0 0.0
        %1889 = vmatpush1.msra.mxu0 0.0
        %1890 = vmatprep.subr.mxu0 0.0
        %1891 = vmatpush1.msra.mxu0 0.0
        %1892 = vmatprep.subr.mxu0 0.0
        %1893 = vmatpush1.msra.mxu0 0.0
        %1894 = vmatprep.subr.mxu0 0.0
        %1895 = vmatpush1.msra.mxu0 0.0
        %1896 = vmatprep.subr.mxu0 0.0
        %1897 = vmatpush1.msra.mxu0 0.0
        %1898 = vmatprep.subr.mxu0 0.0
        %1899 = vmatpush1.msra.mxu0 0.0
        %1900 = vmatprep.subr.mxu0 0.0
        %1901 = vmatpush1.msra.mxu0 0.0
        %1902 = vmatprep.subr.mxu0 0.0
        %1903 = vmatpush1.msra.mxu0 0.0
        %1904 = vmatprep.subr.mxu0 0.0
        %1905 = vmatpush1.msra.mxu0 0.0
        %1906 = vmatprep.subr.mxu0 0.0
        %1907 = vmatpush1.msra.mxu0 0.0
        %1908 = vmatprep.subr.mxu0 0.0
        %1909 = vmatpush1.msra.mxu0 0.0
        %1910 = vmatprep.subr.mxu0 0.0
        %1911 = vmatpush1.msra.mxu0 0.0
        %1912 = vmatprep.subr.mxu0 0.0
        %1913 = vmatpush1.msra.mxu0 0.0
        %1914 = vmatprep.subr.mxu0 0.0
        %1915 = vmatpush1.msra.mxu0 0.0
        %1916 = vmatprep.mubr.f32.mxu0 0.0
        %1917 = vmatmul.mubr.f32.gmra.mrb[0].mxu0 %v1775
        %v1918 = vpop.f32.mrb[0].mxu0
        %v1919 = vadd.f32 0.0, %v1918
        %v1920 = vpop.f32.mrb[0].mxu0
        %v1921 = vadd.f32 0.0, %v1920
        %1922 = vmatprep.mubr.f32.mxu0 0.0
        %1923 = vmatmul.mubr.f32.gmra.mrb[0].mxu0 %v1778
        %v1924 = vpop.f32.mrb[0].mxu0
        %v1925 = vadd.f32 0.0, %v1924
        %v1926 = vpop.f32.mrb[0].mxu0
        %v1927 = vadd.f32 0.0, %v1926
        %1928 = vmatprep.mubr.f32.mxu0 0.0
        %1929 = vmatmul.mubr.f32.gmra.mrb[0].mxu0 %v1781
        %v1930 = vpop.f32.mrb[0].mxu0
        %v1931 = vadd.f32 0.0, %v1930
        %v1932 = vpop.f32.mrb[0].mxu0
        %v1933 = vadd.f32 0.0, %v1932
        %1934 = vmatprep.mubr.f32.mxu0 0.0
        %1935 = vmatmul.mubr.f32.gmra.mrb[0].mxu0 %v1784
        %v1936 = vpop.f32.mrb[0].mxu0
        %v1937 = vadd.f32 0.0, %v1936
        %v1938 = vpop.f32.mrb[0].mxu0
        %v1939 = vadd.f32 0.0, %v1938
        %1940 = vmatprep.mubr.f32.mxu0 0.0
        %1941 = vmatmul.mubr.f32.gmra.mrb[0].mxu0 %v1787
        %v1942 = vpop.f32.mrb[0].mxu0
        %v1943 = vadd.f32 0.0, %v1942
        %v1944 = vpop.f32.mrb[0].mxu0
        %v1945 = vadd.f32 0.0, %v1944
        %1946 = vmatprep.mubr.f32.mxu0 0.0
        %1947 = vmatmul.mubr.f32.gmra.mrb[0].mxu0 %v1790
        %v1948 = vpop.f32.mrb[0].mxu0
        %v1949 = vadd.f32 0.0, %v1948
        %v1950 = vpop.f32.mrb[0].mxu0
        %v1951 = vadd.f32 0.0, %v1950
        %1952 = vmatprep.mubr.f32.mxu0 0.0
        %1953 = vmatmul.mubr.f32.gmra.mrb[0].mxu0 %v1793
        %v1954 = vpop.f32.mrb[0].mxu0
        %v1955 = vadd.f32 0.0, %v1954
        %v1956 = vpop.f32.mrb[0].mxu0
        %v1957 = vadd.f32 0.0, %v1956
        %1958 = vmatprep.mubr.f32.mxu0 0.0
        %1959 = vmatmul.mubr.f32.gmra.mrb[0].mxu0 %v1796
        %v1960 = vpop.f32.mrb[0].mxu0
        %v1961 = vadd.f32 0.0, %v1960
        %v1962 = vpop.f32.mrb[0].mxu0
        %v1963 = vadd.f32 0.0, %v1962
        %1964 = vmatprep.mubr.f32.mxu0 0.0
        %1965 = vmatmul.mubr.f32.gmra.mrb[0].mxu0 %v1799
        %v1966 = vpop.f32.mrb[0].mxu0
        %v1967 = vadd.f32 0.0, %v1966
        %v1968 = vpop.f32.mrb[0].mxu0
        %v1969 = vadd.f32 0.0, %v1968
        %1970 = vmatprep.mubr.f32.mxu0 0.0
        %1971 = vmatmul.mubr.f32.gmra.mrb[0].mxu0 %v1802
        %v1972 = vpop.f32.mrb[0].mxu0
        %v1973 = vadd.f32 0.0, %v1972
        %v1974 = vpop.f32.mrb[0].mxu0
        %v1975 = vadd.f32 0.0, %v1974
        %1976 = vmatprep.mubr.f32.mxu0 0.0
        %1977 = vmatmul.mubr.f32.gmra.mrb[0].mxu0 %v1805
        %v1978 = vpop.f32.mrb[0].mxu0
        %v1979 = vadd.f32 0.0, %v1978
        %v1980 = vpop.f32.mrb[0].mxu0
        %v1981 = vadd.f32 0.0, %v1980
        %1982 = vmatprep.mubr.f32.mxu0 0.0
        %1983 = vmatmul.mubr.f32.gmra.mrb[0].mxu0 %v1808
        %v1984 = vpop.f32.mrb[0].mxu0
        %v1985 = vadd.f32 0.0, %v1984
        %v1986 = vpop.f32.mrb[0].mxu0
        %v1987 = vadd.f32 0.0, %v1986
        %1988 = vmatprep.mubr.f32.mxu0 0.0
        %1989 = vmatmul.mubr.f32.gmra.mrb[0].mxu0 %v1811
        %v1990 = vpop.f32.mrb[0].mxu0
        %v1991 = vadd.f32 0.0, %v1990
        %v1992 = vpop.f32.mrb[0].mxu0
        %v1993 = vadd.f32 0.0, %v1992
        %1994 = vmatprep.mubr.f32.mxu0 0.0
        %1995 = vmatmul.mubr.f32.gmra.mrb[0].mxu0 %v1814
        %v1996 = vpop.f32.mrb[0].mxu0
        %v1997 = vadd.f32 0.0, %v1996
        %v1998 = vpop.f32.mrb[0].mxu0
        %v1999 = vadd.f32 0.0, %v1998
        %2000 = vmatprep.mubr.f32.mxu0 0.0
        %2001 = vmatmul.mubr.f32.gmra.mrb[0].mxu0 %v1817
        %v2002 = vpop.f32.mrb[0].mxu0
        %v2003 = vadd.f32 0.0, %v2002
        %v2004 = vpop.f32.mrb[0].mxu0
        %v2005 = vadd.f32 0.0, %v2004
        %2006 = vmatprep.mubr.f32.mxu0 0.0
        %2007 = vmatmul.mubr.f32.gmra.mrb[0].mxu0 %v1820
        %v2008 = vpop.f32.mrb[0].mxu0
        %v2009 = vadd.f32 0.0, %v2008
        %v2010 = vpop.f32.mrb[0].mxu0
        %v2011 = vadd.f32 0.0, %v2010
        %2012 = vmatprep.mubr.f32.mxu0 0.0
        %2013 = vmatmul.mubr.f32.gmra.mrb[0].mxu0 %v1823
        %v2014 = vpop.f32.mrb[0].mxu0
        %v2015 = vadd.f32 0.0, %v2014
        %v2016 = vpop.f32.mrb[0].mxu0
        %v2017 = vadd.f32 0.0, %v2016
        %2018 = vmatprep.mubr.f32.mxu0 0.0
        %2019 = vmatmul.mubr.f32.gmra.mrb[0].mxu0 %v1826
        %v2020 = vpop.f32.mrb[0].mxu0
        %v2021 = vadd.f32 0.0, %v2020
        %v2022 = vpop.f32.mrb[0].mxu0
        %v2023 = vadd.f32 0.0, %v2022
        %2024 = vmatprep.mubr.f32.mxu0 0.0
        %2025 = vmatmul.mubr.f32.gmra.mrb[0].mxu0 %v1829
        %v2026 = vpop.f32.mrb[0].mxu0
        %v2027 = vadd.f32 0.0, %v2026
        %v2028 = vpop.f32.mrb[0].mxu0
        %v2029 = vadd.f32 0.0, %v2028
        %2030 = vmatprep.mubr.f32.mxu0 0.0
        %2031 = vmatmul.mubr.f32.gmra.mrb[0].mxu0 %v1832
        %v2032 = vpop.f32.mrb[0].mxu0
        %v2033 = vadd.f32 0.0, %v2032
        %v2034 = vpop.f32.mrb[0].mxu0
        %v2035 = vadd.f32 0.0, %v2034
        %2036 = vmatprep.mubr.f32.mxu0 0.0
        %2037 = vmatmul.mubr.f32.gmra.mrb[0].mxu0 %v1835
        %v2038 = vpop.f32.mrb[0].mxu0
        %v2039 = vadd.f32 0.0, %v2038
        %v2040 = vpop.f32.mrb[0].mxu0
        %v2041 = vadd.f32 0.0, %v2040
        %2042 = vmatprep.mubr.f32.mxu0 0.0
        %2043 = vmatmul.mubr.f32.gmra.mrb[0].mxu0 %v1838
        %v2044 = vpop.f32.mrb[0].mxu0
        %v2045 = vadd.f32 0.0, %v2044
        %v2046 = vpop.f32.mrb[0].mxu0
        %v2047 = vadd.f32 0.0, %v2046
        %2048 = vmatprep.mubr.f32.mxu0 0.0
        %2049 = vmatmul.mubr.f32.gmra.mrb[0].mxu0 %v1841
        %v2050 = vpop.f32.mrb[0].mxu0
        %v2051 = vadd.f32 0.0, %v2050
        %v2052 = vpop.f32.mrb[0].mxu0
        %v2053 = vadd.f32 0.0, %v2052
        %2054 = vmatprep.mubr.f32.mxu0 0.0
        %2055 = vmatmul.mubr.f32.gmra.mrb[0].mxu0 %v1844
        %v2056 = vpop.f32.mrb[0].mxu0
        %v2057 = vadd.f32 0.0, %v2056
        %v2058 = vpop.f32.mrb[0].mxu0
        %v2059 = vadd.f32 0.0, %v2058
        %2060 = vdwg.mxu0
        %v2061 = vadd.f32 %v1693, %v1919
        %v2062 = vadd.f32 %v1694, %v1921
        %v2063 = vadd.f32 %v1695, %v1925
        %v2064 = vadd.f32 %v1696, %v1927
        %v2065 = vadd.f32 %v1697, %v1931
        %v2066 = vadd.f32 %v1698, %v1933
        %v2067 = vadd.f32 %v1699, %v1937
        %v2068 = vadd.f32 %v1700, %v1939
        %v2069 = vadd.f32 %v1701, %v1943
        %v2070 = vadd.f32 %v1702, %v1945
        %v2071 = vadd.f32 %v1703, %v1949
        %v2072 = vadd.f32 %v1704, %v1951
        %v2073 = vadd.f32 %v1705, %v1955
        %v2074 = vadd.f32 %v1706, %v1957
        %v2075 = vadd.f32 %v1707, %v1961
        %v2076 = vadd.f32 %v1708, %v1963
        %v2077 = vadd.f32 %v1709, %v1967
        %v2078 = vadd.f32 %v1710, %v1969
        %v2079 = vadd.f32 %v1711, %v1973
        %v2080 = vadd.f32 %v1712, %v1975
        %v2081 = vadd.f32 %v1713, %v1979
        %v2082 = vadd.f32 %v1714, %v1981
        %v2083 = vadd.f32 %v1715, %v1985
        %v2084 = vadd.f32 %v1716, %v1987
        %v2085 = vadd.f32 %v1717, %v1991
        %v2086 = vadd.f32 %v1718, %v1993
        %v2087 = vadd.f32 %v1719, %v1997
        %v2088 = vadd.f32 %v1720, %v1999
        %v2089 = vadd.f32 %v1721, %v2003
        %v2090 = vadd.f32 %v1722, %v2005
        %v2091 = vadd.f32 %v1723, %v2009
        %v2092 = vadd.f32 %v1724, %v2011
        %v2093 = vadd.f32 %v1725, %v2015
        %v2094 = vadd.f32 %v1726, %v2017
        %v2095 = vadd.f32 %v1727, %v2021
        %v2096 = vadd.f32 %v1728, %v2023
        %v2097 = vadd.f32 %v1729, %v2027
        %v2098 = vadd.f32 %v1730, %v2029
        %v2099 = vadd.f32 %v1731, %v2033
        %v2100 = vadd.f32 %v1732, %v2035
        %v2101 = vadd.f32 %v1733, %v2039
        %v2102 = vadd.f32 %v1734, %v2041
        %v2103 = vadd.f32 %v1735, %v2045
        %v2104 = vadd.f32 %v1736, %v2047
        %v2105 = vadd.f32 %v1737, %v2051
        %v2106 = vadd.f32 %v1738, %v2053
        %v2107 = vadd.f32 %v1739, %v2057
        %v2108 = vadd.f32 %v1740, %v2059
        %v2109 = vld [vmem:[%s2] sm:$0x3]
        %v2111 = vlaneseq
        %v2112 = vshrl.u32 %v2111, 7
        %v2113 = vsub.s32 0, %v2112
        %v2114 = vrot.slane %v2109, %v2113
        %v2115 = vlaneseq
        %v2116 = vshrl.u32 %v2115, 7
        %v2117 = vsub.s32 1, %v2116
        %v2118 = vrot.slane %v2109, %v2117
        %v2121 = vadd.f32 %v2061, %v2114
        %v2122 = vadd.f32 %v2062, %v2118
        %v2123 = vadd.f32 %v2063, %v2114
        %v2124 = vadd.f32 %v2064, %v2118
        %v2125 = vadd.f32 %v2065, %v2114
        %v2126 = vadd.f32 %v2066, %v2118
        %v2127 = vadd.f32 %v2067, %v2114
        %v2128 = vadd.f32 %v2068, %v2118
        %v2129 = vadd.f32 %v2069, %v2114
        %v2130 = vadd.f32 %v2070, %v2118
        %v2131 = vadd.f32 %v2071, %v2114
        %v2132 = vadd.f32 %v2072, %v2118
        %v2133 = vadd.f32 %v2073, %v2114
        %v2134 = vadd.f32 %v2074, %v2118
        %v2135 = vadd.f32 %v2075, %v2114
        %v2136 = vadd.f32 %v2076, %v2118
        %v2137 = vadd.f32 %v2077, %v2114
        %v2138 = vadd.f32 %v2078, %v2118
        %v2139 = vadd.f32 %v2079, %v2114
        %v2140 = vadd.f32 %v2080, %v2118
        %v2141 = vadd.f32 %v2081, %v2114
        %v2142 = vadd.f32 %v2082, %v2118
        %v2143 = vadd.f32 %v2083, %v2114
        %v2144 = vadd.f32 %v2084, %v2118
        %v2145 = vadd.f32 %v2085, %v2114
        %v2146 = vadd.f32 %v2086, %v2118
        %v2147 = vadd.f32 %v2087, %v2114
        %v2148 = vadd.f32 %v2088, %v2118
        %v2149 = vadd.f32 %v2089, %v2114
        %v2150 = vadd.f32 %v2090, %v2118
        %v2151 = vadd.f32 %v2091, %v2114
        %v2152 = vadd.f32 %v2092, %v2118
        %v2153 = vadd.f32 %v2093, %v2114
        %v2154 = vadd.f32 %v2094, %v2118
        %v2155 = vadd.f32 %v2095, %v2114
        %v2156 = vadd.f32 %v2096, %v2118
        %v2157 = vadd.f32 %v2097, %v2114
        %v2158 = vadd.f32 %v2098, %v2118
        %v2159 = vadd.f32 %v2099, %v2114
        %v2160 = vadd.f32 %v2100, %v2118
        %v2161 = vadd.f32 %v2101, %v2114
        %v2162 = vadd.f32 %v2102, %v2118
        %v2163 = vadd.f32 %v2103, %v2114
        %v2164 = vadd.f32 %v2104, %v2118
        %v2165 = vadd.f32 %v2105, %v2114
        %v2166 = vadd.f32 %v2106, %v2118
        %v2167 = vadd.f32 %v2107, %v2114
        %v2168 = vadd.f32 %v2108, %v2118
        %v2169 = vmax.f32 %v2121, 0.0
        %v2170 = vmax.f32 %v2122, 0.0
        %v2171 = vmax.f32 %v2123, 0.0
        %v2172 = vmax.f32 %v2124, 0.0
        %v2173 = vmax.f32 %v2125, 0.0
        %v2174 = vmax.f32 %v2126, 0.0
        %v2175 = vmax.f32 %v2127, 0.0
        %v2176 = vmax.f32 %v2128, 0.0
        %v2177 = vmax.f32 %v2129, 0.0
        %v2178 = vmax.f32 %v2130, 0.0
        %v2179 = vmax.f32 %v2131, 0.0
        %v2180 = vmax.f32 %v2132, 0.0
        %v2181 = vmax.f32 %v2133, 0.0
        %v2182 = vmax.f32 %v2134, 0.0
        %v2183 = vmax.f32 %v2135, 0.0
        %v2184 = vmax.f32 %v2136, 0.0
        %v2185 = vmax.f32 %v2137, 0.0
        %v2186 = vmax.f32 %v2138, 0.0
        %v2187 = vmax.f32 %v2139, 0.0
        %v2188 = vmax.f32 %v2140, 0.0
        %v2189 = vmax.f32 %v2141, 0.0
        %v2190 = vmax.f32 %v2142, 0.0
        %v2191 = vmax.f32 %v2143, 0.0
        %v2192 = vmax.f32 %v2144, 0.0
        %v2193 = vmax.f32 %v2145, 0.0
        %v2194 = vmax.f32 %v2146, 0.0
        %v2195 = vmax.f32 %v2147, 0.0
        %v2196 = vmax.f32 %v2148, 0.0
        %v2197 = vmax.f32 %v2149, 0.0
        %v2198 = vmax.f32 %v2150, 0.0
        %v2199 = vmax.f32 %v2151, 0.0
        %v2200 = vmax.f32 %v2152, 0.0
        %v2201 = vmax.f32 %v2153, 0.0
        %v2202 = vmax.f32 %v2154, 0.0
        %v2203 = vmax.f32 %v2155, 0.0
        %v2204 = vmax.f32 %v2156, 0.0
        %v2205 = vmax.f32 %v2157, 0.0
        %v2206 = vmax.f32 %v2158, 0.0
        %v2207 = vmax.f32 %v2159, 0.0
        %v2208 = vmax.f32 %v2160, 0.0
        %v2209 = vmax.f32 %v2161, 0.0
        %v2210 = vmax.f32 %v2162, 0.0
        %v2211 = vmax.f32 %v2163, 0.0
        %v2212 = vmax.f32 %v2164, 0.0
        %v2213 = vmax.f32 %v2165, 0.0
        %v2214 = vmax.f32 %v2166, 0.0
        %v2215 = vmax.f32 %v2167, 0.0
        %v2216 = vmax.f32 %v2168, 0.0
        %v2217 = vld [vmem:[%s3] sm:$0xff]
        %v2218 = vld [vmem:[%s3 + $0x8] sm:$0xff]
        %v2219 = vld [vmem:[%s3 + $0x10] sm:$0xff]
        %v2220 = vld [vmem:[%s3 + $0x18] sm:$0xff]
        %v2221 = vld [vmem:[%s3 + $0x20] sm:$0xff]
        %v2222 = vld [vmem:[%s3 + $0x28] sm:$0xff]
        %v2223 = vld [vmem:[%s3 + $0x30] sm:$0xff]
        %v2224 = vld [vmem:[%s3 + $0x38] sm:$0xff]
        %v2225 = vld [vmem:[%s3 + $0x40] sm:$0xff]
        %v2226 = vld [vmem:[%s3 + $0x48] sm:$0xff]
        %v2227 = vld [vmem:[%s3 + $0x50] sm:$0xff]
        %v2228 = vld [vmem:[%s3 + $0x58] sm:$0xff]
        %v2229 = vld [vmem:[%s3 + $0x60] sm:$0xff]
        %v2230 = vld [vmem:[%s3 + $0x68] sm:$0xff]
        %v2231 = vld [vmem:[%s3 + $0x70] sm:$0xff]
        %v2232 = vld [vmem:[%s3 + $0x78] sm:$0xff]
        %v2233 = vld [vmem:[%s3 + $0x80] sm:$0xff]
        %v2234 = vld [vmem:[%s3 + $0x88] sm:$0xff]
        %vm2235 = vcmask 130048
        %v2237 = vsel %vm2235, %v2170, 0
        %v2240 = vsel %vm2235, %v2172, 0
        %v2243 = vsel %vm2235, %v2174, 0
        %v2246 = vsel %vm2235, %v2176, 0
        %v2249 = vsel %vm2235, %v2178, 0
        %v2252 = vsel %vm2235, %v2180, 0
        %v2255 = vsel %vm2235, %v2182, 0
        %v2258 = vsel %vm2235, %v2184, 0
        %v2261 = vsel %vm2235, %v2186, 0
        %v2264 = vsel %vm2235, %v2188, 0
        %v2267 = vsel %vm2235, %v2190, 0
        %v2270 = vsel %vm2235, %v2192, 0
        %v2273 = vsel %vm2235, %v2194, 0
        %v2276 = vsel %vm2235, %v2196, 0
        %v2279 = vsel %vm2235, %v2198, 0
        %v2282 = vsel %vm2235, %v2200, 0
        %v2285 = vsel %vm2235, %v2202, 0
        %v2288 = vsel %vm2235, %v2204, 0
        %v2291 = vsel %vm2235, %v2206, 0
        %v2294 = vsel %vm2235, %v2208, 0
        %v2297 = vsel %vm2235, %v2210, 0
        %v2300 = vsel %vm2235, %v2212, 0
        %v2303 = vsel %vm2235, %v2214, 0
        %v2306 = vsel %vm2235, %v2216, 0
        %2308 = vmatprep.subr.mxu0 0.0
        %2309 = vmatpush1.msra.mxu0 %v2217
        %2310 = vmatprep.subr.mxu0 0.0
        %2311 = vmatpush1.msra.mxu0 %v2218
        %2312 = vmatprep.subr.mxu0 0.0
        %2313 = vmatpush1.msra.mxu0 %v2219
        %2314 = vmatprep.subr.mxu0 0.0
        %2315 = vmatpush1.msra.mxu0 %v2220
        %2316 = vmatprep.subr.mxu0 0.0
        %2317 = vmatpush1.msra.mxu0 %v2221
        %2318 = vmatprep.subr.mxu0 0.0
        %2319 = vmatpush1.msra.mxu0 %v2222
        %2320 = vmatprep.subr.mxu0 0.0
        %2321 = vmatpush1.msra.mxu0 %v2223
        %2322 = vmatprep.subr.mxu0 0.0
        %2323 = vmatpush1.msra.mxu0 %v2224
        %2324 = vmatprep.subr.mxu0 0.0
        %2325 = vmatpush1.msra.mxu0 %v2225
        %2326 = vmatprep.subr.mxu0 0.0
        %2327 = vmatpush1.msra.mxu0 %v2226
        %2328 = vmatprep.subr.mxu0 0.0
        %2329 = vmatpush1.msra.mxu0 %v2227
        %2330 = vmatprep.subr.mxu0 0.0
        %2331 = vmatpush1.msra.mxu0 %v2228
        %2332 = vmatprep.subr.mxu0 0.0
        %2333 = vmatpush1.msra.mxu0 %v2229
        %2334 = vmatprep.subr.mxu0 0.0
        %2335 = vmatpush1.msra.mxu0 %v2230
        %2336 = vmatprep.subr.mxu0 0.0
        %2337 = vmatpush1.msra.mxu0 %v2231
        %2338 = vmatprep.subr.mxu0 0.0
        %2339 = vmatpush1.msra.mxu0 %v2232
        %2340 = vmatprep.subr.mxu0 0.0
        %2341 = vmatpush1.msra.mxu0 %v2233
        %2342 = vmatprep.subr.mxu0 0.0
        %2343 = vmatpush1.msra.mxu0 %v2234
        %2344 = vmatprep.subr.mxu0 0.0
        %2345 = vmatpush1.msra.mxu0 0.0
        %2346 = vmatprep.subr.mxu0 0.0
        %2347 = vmatpush1.msra.mxu0 0.0
        %2348 = vmatprep.subr.mxu0 0.0
        %2349 = vmatpush1.msra.mxu0 0.0
        %2350 = vmatprep.subr.mxu0 0.0
        %2351 = vmatpush1.msra.mxu0 0.0
        %2352 = vmatprep.subr.mxu0 0.0
        %2353 = vmatpush1.msra.mxu0 0.0
        %2354 = vmatprep.subr.mxu0 0.0
        %2355 = vmatpush1.msra.mxu0 0.0
        %2356 = vmatprep.subr.mxu0 0.0
        %2357 = vmatpush1.msra.mxu0 0.0
        %2358 = vmatprep.subr.mxu0 0.0
        %2359 = vmatpush1.msra.mxu0 0.0
        %2360 = vmatprep.subr.mxu0 0.0
        %2361 = vmatpush1.msra.mxu0 0.0
        %2362 = vmatprep.subr.mxu0 0.0
        %2363 = vmatpush1.msra.mxu0 0.0
        %2364 = vmatprep.subr.mxu0 0.0
        %2365 = vmatpush1.msra.mxu0 0.0
        %2366 = vmatprep.subr.mxu0 0.0
        %2367 = vmatpush1.msra.mxu0 0.0
        %2368 = vmatprep.subr.mxu0 0.0
        %2369 = vmatpush1.msra.mxu0 0.0
        %2370 = vmatprep.subr.mxu0 0.0
        %2371 = vmatpush1.msra.mxu0 0.0
        %2372 = vmatprep.mubr.f32.mxu0 %v2237
        %2373 = vmatmul.mubr.f32.gmra.mrb[0].mxu0 %v2169
        %v2374 = vpop.f32.mrb[0].mxu0
        %v2375 = vadd.f32 0.0, %v2374
        %v2376 = vpop.f32.mrb[0].mxu0
        %2377 = vmatprep.mubr.f32.mxu0 %v2240
        %2378 = vmatmul.mubr.f32.gmra.mrb[0].mxu0 %v2171
        %v2379 = vpop.f32.mrb[0].mxu0
        %v2380 = vadd.f32 0.0, %v2379
        %v2381 = vpop.f32.mrb[0].mxu0
        %2382 = vmatprep.mubr.f32.mxu0 %v2243
        %2383 = vmatmul.mubr.f32.gmra.mrb[0].mxu0 %v2173
        %v2384 = vpop.f32.mrb[0].mxu0
        %v2385 = vadd.f32 0.0, %v2384
        %v2386 = vpop.f32.mrb[0].mxu0
        %2387 = vmatprep.mubr.f32.mxu0 %v2246
        %2388 = vmatmul.mubr.f32.gmra.mrb[0].mxu0 %v2175
        %v2389 = vpop.f32.mrb[0].mxu0
        %v2390 = vadd.f32 0.0, %v2389
        %v2391 = vpop.f32.mrb[0].mxu0
        %2392 = vmatprep.mubr.f32.mxu0 %v2249
        %2393 = vmatmul.mubr.f32.gmra.mrb[0].mxu0 %v2177
        %v2394 = vpop.f32.mrb[0].mxu0
        %v2395 = vadd.f32 0.0, %v2394
        %v2396 = vpop.f32.mrb[0].mxu0
        %2397 = vmatprep.mubr.f32.mxu0 %v2252
        %2398 = vmatmul.mubr.f32.gmra.mrb[0].mxu0 %v2179
        %v2399 = vpop.f32.mrb[0].mxu0
        %v2400 = vadd.f32 0.0, %v2399
        %v2401 = vpop.f32.mrb[0].mxu0
        %2402 = vmatprep.mubr.f32.mxu0 %v2255
        %2403 = vmatmul.mubr.f32.gmra.mrb[0].mxu0 %v2181
        %v2404 = vpop.f32.mrb[0].mxu0
        %v2405 = vadd.f32 0.0, %v2404
        %v2406 = vpop.f32.mrb[0].mxu0
        %2407 = vmatprep.mubr.f32.mxu0 %v2258
        %2408 = vmatmul.mubr.f32.gmra.mrb[0].mxu0 %v2183
        %v2409 = vpop.f32.mrb[0].mxu0
        %v2410 = vadd.f32 0.0, %v2409
        %v2411 = vpop.f32.mrb[0].mxu0
        %2412 = vmatprep.mubr.f32.mxu0 %v2261
        %2413 = vmatmul.mubr.f32.gmra.mrb[0].mxu0 %v2185
        %v2414 = vpop.f32.mrb[0].mxu0
        %v2415 = vadd.f32 0.0, %v2414
        %v2416 = vpop.f32.mrb[0].mxu0
        %2417 = vmatprep.mubr.f32.mxu0 %v2264
        %2418 = vmatmul.mubr.f32.gmra.mrb[0].mxu0 %v2187
        %v2419 = vpop.f32.mrb[0].mxu0
        %v2420 = vadd.f32 0.0, %v2419
        %v2421 = vpop.f32.mrb[0].mxu0
        %2422 = vmatprep.mubr.f32.mxu0 %v2267
        %2423 = vmatmul.mubr.f32.gmra.mrb[0].mxu0 %v2189
        %v2424 = vpop.f32.mrb[0].mxu0
        %v2425 = vadd.f32 0.0, %v2424
        %v2426 = vpop.f32.mrb[0].mxu0
        %2427 = vmatprep.mubr.f32.mxu0 %v2270
        %2428 = vmatmul.mubr.f32.gmra.mrb[0].mxu0 %v2191
        %v2429 = vpop.f32.mrb[0].mxu0
        %v2430 = vadd.f32 0.0, %v2429
        %v2431 = vpop.f32.mrb[0].mxu0
        %2432 = vmatprep.mubr.f32.mxu0 %v2273
        %2433 = vmatmul.mubr.f32.gmra.mrb[0].mxu0 %v2193
        %v2434 = vpop.f32.mrb[0].mxu0
        %v2435 = vadd.f32 0.0, %v2434
        %v2436 = vpop.f32.mrb[0].mxu0
        %2437 = vmatprep.mubr.f32.mxu0 %v2276
        %2438 = vmatmul.mubr.f32.gmra.mrb[0].mxu0 %v2195
        %v2439 = vpop.f32.mrb[0].mxu0
        %v2440 = vadd.f32 0.0, %v2439
        %v2441 = vpop.f32.mrb[0].mxu0
        %2442 = vmatprep.mubr.f32.mxu0 %v2279
        %2443 = vmatmul.mubr.f32.gmra.mrb[0].mxu0 %v2197
        %v2444 = vpop.f32.mrb[0].mxu0
        %v2445 = vadd.f32 0.0, %v2444
        %v2446 = vpop.f32.mrb[0].mxu0
        %2447 = vmatprep.mubr.f32.mxu0 %v2282
        %2448 = vmatmul.mubr.f32.gmra.mrb[0].mxu0 %v2199
        %v2449 = vpop.f32.mrb[0].mxu0
        %v2450 = vadd.f32 0.0, %v2449
        %v2451 = vpop.f32.mrb[0].mxu0
        %2452 = vmatprep.mubr.f32.mxu0 %v2285
        %2453 = vmatmul.mubr.f32.gmra.mrb[0].mxu0 %v2201
        %v2454 = vpop.f32.mrb[0].mxu0
        %v2455 = vadd.f32 0.0, %v2454
        %v2456 = vpop.f32.mrb[0].mxu0
        %2457 = vmatprep.mubr.f32.mxu0 %v2288
        %2458 = vmatmul.mubr.f32.gmra.mrb[0].mxu0 %v2203
        %v2459 = vpop.f32.mrb[0].mxu0
        %v2460 = vadd.f32 0.0, %v2459
        %v2461 = vpop.f32.mrb[0].mxu0
        %2462 = vmatprep.mubr.f32.mxu0 %v2291
        %2463 = vmatmul.mubr.f32.gmra.mrb[0].mxu0 %v2205
        %v2464 = vpop.f32.mrb[0].mxu0
        %v2465 = vadd.f32 0.0, %v2464
        %v2466 = vpop.f32.mrb[0].mxu0
        %2467 = vmatprep.mubr.f32.mxu0 %v2294
        %2468 = vmatmul.mubr.f32.gmra.mrb[0].mxu0 %v2207
        %v2469 = vpop.f32.mrb[0].mxu0
        %v2470 = vadd.f32 0.0, %v2469
        %v2471 = vpop.f32.mrb[0].mxu0
        %2472 = vmatprep.mubr.f32.mxu0 %v2297
        %2473 = vmatmul.mubr.f32.gmra.mrb[0].mxu0 %v2209
        %v2474 = vpop.f32.mrb[0].mxu0
        %v2475 = vadd.f32 0.0, %v2474
        %v2476 = vpop.f32.mrb[0].mxu0
        %2477 = vmatprep.mubr.f32.mxu0 %v2300
        %2478 = vmatmul.mubr.f32.gmra.mrb[0].mxu0 %v2211
        %v2479 = vpop.f32.mrb[0].mxu0
        %v2480 = vadd.f32 0.0, %v2479
        %v2481 = vpop.f32.mrb[0].mxu0
        %2482 = vmatprep.mubr.f32.mxu0 %v2303
        %2483 = vmatmul.mubr.f32.gmra.mrb[0].mxu0 %v2213
        %v2484 = vpop.f32.mrb[0].mxu0
        %v2485 = vadd.f32 0.0, %v2484
        %v2486 = vpop.f32.mrb[0].mxu0
        %2487 = vmatprep.mubr.f32.mxu0 %v2306
        %2488 = vmatmul.mubr.f32.gmra.mrb[0].mxu0 %v2215
        %v2489 = vpop.f32.mrb[0].mxu0
        %v2490 = vadd.f32 0.0, %v2489
        %v2491 = vpop.f32.mrb[0].mxu0
        %2492 = vdwg.mxu0
        %s2493 = scalar_lea.vmem %s3, 144
        %v2494 = vld [vmem:[%s2493] sm:$0xff]
        %v2495 = vld [vmem:[%s2493 + $0x8] sm:$0xff]
        %v2496 = vld [vmem:[%s2493 + $0x10] sm:$0xff]
        %v2497 = vld [vmem:[%s2493 + $0x18] sm:$0xff]
        %v2498 = vld [vmem:[%s2493 + $0x20] sm:$0xff]
        %v2499 = vld [vmem:[%s2493 + $0x28] sm:$0xff]
        %v2500 = vld [vmem:[%s2493 + $0x30] sm:$0xff]
        %v2501 = vld [vmem:[%s2493 + $0x38] sm:$0xff]
        %v2502 = vld [vmem:[%s2493 + $0x40] sm:$0xff]
        %v2503 = vld [vmem:[%s2493 + $0x48] sm:$0xff]
        %v2504 = vld [vmem:[%s2493 + $0x50] sm:$0xff]
        %v2505 = vld [vmem:[%s2493 + $0x58] sm:$0xff]
        %v2506 = vld [vmem:[%s2493 + $0x60] sm:$0xff]
        %v2507 = vld [vmem:[%s2493 + $0x68] sm:$0xff]
        %v2508 = vld [vmem:[%s2493 + $0x70] sm:$0xff]
        %v2509 = vld [vmem:[%s2493 + $0x78] sm:$0xff]
        %v2510 = vld [vmem:[%s2493 + $0x80] sm:$0xff]
        %v2511 = vld [vmem:[%s2493 + $0x88] sm:$0xff]
        %2512 = vmatprep.subr.mxu0 0.0
        %2513 = vmatpush1.msra.mxu0 %v2494
        %2514 = vmatprep.subr.mxu0 0.0
        %2515 = vmatpush1.msra.mxu0 %v2495
        %2516 = vmatprep.subr.mxu0 0.0
        %2517 = vmatpush1.msra.mxu0 %v2496
        %2518 = vmatprep.subr.mxu0 0.0
        %2519 = vmatpush1.msra.mxu0 %v2497
        %2520 = vmatprep.subr.mxu0 0.0
        %2521 = vmatpush1.msra.mxu0 %v2498
        %2522 = vmatprep.subr.mxu0 0.0
        %2523 = vmatpush1.msra.mxu0 %v2499
        %2524 = vmatprep.subr.mxu0 0.0
        %2525 = vmatpush1.msra.mxu0 %v2500
        %2526 = vmatprep.subr.mxu0 0.0
        %2527 = vmatpush1.msra.mxu0 %v2501
        %2528 = vmatprep.subr.mxu0 0.0
        %2529 = vmatpush1.msra.mxu0 %v2502
        %2530 = vmatprep.subr.mxu0 0.0
        %2531 = vmatpush1.msra.mxu0 %v2503
        %2532 = vmatprep.subr.mxu0 0.0
        %2533 = vmatpush1.msra.mxu0 %v2504
        %2534 = vmatprep.subr.mxu0 0.0
        %2535 = vmatpush1.msra.mxu0 %v2505
        %2536 = vmatprep.subr.mxu0 0.0
        %2537 = vmatpush1.msra.mxu0 %v2506
        %2538 = vmatprep.subr.mxu0 0.0
        %2539 = vmatpush1.msra.mxu0 %v2507
        %2540 = vmatprep.subr.mxu0 0.0
        %2541 = vmatpush1.msra.mxu0 %v2508
        %2542 = vmatprep.subr.mxu0 0.0
        %2543 = vmatpush1.msra.mxu0 %v2509
        %2544 = vmatprep.subr.mxu0 0.0
        %2545 = vmatpush1.msra.mxu0 %v2510
        %2546 = vmatprep.subr.mxu0 0.0
        %2547 = vmatpush1.msra.mxu0 %v2511
        %2548 = vmatprep.subr.mxu0 0.0
        %2549 = vmatpush1.msra.mxu0 0.0
        %2550 = vmatprep.subr.mxu0 0.0
        %2551 = vmatpush1.msra.mxu0 0.0
        %2552 = vmatprep.subr.mxu0 0.0
        %2553 = vmatpush1.msra.mxu0 0.0
        %2554 = vmatprep.subr.mxu0 0.0
        %2555 = vmatpush1.msra.mxu0 0.0
        %2556 = vmatprep.subr.mxu0 0.0
        %2557 = vmatpush1.msra.mxu0 0.0
        %2558 = vmatprep.subr.mxu0 0.0
        %2559 = vmatpush1.msra.mxu0 0.0
        %2560 = vmatprep.subr.mxu0 0.0
        %2561 = vmatpush1.msra.mxu0 0.0
        %2562 = vmatprep.subr.mxu0 0.0
        %2563 = vmatpush1.msra.mxu0 0.0
        %2564 = vmatprep.subr.mxu0 0.0
        %2565 = vmatpush1.msra.mxu0 0.0
        %2566 = vmatprep.subr.mxu0 0.0
        %2567 = vmatpush1.msra.mxu0 0.0
        %2568 = vmatprep.subr.mxu0 0.0
        %2569 = vmatpush1.msra.mxu0 0.0
        %2570 = vmatprep.subr.mxu0 0.0
        %2571 = vmatpush1.msra.mxu0 0.0
        %2572 = vmatprep.subr.mxu0 0.0
        %2573 = vmatpush1.msra.mxu0 0.0
        %2574 = vmatprep.subr.mxu0 0.0
        %2575 = vmatpush1.msra.mxu0 0.0
        %2576 = vmatprep.mubr.f32.mxu0 %v2237
        %2577 = vmatmul.mubr.f32.gmra.mrb[0].mxu0 %v2169
        %v2578 = vpop.f32.mrb[0].mxu0
        %v2579 = vadd.f32 0.0, %v2578
        %v2580 = vpop.f32.mrb[0].mxu0
        %2581 = vmatprep.mubr.f32.mxu0 %v2240
        %2582 = vmatmul.mubr.f32.gmra.mrb[0].mxu0 %v2171
        %v2583 = vpop.f32.mrb[0].mxu0
        %v2584 = vadd.f32 0.0, %v2583
        %v2585 = vpop.f32.mrb[0].mxu0
        %2586 = vmatprep.mubr.f32.mxu0 %v2243
        %2587 = vmatmul.mubr.f32.gmra.mrb[0].mxu0 %v2173
        %v2588 = vpop.f32.mrb[0].mxu0
        %v2589 = vadd.f32 0.0, %v2588
        %v2590 = vpop.f32.mrb[0].mxu0
        %2591 = vmatprep.mubr.f32.mxu0 %v2246
        %2592 = vmatmul.mubr.f32.gmra.mrb[0].mxu0 %v2175
        %v2593 = vpop.f32.mrb[0].mxu0
        %v2594 = vadd.f32 0.0, %v2593
        %v2595 = vpop.f32.mrb[0].mxu0
        %2596 = vmatprep.mubr.f32.mxu0 %v2249
        %2597 = vmatmul.mubr.f32.gmra.mrb[0].mxu0 %v2177
        %v2598 = vpop.f32.mrb[0].mxu0
        %v2599 = vadd.f32 0.0, %v2598
        %v2600 = vpop.f32.mrb[0].mxu0
        %2601 = vmatprep.mubr.f32.mxu0 %v2252
        %2602 = vmatmul.mubr.f32.gmra.mrb[0].mxu0 %v2179
        %v2603 = vpop.f32.mrb[0].mxu0
        %v2604 = vadd.f32 0.0, %v2603
        %v2605 = vpop.f32.mrb[0].mxu0
        %2606 = vmatprep.mubr.f32.mxu0 %v2255
        %2607 = vmatmul.mubr.f32.gmra.mrb[0].mxu0 %v2181
        %v2608 = vpop.f32.mrb[0].mxu0
        %v2609 = vadd.f32 0.0, %v2608
        %v2610 = vpop.f32.mrb[0].mxu0
        %2611 = vmatprep.mubr.f32.mxu0 %v2258
        %2612 = vmatmul.mubr.f32.gmra.mrb[0].mxu0 %v2183
        %v2613 = vpop.f32.mrb[0].mxu0
        %v2614 = vadd.f32 0.0, %v2613
        %v2615 = vpop.f32.mrb[0].mxu0
        %2616 = vmatprep.mubr.f32.mxu0 %v2261
        %2617 = vmatmul.mubr.f32.gmra.mrb[0].mxu0 %v2185
        %v2618 = vpop.f32.mrb[0].mxu0
        %v2619 = vadd.f32 0.0, %v2618
        %v2620 = vpop.f32.mrb[0].mxu0
        %2621 = vmatprep.mubr.f32.mxu0 %v2264
        %2622 = vmatmul.mubr.f32.gmra.mrb[0].mxu0 %v2187
        %v2623 = vpop.f32.mrb[0].mxu0
        %v2624 = vadd.f32 0.0, %v2623
        %v2625 = vpop.f32.mrb[0].mxu0
        %2626 = vmatprep.mubr.f32.mxu0 %v2267
        %2627 = vmatmul.mubr.f32.gmra.mrb[0].mxu0 %v2189
        %v2628 = vpop.f32.mrb[0].mxu0
        %v2629 = vadd.f32 0.0, %v2628
        %v2630 = vpop.f32.mrb[0].mxu0
        %2631 = vmatprep.mubr.f32.mxu0 %v2270
        %2632 = vmatmul.mubr.f32.gmra.mrb[0].mxu0 %v2191
        %v2633 = vpop.f32.mrb[0].mxu0
        %v2634 = vadd.f32 0.0, %v2633
        %v2635 = vpop.f32.mrb[0].mxu0
        %2636 = vmatprep.mubr.f32.mxu0 %v2273
        %2637 = vmatmul.mubr.f32.gmra.mrb[0].mxu0 %v2193
        %v2638 = vpop.f32.mrb[0].mxu0
        %v2639 = vadd.f32 0.0, %v2638
        %v2640 = vpop.f32.mrb[0].mxu0
        %2641 = vmatprep.mubr.f32.mxu0 %v2276
        %2642 = vmatmul.mubr.f32.gmra.mrb[0].mxu0 %v2195
        %v2643 = vpop.f32.mrb[0].mxu0
        %v2644 = vadd.f32 0.0, %v2643
        %v2645 = vpop.f32.mrb[0].mxu0
        %2646 = vmatprep.mubr.f32.mxu0 %v2279
        %2647 = vmatmul.mubr.f32.gmra.mrb[0].mxu0 %v2197
        %v2648 = vpop.f32.mrb[0].mxu0
        %v2649 = vadd.f32 0.0, %v2648
        %v2650 = vpop.f32.mrb[0].mxu0
        %2651 = vmatprep.mubr.f32.mxu0 %v2282
        %2652 = vmatmul.mubr.f32.gmra.mrb[0].mxu0 %v2199
        %v2653 = vpop.f32.mrb[0].mxu0
        %v2654 = vadd.f32 0.0, %v2653
        %v2655 = vpop.f32.mrb[0].mxu0
        %2656 = vmatprep.mubr.f32.mxu0 %v2285
        %2657 = vmatmul.mubr.f32.gmra.mrb[0].mxu0 %v2201
        %v2658 = vpop.f32.mrb[0].mxu0
        %v2659 = vadd.f32 0.0, %v2658
        %v2660 = vpop.f32.mrb[0].mxu0
        %2661 = vmatprep.mubr.f32.mxu0 %v2288
        %2662 = vmatmul.mubr.f32.gmra.mrb[0].mxu0 %v2203
        %v2663 = vpop.f32.mrb[0].mxu0
        %v2664 = vadd.f32 0.0, %v2663
        %v2665 = vpop.f32.mrb[0].mxu0
        %2666 = vmatprep.mubr.f32.mxu0 %v2291
        %2667 = vmatmul.mubr.f32.gmra.mrb[0].mxu0 %v2205
        %v2668 = vpop.f32.mrb[0].mxu0
        %v2669 = vadd.f32 0.0, %v2668
        %v2670 = vpop.f32.mrb[0].mxu0
        %2671 = vmatprep.mubr.f32.mxu0 %v2294
        %2672 = vmatmul.mubr.f32.gmra.mrb[0].mxu0 %v2207
        %v2673 = vpop.f32.mrb[0].mxu0
        %v2674 = vadd.f32 0.0, %v2673
        %v2675 = vpop.f32.mrb[0].mxu0
        %2676 = vmatprep.mubr.f32.mxu0 %v2297
        %2677 = vmatmul.mubr.f32.gmra.mrb[0].mxu0 %v2209
        %v2678 = vpop.f32.mrb[0].mxu0
        %v2679 = vadd.f32 0.0, %v2678
        %v2680 = vpop.f32.mrb[0].mxu0
        %2681 = vmatprep.mubr.f32.mxu0 %v2300
        %2682 = vmatmul.mubr.f32.gmra.mrb[0].mxu0 %v2211
        %v2683 = vpop.f32.mrb[0].mxu0
        %v2684 = vadd.f32 0.0, %v2683
        %v2685 = vpop.f32.mrb[0].mxu0
        %2686 = vmatprep.mubr.f32.mxu0 %v2303
        %2687 = vmatmul.mubr.f32.gmra.mrb[0].mxu0 %v2213
        %v2688 = vpop.f32.mrb[0].mxu0
        %v2689 = vadd.f32 0.0, %v2688
        %v2690 = vpop.f32.mrb[0].mxu0
        %2691 = vmatprep.mubr.f32.mxu0 %v2306
        %2692 = vmatmul.mubr.f32.gmra.mrb[0].mxu0 %v2215
        %v2693 = vpop.f32.mrb[0].mxu0
        %v2694 = vadd.f32 0.0, %v2693
        %v2695 = vpop.f32.mrb[0].mxu0
        %2696 = vdwg.mxu0
        %v2697 = vmax.f32 %v2375, %v2579
        %v2698 = vmax.f32 %v2380, %v2584
        %v2699 = vmax.f32 %v2385, %v2589
        %v2700 = vmax.f32 %v2390, %v2594
        %v2701 = vmax.f32 %v2395, %v2599
        %v2702 = vmax.f32 %v2400, %v2604
        %v2703 = vmax.f32 %v2405, %v2609
        %v2704 = vmax.f32 %v2410, %v2614
        %v2705 = vmax.f32 %v2415, %v2619
        %v2706 = vmax.f32 %v2420, %v2624
        %v2707 = vmax.f32 %v2425, %v2629
        %v2708 = vmax.f32 %v2430, %v2634
        %v2709 = vmax.f32 %v2435, %v2639
        %v2710 = vmax.f32 %v2440, %v2644
        %v2711 = vmax.f32 %v2445, %v2649
        %v2712 = vmax.f32 %v2450, %v2654
        %v2713 = vmax.f32 %v2455, %v2659
        %v2714 = vmax.f32 %v2460, %v2664
        %v2715 = vmax.f32 %v2465, %v2669
        %v2716 = vmax.f32 %v2470, %v2674
        %v2717 = vmax.f32 %v2475, %v2679
        %v2718 = vmax.f32 %v2480, %v2684
        %v2719 = vmax.f32 %v2485, %v2689
        %v2720 = vmax.f32 %v2490, %v2694
        %v2721 = vld [vmem:[%s4] sm:$0xff]
        %v2722 = vld [vmem:[%s4 + $0x8] sm:$0xff]
        %v2723 = vld [vmem:[%s4 + $0x10] sm:$0xff]
        %v2724 = vld [vmem:[%s4 + $0x18] sm:$0xff]
        %v2725 = vld [vmem:[%s4 + $0x20] sm:$0xff]
        %v2726 = vld [vmem:[%s4 + $0x28] sm:$0xff]
        %v2727 = vld [vmem:[%s4 + $0x30] sm:$0xff]
        %v2728 = vld [vmem:[%s4 + $0x38] sm:$0xff]
        %v2729 = vld [vmem:[%s4 + $0x40] sm:$0xff]
        %v2730 = vld [vmem:[%s4 + $0x48] sm:$0xff]
        %v2731 = vld [vmem:[%s4 + $0x50] sm:$0xff]
        %v2732 = vld [vmem:[%s4 + $0x58] sm:$0xff]
        %v2733 = vld [vmem:[%s4 + $0x60] sm:$0xff]
        %v2734 = vld [vmem:[%s4 + $0x68] sm:$0xff]
        %v2735 = vld [vmem:[%s4 + $0x70] sm:$0xff]
        %v2736 = vld [vmem:[%s4 + $0x78] sm:$0xff]
        %v2737 = vld [vmem:[%s4 + $0x80] sm:$0xff]
        %v2738 = vld [vmem:[%s4 + $0x88] sm:$0xff]
        %v2739 = vld [vmem:[%s4 + $0x90] sm:$0xff]
        %v2740 = vld [vmem:[%s4 + $0x98] sm:$0xff]
        %v2741 = vld [vmem:[%s4 + $0xa0] sm:$0xff]
        %v2742 = vld [vmem:[%s4 + $0xa8] sm:$0xff]
        %v2743 = vld [vmem:[%s4 + $0xb0] sm:$0xff]
        %v2744 = vld [vmem:[%s4 + $0xb8] sm:$0xff]
        %vm2745 = vcmask 523264
        %v2747 = vsel %vm2745, %v2722, 0
        %v2750 = vsel %vm2745, %v2724, 0
        %v2753 = vsel %vm2745, %v2726, 0
        %v2756 = vsel %vm2745, %v2728, 0
        %v2759 = vsel %vm2745, %v2730, 0
        %v2762 = vsel %vm2745, %v2732, 0
        %v2765 = vsel %vm2745, %v2734, 0
        %v2768 = vsel %vm2745, %v2736, 0
        %v2771 = vsel %vm2745, %v2738, 0
        %v2774 = vsel %vm2745, %v2740, 0
        %v2777 = vsel %vm2745, %v2742, 0
        %v2780 = vsel %vm2745, %v2744, 0
        %2782 = vmatprep.subr.mxu0 0.0
        %2783 = vmatpush1.msra.mxu0 %v2697
        %2784 = vmatprep.subr.mxu0 0.0
        %2785 = vmatpush1.msra.mxu0 %v2698
        %2786 = vmatprep.subr.mxu0 0.0
        %2787 = vmatpush1.msra.mxu0 %v2699
        %2788 = vmatprep.subr.mxu0 0.0
        %2789 = vmatpush1.msra.mxu0 %v2700
        %2790 = vmatprep.subr.mxu0 0.0
        %2791 = vmatpush1.msra.mxu0 %v2701
        %2792 = vmatprep.subr.mxu0 0.0
        %2793 = vmatpush1.msra.mxu0 %v2702
        %2794 = vmatprep.subr.mxu0 0.0
        %2795 = vmatpush1.msra.mxu0 %v2703
        %2796 = vmatprep.subr.mxu0 0.0
        %2797 = vmatpush1.msra.mxu0 %v2704
        %2798 = vmatprep.subr.mxu0 0.0
        %2799 = vmatpush1.msra.mxu0 %v2705
        %2800 = vmatprep.subr.mxu0 0.0
        %2801 = vmatpush1.msra.mxu0 %v2706
        %2802 = vmatprep.subr.mxu0 0.0
        %2803 = vmatpush1.msra.mxu0 %v2707
        %2804 = vmatprep.subr.mxu0 0.0
        %2805 = vmatpush1.msra.mxu0 %v2708
        %2806 = vmatprep.subr.mxu0 0.0
        %2807 = vmatpush1.msra.mxu0 %v2709
        %2808 = vmatprep.subr.mxu0 0.0
        %2809 = vmatpush1.msra.mxu0 %v2710
        %2810 = vmatprep.subr.mxu0 0.0
        %2811 = vmatpush1.msra.mxu0 %v2711
        %2812 = vmatprep.subr.mxu0 0.0
        %2813 = vmatpush1.msra.mxu0 %v2712
        %2814 = vmatprep.subr.mxu0 0.0
        %2815 = vmatpush1.msra.mxu0 %v2713
        %2816 = vmatprep.subr.mxu0 0.0
        %2817 = vmatpush1.msra.mxu0 %v2714
        %2818 = vmatprep.subr.mxu0 0.0
        %2819 = vmatpush1.msra.mxu0 %v2715
        %2820 = vmatprep.subr.mxu0 0.0
        %2821 = vmatpush1.msra.mxu0 %v2716
        %2822 = vmatprep.subr.mxu0 0.0
        %2823 = vmatpush1.msra.mxu0 %v2717
        %2824 = vmatprep.subr.mxu0 0.0
        %2825 = vmatpush1.msra.mxu0 %v2718
        %2826 = vmatprep.subr.mxu0 0.0
        %2827 = vmatpush1.msra.mxu0 %v2719
        %2828 = vmatprep.subr.mxu0 0.0
        %2829 = vmatpush1.msra.mxu0 %v2720
        %2830 = vmatprep.subr.mxu0 0.0
        %2831 = vmatpush1.msra.mxu0 0.0
        %2832 = vmatprep.subr.mxu0 0.0
        %2833 = vmatpush1.msra.mxu0 0.0
        %2834 = vmatprep.subr.mxu0 0.0
        %2835 = vmatpush1.msra.mxu0 0.0
        %2836 = vmatprep.subr.mxu0 0.0
        %2837 = vmatpush1.msra.mxu0 0.0
        %2838 = vmatprep.subr.mxu0 0.0
        %2839 = vmatpush1.msra.mxu0 0.0
        %2840 = vmatprep.subr.mxu0 0.0
        %2841 = vmatpush1.msra.mxu0 0.0
        %2842 = vmatprep.subr.mxu0 0.0
        %2843 = vmatpush1.msra.mxu0 0.0
        %2844 = vmatprep.subr.mxu0 0.0
        %2845 = vmatpush1.msra.mxu0 0.0
        %2846 = vmatprep.mubr.f32.mxu0 %v2747
        %2847 = vmatmul.mubr.f32.gmra.mrb[0].mxu0 %v2721
        %v2848 = vpop.f32.mrb[0].mxu0
        %v2849 = vadd.f32 0.0, %v2848
        %v2850 = vpop.f32.mrb[0].mxu0
        %2851 = vmatprep.mubr.f32.mxu0 %v2750
        %2852 = vmatmul.mubr.f32.gmra.mrb[0].mxu0 %v2723
        %v2853 = vpop.f32.mrb[0].mxu0
        %v2854 = vadd.f32 0.0, %v2853
        %v2855 = vpop.f32.mrb[0].mxu0
        %2856 = vmatprep.mubr.f32.mxu0 %v2753
        %2857 = vmatmul.mubr.f32.gmra.mrb[0].mxu0 %v2725
        %v2858 = vpop.f32.mrb[0].mxu0
        %v2859 = vadd.f32 0.0, %v2858
        %v2860 = vpop.f32.mrb[0].mxu0
        %2861 = vmatprep.mubr.f32.mxu0 %v2756
        %2862 = vmatmul.mubr.f32.gmra.mrb[0].mxu0 %v2727
        %v2863 = vpop.f32.mrb[0].mxu0
        %v2864 = vadd.f32 0.0, %v2863
        %v2865 = vpop.f32.mrb[0].mxu0
        %2866 = vmatprep.mubr.f32.mxu0 %v2759
        %2867 = vmatmul.mubr.f32.gmra.mrb[0].mxu0 %v2729
        %v2868 = vpop.f32.mrb[0].mxu0
        %v2869 = vadd.f32 0.0, %v2868
        %v2870 = vpop.f32.mrb[0].mxu0
        %2871 = vmatprep.mubr.f32.mxu0 %v2762
        %2872 = vmatmul.mubr.f32.gmra.mrb[0].mxu0 %v2731
        %v2873 = vpop.f32.mrb[0].mxu0
        %v2874 = vadd.f32 0.0, %v2873
        %v2875 = vpop.f32.mrb[0].mxu0
        %2876 = vmatprep.mubr.f32.mxu0 %v2765
        %2877 = vmatmul.mubr.f32.gmra.mrb[0].mxu0 %v2733
        %v2878 = vpop.f32.mrb[0].mxu0
        %v2879 = vadd.f32 0.0, %v2878
        %v2880 = vpop.f32.mrb[0].mxu0
        %2881 = vmatprep.mubr.f32.mxu0 %v2768
        %2882 = vmatmul.mubr.f32.gmra.mrb[0].mxu0 %v2735
        %v2883 = vpop.f32.mrb[0].mxu0
        %v2884 = vadd.f32 0.0, %v2883
        %v2885 = vpop.f32.mrb[0].mxu0
        %2886 = vmatprep.mubr.f32.mxu0 %v2771
        %2887 = vmatmul.mubr.f32.gmra.mrb[0].mxu0 %v2737
        %v2888 = vpop.f32.mrb[0].mxu0
        %v2889 = vadd.f32 0.0, %v2888
        %v2890 = vpop.f32.mrb[0].mxu0
        %2891 = vmatprep.mubr.f32.mxu0 %v2774
        %2892 = vmatmul.mubr.f32.gmra.mrb[0].mxu0 %v2739
        %v2893 = vpop.f32.mrb[0].mxu0
        %v2894 = vadd.f32 0.0, %v2893
        %v2895 = vpop.f32.mrb[0].mxu0
        %2896 = vmatprep.mubr.f32.mxu0 %v2777
        %2897 = vmatmul.mubr.f32.gmra.mrb[0].mxu0 %v2741
        %v2898 = vpop.f32.mrb[0].mxu0
        %v2899 = vadd.f32 0.0, %v2898
        %v2900 = vpop.f32.mrb[0].mxu0
        %2901 = vmatprep.mubr.f32.mxu0 %v2780
        %2902 = vmatmul.mubr.f32.gmra.mrb[0].mxu0 %v2743
        %v2903 = vpop.f32.mrb[0].mxu0
        %v2904 = vadd.f32 0.0, %v2903
        %v2905 = vpop.f32.mrb[0].mxu0
        %2906 = vdwg.mxu0
        %s2907 = scalar_lea.vmem %s4, 192
        %v2908 = vld [vmem:[%s2907] sm:$0xff]
        %v2909 = vld [vmem:[%s2907 + $0x8] sm:$0xff]
        %v2910 = vld [vmem:[%s2907 + $0x10] sm:$0xff]
        %v2911 = vld [vmem:[%s2907 + $0x18] sm:$0xff]
        %v2912 = vld [vmem:[%s2907 + $0x20] sm:$0xff]
        %v2913 = vld [vmem:[%s2907 + $0x28] sm:$0xff]
        %v2914 = vld [vmem:[%s2907 + $0x30] sm:$0xff]
        %v2915 = vld [vmem:[%s2907 + $0x38] sm:$0xff]
        %v2916 = vld [vmem:[%s2907 + $0x40] sm:$0xff]
        %v2917 = vld [vmem:[%s2907 + $0x48] sm:$0xff]
        %v2918 = vld [vmem:[%s2907 + $0x50] sm:$0xff]
        %v2919 = vld [vmem:[%s2907 + $0x58] sm:$0xff]
        %v2920 = vld [vmem:[%s2907 + $0x60] sm:$0xff]
        %v2921 = vld [vmem:[%s2907 + $0x68] sm:$0xff]
        %v2922 = vld [vmem:[%s2907 + $0x70] sm:$0xff]
        %v2923 = vld [vmem:[%s2907 + $0x78] sm:$0xff]
        %v2924 = vld [vmem:[%s2907 + $0x80] sm:$0xff]
        %v2925 = vld [vmem:[%s2907 + $0x88] sm:$0xff]
        %v2926 = vld [vmem:[%s2907 + $0x90] sm:$0xff]
        %v2927 = vld [vmem:[%s2907 + $0x98] sm:$0xff]
        %v2928 = vld [vmem:[%s2907 + $0xa0] sm:$0xff]
        %v2929 = vld [vmem:[%s2907 + $0xa8] sm:$0xff]
        %v2930 = vld [vmem:[%s2907 + $0xb0] sm:$0xff]
        %v2931 = vld [vmem:[%s2907 + $0xb8] sm:$0xff]
        %v2933 = vsel %vm2745, %v2909, 0
        %v2936 = vsel %vm2745, %v2911, 0
        %v2939 = vsel %vm2745, %v2913, 0
        %v2942 = vsel %vm2745, %v2915, 0
        %v2945 = vsel %vm2745, %v2917, 0
        %v2948 = vsel %vm2745, %v2919, 0
        %v2951 = vsel %vm2745, %v2921, 0
        %v2954 = vsel %vm2745, %v2923, 0
        %v2957 = vsel %vm2745, %v2925, 0
        %v2960 = vsel %vm2745, %v2927, 0
        %v2963 = vsel %vm2745, %v2929, 0
        %v2966 = vsel %vm2745, %v2931, 0
        %2968 = vmatprep.subr.mxu0 0.0
        %2969 = vmatpush1.msra.mxu0 %v2697
        %2970 = vmatprep.subr.mxu0 0.0
        %2971 = vmatpush1.msra.mxu0 %v2698
        %2972 = vmatprep.subr.mxu0 0.0
        %2973 = vmatpush1.msra.mxu0 %v2699
        %2974 = vmatprep.subr.mxu0 0.0
        %2975 = vmatpush1.msra.mxu0 %v2700
        %2976 = vmatprep.subr.mxu0 0.0
        %2977 = vmatpush1.msra.mxu0 %v2701
        %2978 = vmatprep.subr.mxu0 0.0
        %2979 = vmatpush1.msra.mxu0 %v2702
        %2980 = vmatprep.subr.mxu0 0.0
        %2981 = vmatpush1.msra.mxu0 %v2703
        %2982 = vmatprep.subr.mxu0 0.0
        %2983 = vmatpush1.msra.mxu0 %v2704
        %2984 = vmatprep.subr.mxu0 0.0
        %2985 = vmatpush1.msra.mxu0 %v2705
        %2986 = vmatprep.subr.mxu0 0.0
        %2987 = vmatpush1.msra.mxu0 %v2706
        %2988 = vmatprep.subr.mxu0 0.0
        %2989 = vmatpush1.msra.mxu0 %v2707
        %2990 = vmatprep.subr.mxu0 0.0
        %2991 = vmatpush1.msra.mxu0 %v2708
        %2992 = vmatprep.subr.mxu0 0.0
        %2993 = vmatpush1.msra.mxu0 %v2709
        %2994 = vmatprep.subr.mxu0 0.0
        %2995 = vmatpush1.msra.mxu0 %v2710
        %2996 = vmatprep.subr.mxu0 0.0
        %2997 = vmatpush1.msra.mxu0 %v2711
        %2998 = vmatprep.subr.mxu0 0.0
        %2999 = vmatpush1.msra.mxu0 %v2712
        %3000 = vmatprep.subr.mxu0 0.0
        %3001 = vmatpush1.msra.mxu0 %v2713
        %3002 = vmatprep.subr.mxu0 0.0
        %3003 = vmatpush1.msra.mxu0 %v2714
        %3004 = vmatprep.subr.mxu0 0.0
        %3005 = vmatpush1.msra.mxu0 %v2715
        %3006 = vmatprep.subr.mxu0 0.0
        %3007 = vmatpush1.msra.mxu0 %v2716
        %3008 = vmatprep.subr.mxu0 0.0
        %3009 = vmatpush1.msra.mxu0 %v2717
        %3010 = vmatprep.subr.mxu0 0.0
        %3011 = vmatpush1.msra.mxu0 %v2718
        %3012 = vmatprep.subr.mxu0 0.0
        %3013 = vmatpush1.msra.mxu0 %v2719
        %3014 = vmatprep.subr.mxu0 0.0
        %3015 = vmatpush1.msra.mxu0 %v2720
        %3016 = vmatprep.subr.mxu0 0.0
        %3017 = vmatpush1.msra.mxu0 0.0
        %3018 = vmatprep.subr.mxu0 0.0
        %3019 = vmatpush1.msra.mxu0 0.0
        %3020 = vmatprep.subr.mxu0 0.0
        %3021 = vmatpush1.msra.mxu0 0.0
        %3022 = vmatprep.subr.mxu0 0.0
        %3023 = vmatpush1.msra.mxu0 0.0
        %3024 = vmatprep.subr.mxu0 0.0
        %3025 = vmatpush1.msra.mxu0 0.0
        %3026 = vmatprep.subr.mxu0 0.0
        %3027 = vmatpush1.msra.mxu0 0.0
        %3028 = vmatprep.subr.mxu0 0.0
        %3029 = vmatpush1.msra.mxu0 0.0
        %3030 = vmatprep.subr.mxu0 0.0
        %3031 = vmatpush1.msra.mxu0 0.0
        %3032 = vmatprep.mubr.f32.mxu0 %v2933
        %3033 = vmatmul.mubr.f32.gmra.mrb[0].mxu0 %v2908
        %v3034 = vpop.f32.mrb[0].mxu0
        %v3035 = vadd.f32 0.0, %v3034
        %v3036 = vpop.f32.mrb[0].mxu0
        %3037 = vmatprep.mubr.f32.mxu0 %v2936
        %3038 = vmatmul.mubr.f32.gmra.mrb[0].mxu0 %v2910
        %v3039 = vpop.f32.mrb[0].mxu0
        %v3040 = vadd.f32 0.0, %v3039
        %v3041 = vpop.f32.mrb[0].mxu0
        %3042 = vmatprep.mubr.f32.mxu0 %v2939
        %3043 = vmatmul.mubr.f32.gmra.mrb[0].mxu0 %v2912
        %v3044 = vpop.f32.mrb[0].mxu0
        %v3045 = vadd.f32 0.0, %v3044
        %v3046 = vpop.f32.mrb[0].mxu0
        %3047 = vmatprep.mubr.f32.mxu0 %v2942
        %3048 = vmatmul.mubr.f32.gmra.mrb[0].mxu0 %v2914
        %v3049 = vpop.f32.mrb[0].mxu0
        %v3050 = vadd.f32 0.0, %v3049
        %v3051 = vpop.f32.mrb[0].mxu0
        %3052 = vmatprep.mubr.f32.mxu0 %v2945
        %3053 = vmatmul.mubr.f32.gmra.mrb[0].mxu0 %v2916
        %v3054 = vpop.f32.mrb[0].mxu0
        %v3055 = vadd.f32 0.0, %v3054
        %v3056 = vpop.f32.mrb[0].mxu0
        %3057 = vmatprep.mubr.f32.mxu0 %v2948
        %3058 = vmatmul.mubr.f32.gmra.mrb[0].mxu0 %v2918
        %v3059 = vpop.f32.mrb[0].mxu0
        %v3060 = vadd.f32 0.0, %v3059
        %v3061 = vpop.f32.mrb[0].mxu0
        %3062 = vmatprep.mubr.f32.mxu0 %v2951
        %3063 = vmatmul.mubr.f32.gmra.mrb[0].mxu0 %v2920
        %v3064 = vpop.f32.mrb[0].mxu0
        %v3065 = vadd.f32 0.0, %v3064
        %v3066 = vpop.f32.mrb[0].mxu0
        %3067 = vmatprep.mubr.f32.mxu0 %v2954
        %3068 = vmatmul.mubr.f32.gmra.mrb[0].mxu0 %v2922
        %v3069 = vpop.f32.mrb[0].mxu0
        %v3070 = vadd.f32 0.0, %v3069
        %v3071 = vpop.f32.mrb[0].mxu0
        %3072 = vmatprep.mubr.f32.mxu0 %v2957
        %3073 = vmatmul.mubr.f32.gmra.mrb[0].mxu0 %v2924
        %v3074 = vpop.f32.mrb[0].mxu0
        %v3075 = vadd.f32 0.0, %v3074
        %v3076 = vpop.f32.mrb[0].mxu0
        %3077 = vmatprep.mubr.f32.mxu0 %v2960
        %3078 = vmatmul.mubr.f32.gmra.mrb[0].mxu0 %v2926
        %v3079 = vpop.f32.mrb[0].mxu0
        %v3080 = vadd.f32 0.0, %v3079
        %v3081 = vpop.f32.mrb[0].mxu0
        %3082 = vmatprep.mubr.f32.mxu0 %v2963
        %3083 = vmatmul.mubr.f32.gmra.mrb[0].mxu0 %v2928
        %v3084 = vpop.f32.mrb[0].mxu0
        %v3085 = vadd.f32 0.0, %v3084
        %v3086 = vpop.f32.mrb[0].mxu0
        %3087 = vmatprep.mubr.f32.mxu0 %v2966
        %3088 = vmatmul.mubr.f32.gmra.mrb[0].mxu0 %v2930
        %v3089 = vpop.f32.mrb[0].mxu0
        %v3090 = vadd.f32 0.0, %v3089
        %v3091 = vpop.f32.mrb[0].mxu0
        %3092 = vdwg.mxu0
        %v3093 = vmax.f32 %v2849, %v3035
        %v3094 = vmax.f32 %v2854, %v3040
        %v3095 = vmax.f32 %v2859, %v3045
        %v3096 = vmax.f32 %v2864, %v3050
        %v3097 = vmax.f32 %v2869, %v3055
        %v3098 = vmax.f32 %v2874, %v3060
        %v3099 = vmax.f32 %v2879, %v3065
        %v3100 = vmax.f32 %v2884, %v3070
        %v3101 = vmax.f32 %v2889, %v3075
        %v3102 = vmax.f32 %v2894, %v3080
        %v3103 = vmax.f32 %v2899, %v3085
        %v3104 = vmax.f32 %v2904, %v3090
        %v3105 = vld [vmem:[%s5] sm:$0xff]
        %v3106 = vld [vmem:[%s5 + $0x8] sm:$0xff]
        %v3107 = vld [vmem:[%s5 + $0x10] sm:$0xff]
        %v3108 = vld [vmem:[%s5 + $0x18] sm:$0xff]
        %v3109 = vld [vmem:[%s5 + $0x20] sm:$0xff]
        %v3110 = vld [vmem:[%s5 + $0x28] sm:$0xff]
        %v3111 = vld [vmem:[%s5 + $0x30] sm:$0xff]
        %v3112 = vld [vmem:[%s5 + $0x38] sm:$0xff]
        %v3113 = vld [vmem:[%s5 + $0x40] sm:$0xff]
        %s3114 = scalar_lea.vmem %s5, 72
        %v3115 = vld [vmem:[%s3114] sm:$0xff]
        %v3116 = vld [vmem:[%s3114 + $0x8] sm:$0xff]
        %v3117 = vld [vmem:[%s3114 + $0x10] sm:$0xff]
        %v3118 = vld [vmem:[%s3114 + $0x18] sm:$0xff]
        %v3119 = vld [vmem:[%s3114 + $0x20] sm:$0xff]
        %v3120 = vld [vmem:[%s3114 + $0x28] sm:$0xff]
        %v3121 = vld [vmem:[%s3114 + $0x30] sm:$0xff]
        %v3122 = vld [vmem:[%s3114 + $0x38] sm:$0xff]
        %v3123 = vld [vmem:[%s3114 + $0x40] sm:$0xff]
        %vm3124 = vcmask 588800
        %v3126 = vsel %vm3124, %v3094, 0
        %v3129 = vsel %vm3124, %v3095, 0
        %v3132 = vsel %vm3124, %v3096, 0
        %v3135 = vsel %vm3124, %v3097, 0
        %v3138 = vsel %vm3124, %v3098, 0
        %v3141 = vsel %vm3124, %v3099, 0
        %v3144 = vsel %vm3124, %v3100, 0
        %v3147 = vsel %vm3124, %v3101, 0
        %v3150 = vsel %vm3124, %v3102, 0
        %v3153 = vsel %vm3124, %v3103, 0
        %3155 = vmatprep.subr.mxu0 0.0
        %3156 = vmatpush1.msra.mxu0 %v3115
        %3157 = vmatprep.subr.mxu0 0.0
        %3158 = vmatpush1.msra.mxu0 %v3116
        %3159 = vmatprep.subr.mxu0 0.0
        %3160 = vmatpush1.msra.mxu0 %v3117
        %3161 = vmatprep.subr.mxu0 0.0
        %3162 = vmatpush1.msra.mxu0 %v3118
        %3163 = vmatprep.subr.mxu0 0.0
        %3164 = vmatpush1.msra.mxu0 %v3119
        %3165 = vmatprep.subr.mxu0 0.0
        %3166 = vmatpush1.msra.mxu0 %v3120
        %3167 = vmatprep.subr.mxu0 0.0
        %3168 = vmatpush1.msra.mxu0 %v3121
        %3169 = vmatprep.subr.mxu0 0.0
        %3170 = vmatpush1.msra.mxu0 %v3122
        %3171 = vmatprep.subr.mxu0 0.0
        %3172 = vmatpush1.msra.mxu0 %v3123
        %3173 = vmatprep.subr.mxu0 0.0
        %3174 = vmatpush1.msra.mxu0 0.0
        %3175 = vmatprep.subr.mxu0 0.0
        %3176 = vmatpush1.msra.mxu0 0.0
        %3177 = vmatprep.subr.mxu0 0.0
        %3178 = vmatpush1.msra.mxu0 0.0
        %3179 = vmatprep.subr.mxu0 0.0
        %3180 = vmatpush1.msra.mxu0 0.0
        %3181 = vmatprep.subr.mxu0 0.0
        %3182 = vmatpush1.msra.mxu0 0.0
        %3183 = vmatprep.subr.mxu0 0.0
        %3184 = vmatpush1.msra.mxu0 0.0
        %3185 = vmatprep.subr.mxu0 0.0
        %3186 = vmatpush1.msra.mxu0 0.0
        %3187 = vmatprep.subr.mxu0 0.0
        %3188 = vmatpush1.msra.mxu0 0.0
        %3189 = vmatprep.subr.mxu0 0.0
        %3190 = vmatpush1.msra.mxu0 0.0
        %3191 = vmatprep.subr.mxu0 0.0
        %3192 = vmatpush1.msra.mxu0 0.0
        %3193 = vmatprep.subr.mxu0 0.0
        %3194 = vmatpush1.msra.mxu0 0.0
        %3195 = vmatprep.subr.mxu0 0.0
        %3196 = vmatpush1.msra.mxu0 0.0
        %3197 = vmatprep.subr.mxu0 0.0
        %3198 = vmatpush1.msra.mxu0 0.0
        %3199 = vmatprep.subr.mxu0 0.0
        %3200 = vmatpush1.msra.mxu0 0.0
        %3201 = vmatprep.subr.mxu0 0.0
        %3202 = vmatpush1.msra.mxu0 0.0
        %3203 = vmatprep.subr.mxu0 0.0
        %3204 = vmatpush1.msra.mxu0 0.0
        %3205 = vmatprep.subr.mxu0 0.0
        %3206 = vmatpush1.msra.mxu0 0.0
        %3207 = vmatprep.subr.mxu0 0.0
        %3208 = vmatpush1.msra.mxu0 0.0
        %3209 = vmatprep.subr.mxu0 0.0
        %3210 = vmatpush1.msra.mxu0 0.0
        %3211 = vmatprep.subr.mxu0 0.0
        %3212 = vmatpush1.msra.mxu0 0.0
        %3213 = vmatprep.subr.mxu0 0.0
        %3214 = vmatpush1.msra.mxu0 0.0
        %3215 = vmatprep.subr.mxu0 0.0
        %3216 = vmatpush1.msra.mxu0 0.0
        %3217 = vmatprep.subr.mxu0 0.0
        %3218 = vmatpush1.msra.mxu0 0.0
        %3219 = vmatprep.mubr.f32.mxu0 0.0
        %3220 = vmatmul.mubr.f32.gmra.mrb[0].mxu0 %v3126
        %v3221 = vpop.f32.mrb[0].mxu0
        %v3222 = vadd.f32 0.0, %v3221
        %v3223 = vpop.f32.mrb[0].mxu0
        %3224 = vmatprep.mubr.f32.mxu0 0.0
        %3225 = vmatmul.mubr.f32.gmra.mrb[0].mxu0 %v3129
        %v3226 = vpop.f32.mrb[0].mxu0
        %v3227 = vadd.f32 0.0, %v3226
        %v3228 = vpop.f32.mrb[0].mxu0
        %3229 = vmatprep.mubr.f32.mxu0 0.0
        %3230 = vmatmul.mubr.f32.gmra.mrb[0].mxu0 %v3132
        %v3231 = vpop.f32.mrb[0].mxu0
        %v3232 = vadd.f32 0.0, %v3231
        %v3233 = vpop.f32.mrb[0].mxu0
        %3234 = vmatprep.mubr.f32.mxu0 0.0
        %3235 = vmatmul.mubr.f32.gmra.mrb[0].mxu0 %v3135
        %v3236 = vpop.f32.mrb[0].mxu0
        %v3237 = vadd.f32 0.0, %v3236
        %v3238 = vpop.f32.mrb[0].mxu0
        %3239 = vmatprep.mubr.f32.mxu0 0.0
        %3240 = vmatmul.mubr.f32.gmra.mrb[0].mxu0 %v3138
        %v3241 = vpop.f32.mrb[0].mxu0
        %v3242 = vadd.f32 0.0, %v3241
        %v3243 = vpop.f32.mrb[0].mxu0
        %3244 = vmatprep.mubr.f32.mxu0 0.0
        %3245 = vmatmul.mubr.f32.gmra.mrb[0].mxu0 %v3141
        %v3246 = vpop.f32.mrb[0].mxu0
        %v3247 = vadd.f32 0.0, %v3246
        %v3248 = vpop.f32.mrb[0].mxu0
        %3249 = vmatprep.mubr.f32.mxu0 0.0
        %3250 = vmatmul.mubr.f32.gmra.mrb[0].mxu0 %v3144
        %v3251 = vpop.f32.mrb[0].mxu0
        %v3252 = vadd.f32 0.0, %v3251
        %v3253 = vpop.f32.mrb[0].mxu0
        %3254 = vmatprep.mubr.f32.mxu0 0.0
        %3255 = vmatmul.mubr.f32.gmra.mrb[0].mxu0 %v3147
        %v3256 = vpop.f32.mrb[0].mxu0
        %v3257 = vadd.f32 0.0, %v3256
        %v3258 = vpop.f32.mrb[0].mxu0
        %3259 = vmatprep.mubr.f32.mxu0 0.0
        %3260 = vmatmul.mubr.f32.gmra.mrb[0].mxu0 %v3150
        %v3261 = vpop.f32.mrb[0].mxu0
        %v3262 = vadd.f32 0.0, %v3261
        %v3263 = vpop.f32.mrb[0].mxu0
        %3264 = vmatprep.mubr.f32.mxu0 0.0
        %3265 = vmatmul.mubr.f32.gmra.mrb[0].mxu0 %v3153
        %v3266 = vpop.f32.mrb[0].mxu0
        %v3267 = vadd.f32 0.0, %v3266
        %v3268 = vpop.f32.mrb[0].mxu0
        %3269 = vdwg.mxu0
        %v3271 = vsel %vm3124, %v3093, 0
        %3273 = vmatprep.subr.mxu0 0.0
        %3274 = vmatpush1.msra.mxu0 %v3105
        %3275 = vmatprep.subr.mxu0 0.0
        %3276 = vmatpush1.msra.mxu0 %v3106
        %3277 = vmatprep.subr.mxu0 0.0
        %3278 = vmatpush1.msra.mxu0 %v3107
        %3279 = vmatprep.subr.mxu0 0.0
        %3280 = vmatpush1.msra.mxu0 %v3108
        %3281 = vmatprep.subr.mxu0 0.0
        %3282 = vmatpush1.msra.mxu0 %v3109
        %3283 = vmatprep.subr.mxu0 0.0
        %3284 = vmatpush1.msra.mxu0 %v3110
        %3285 = vmatprep.subr.mxu0 0.0
        %3286 = vmatpush1.msra.mxu0 %v3111
        %3287 = vmatprep.subr.mxu0 0.0
        %3288 = vmatpush1.msra.mxu0 %v3112
        %3289 = vmatprep.subr.mxu0 0.0
        %3290 = vmatpush1.msra.mxu0 %v3113
        %3291 = vmatprep.subr.mxu0 0.0
        %3292 = vmatpush1.msra.mxu0 0.0
        %3293 = vmatprep.subr.mxu0 0.0
        %3294 = vmatpush1.msra.mxu0 0.0
        %3295 = vmatprep.subr.mxu0 0.0
        %3296 = vmatpush1.msra.mxu0 0.0
        %3297 = vmatprep.subr.mxu0 0.0
        %3298 = vmatpush1.msra.mxu0 0.0
        %3299 = vmatprep.subr.mxu0 0.0
        %3300 = vmatpush1.msra.mxu0 0.0
        %3301 = vmatprep.subr.mxu0 0.0
        %3302 = vmatpush1.msra.mxu0 0.0
        %3303 = vmatprep.subr.mxu0 0.0
        %3304 = vmatpush1.msra.mxu0 0.0
        %3305 = vmatprep.subr.mxu0 0.0
        %3306 = vmatpush1.msra.mxu0 0.0
        %3307 = vmatprep.subr.mxu0 0.0
        %3308 = vmatpush1.msra.mxu0 0.0
        %3309 = vmatprep.subr.mxu0 0.0
        %3310 = vmatpush1.msra.mxu0 0.0
        %3311 = vmatprep.subr.mxu0 0.0
        %3312 = vmatpush1.msra.mxu0 0.0
        %3313 = vmatprep.subr.mxu0 0.0
        %3314 = vmatpush1.msra.mxu0 0.0
        %3315 = vmatprep.subr.mxu0 0.0
        %3316 = vmatpush1.msra.mxu0 0.0
        %3317 = vmatprep.subr.mxu0 0.0
        %3318 = vmatpush1.msra.mxu0 0.0
        %3319 = vmatprep.subr.mxu0 0.0
        %3320 = vmatpush1.msra.mxu0 0.0
        %3321 = vmatprep.subr.mxu0 0.0
        %3322 = vmatpush1.msra.mxu0 0.0
        %3323 = vmatprep.subr.mxu0 0.0
        %3324 = vmatpush1.msra.mxu0 0.0
        %3325 = vmatprep.subr.mxu0 0.0
        %3326 = vmatpush1.msra.mxu0 0.0
        %3327 = vmatprep.subr.mxu0 0.0
        %3328 = vmatpush1.msra.mxu0 0.0
        %3329 = vmatprep.subr.mxu0 0.0
        %3330 = vmatpush1.msra.mxu0 0.0
        %3331 = vmatprep.subr.mxu0 0.0
        %3332 = vmatpush1.msra.mxu0 0.0
        %3333 = vmatprep.subr.mxu0 0.0
        %3334 = vmatpush1.msra.mxu0 0.0
        %3335 = vmatprep.subr.mxu0 0.0
        %3336 = vmatpush1.msra.mxu0 0.0
        %3337 = vmatprep.mubr.f32.mxu0 0.0
        %3338 = vmatmul.mubr.f32.gmra.mrb[0].mxu0 %v3271
        %v3339 = vpop.f32.mrb[0].mxu0
        %v3340 = vadd.f32 %v3222, %v3339
        %v3341 = vpop.f32.mrb[0].mxu0
        %3342 = vmatprep.mubr.f32.mxu0 0.0
        %3343 = vmatmul.mubr.f32.gmra.mrb[0].mxu0 %v3126
        %v3344 = vpop.f32.mrb[0].mxu0
        %v3345 = vadd.f32 %v3227, %v3344
        %v3346 = vpop.f32.mrb[0].mxu0
        %3347 = vmatprep.mubr.f32.mxu0 0.0
        %3348 = vmatmul.mubr.f32.gmra.mrb[0].mxu0 %v3129
        %v3349 = vpop.f32.mrb[0].mxu0
        %v3350 = vadd.f32 %v3232, %v3349
        %v3351 = vpop.f32.mrb[0].mxu0
        %3352 = vmatprep.mubr.f32.mxu0 0.0
        %3353 = vmatmul.mubr.f32.gmra.mrb[0].mxu0 %v3132
        %v3354 = vpop.f32.mrb[0].mxu0
        %v3355 = vadd.f32 %v3237, %v3354
        %v3356 = vpop.f32.mrb[0].mxu0
        %3357 = vmatprep.mubr.f32.mxu0 0.0
        %3358 = vmatmul.mubr.f32.gmra.mrb[0].mxu0 %v3135
        %v3359 = vpop.f32.mrb[0].mxu0
        %v3360 = vadd.f32 %v3242, %v3359
        %v3361 = vpop.f32.mrb[0].mxu0
        %3362 = vmatprep.mubr.f32.mxu0 0.0
        %3363 = vmatmul.mubr.f32.gmra.mrb[0].mxu0 %v3138
        %v3364 = vpop.f32.mrb[0].mxu0
        %v3365 = vadd.f32 %v3247, %v3364
        %v3366 = vpop.f32.mrb[0].mxu0
        %3367 = vmatprep.mubr.f32.mxu0 0.0
        %3368 = vmatmul.mubr.f32.gmra.mrb[0].mxu0 %v3141
        %v3369 = vpop.f32.mrb[0].mxu0
        %v3370 = vadd.f32 %v3252, %v3369
        %v3371 = vpop.f32.mrb[0].mxu0
        %3372 = vmatprep.mubr.f32.mxu0 0.0
        %3373 = vmatmul.mubr.f32.gmra.mrb[0].mxu0 %v3144
        %v3374 = vpop.f32.mrb[0].mxu0
        %v3375 = vadd.f32 %v3257, %v3374
        %v3376 = vpop.f32.mrb[0].mxu0
        %3377 = vmatprep.mubr.f32.mxu0 0.0
        %3378 = vmatmul.mubr.f32.gmra.mrb[0].mxu0 %v3147
        %v3379 = vpop.f32.mrb[0].mxu0
        %v3380 = vadd.f32 %v3262, %v3379
        %v3381 = vpop.f32.mrb[0].mxu0
        %3382 = vmatprep.mubr.f32.mxu0 0.0
        %3383 = vmatmul.mubr.f32.gmra.mrb[0].mxu0 %v3150
        %v3384 = vpop.f32.mrb[0].mxu0
        %v3385 = vadd.f32 %v3267, %v3384
        %v3386 = vpop.f32.mrb[0].mxu0
        %3387 = vdwg.mxu0
        %s3388 = scalar_lea.vmem %s5, 144
        %v3389 = vld [vmem:[%s3388] sm:$0xff]
        %v3390 = vld [vmem:[%s3388 + $0x8] sm:$0xff]
        %v3391 = vld [vmem:[%s3388 + $0x10] sm:$0xff]
        %v3392 = vld [vmem:[%s3388 + $0x18] sm:$0xff]
        %v3393 = vld [vmem:[%s3388 + $0x20] sm:$0xff]
        %v3394 = vld [vmem:[%s3388 + $0x28] sm:$0xff]
        %v3395 = vld [vmem:[%s3388 + $0x30] sm:$0xff]
        %v3396 = vld [vmem:[%s3388 + $0x38] sm:$0xff]
        %v3397 = vld [vmem:[%s3388 + $0x40] sm:$0xff]
        %v3399 = vsel %vm3124, %v3104, 0
        %3401 = vmatprep.subr.mxu0 0.0
        %3402 = vmatpush1.msra.mxu0 %v3389
        %3403 = vmatprep.subr.mxu0 0.0
        %3404 = vmatpush1.msra.mxu0 %v3390
        %3405 = vmatprep.subr.mxu0 0.0
        %3406 = vmatpush1.msra.mxu0 %v3391
        %3407 = vmatprep.subr.mxu0 0.0
        %3408 = vmatpush1.msra.mxu0 %v3392
        %3409 = vmatprep.subr.mxu0 0.0
        %3410 = vmatpush1.msra.mxu0 %v3393
        %3411 = vmatprep.subr.mxu0 0.0
        %3412 = vmatpush1.msra.mxu0 %v3394
        %3413 = vmatprep.subr.mxu0 0.0
        %3414 = vmatpush1.msra.mxu0 %v3395
        %3415 = vmatprep.subr.mxu0 0.0
        %3416 = vmatpush1.msra.mxu0 %v3396
        %3417 = vmatprep.subr.mxu0 0.0
        %3418 = vmatpush1.msra.mxu0 %v3397
        %3419 = vmatprep.subr.mxu0 0.0
        %3420 = vmatpush1.msra.mxu0 0.0
        %3421 = vmatprep.subr.mxu0 0.0
        %3422 = vmatpush1.msra.mxu0 0.0
        %3423 = vmatprep.subr.mxu0 0.0
        %3424 = vmatpush1.msra.mxu0 0.0
        %3425 = vmatprep.subr.mxu0 0.0
        %3426 = vmatpush1.msra.mxu0 0.0
        %3427 = vmatprep.subr.mxu0 0.0
        %3428 = vmatpush1.msra.mxu0 0.0
        %3429 = vmatprep.subr.mxu0 0.0
        %3430 = vmatpush1.msra.mxu0 0.0
        %3431 = vmatprep.subr.mxu0 0.0
        %3432 = vmatpush1.msra.mxu0 0.0
        %3433 = vmatprep.subr.mxu0 0.0
        %3434 = vmatpush1.msra.mxu0 0.0
        %3435 = vmatprep.subr.mxu0 0.0
        %3436 = vmatpush1.msra.mxu0 0.0
        %3437 = vmatprep.subr.mxu0 0.0
        %3438 = vmatpush1.msra.mxu0 0.0
        %3439 = vmatprep.subr.mxu0 0.0
        %3440 = vmatpush1.msra.mxu0 0.0
        %3441 = vmatprep.subr.mxu0 0.0
        %3442 = vmatpush1.msra.mxu0 0.0
        %3443 = vmatprep.subr.mxu0 0.0
        %3444 = vmatpush1.msra.mxu0 0.0
        %3445 = vmatprep.subr.mxu0 0.0
        %3446 = vmatpush1.msra.mxu0 0.0
        %3447 = vmatprep.subr.mxu0 0.0
        %3448 = vmatpush1.msra.mxu0 0.0
        %3449 = vmatprep.subr.mxu0 0.0
        %3450 = vmatpush1.msra.mxu0 0.0
        %3451 = vmatprep.subr.mxu0 0.0
        %3452 = vmatpush1.msra.mxu0 0.0
        %3453 = vmatprep.subr.mxu0 0.0
        %3454 = vmatpush1.msra.mxu0 0.0
        %3455 = vmatprep.subr.mxu0 0.0
        %3456 = vmatpush1.msra.mxu0 0.0
        %3457 = vmatprep.subr.mxu0 0.0
        %3458 = vmatpush1.msra.mxu0 0.0
        %3459 = vmatprep.subr.mxu0 0.0
        %3460 = vmatpush1.msra.mxu0 0.0
        %3461 = vmatprep.subr.mxu0 0.0
        %3462 = vmatpush1.msra.mxu0 0.0
        %3463 = vmatprep.subr.mxu0 0.0
        %3464 = vmatpush1.msra.mxu0 0.0
        %3465 = vmatprep.mubr.f32.mxu0 0.0
        %3466 = vmatmul.mubr.f32.gmra.mrb[0].mxu0 %v3129
        %v3467 = vpop.f32.mrb[0].mxu0
        %v3468 = vadd.f32 0.0, %v3467
        %v3469 = vpop.f32.mrb[0].mxu0
        %3470 = vmatprep.mubr.f32.mxu0 0.0
        %3471 = vmatmul.mubr.f32.gmra.mrb[0].mxu0 %v3132
        %v3472 = vpop.f32.mrb[0].mxu0
        %v3473 = vadd.f32 0.0, %v3472
        %v3474 = vpop.f32.mrb[0].mxu0
        %3475 = vmatprep.mubr.f32.mxu0 0.0
        %3476 = vmatmul.mubr.f32.gmra.mrb[0].mxu0 %v3135
        %v3477 = vpop.f32.mrb[0].mxu0
        %v3478 = vadd.f32 0.0, %v3477
        %v3479 = vpop.f32.mrb[0].mxu0
        %3480 = vmatprep.mubr.f32.mxu0 0.0
        %3481 = vmatmul.mubr.f32.gmra.mrb[0].mxu0 %v3138
        %v3482 = vpop.f32.mrb[0].mxu0
        %v3483 = vadd.f32 0.0, %v3482
        %v3484 = vpop.f32.mrb[0].mxu0
        %3485 = vmatprep.mubr.f32.mxu0 0.0
        %3486 = vmatmul.mubr.f32.gmra.mrb[0].mxu0 %v3141
        %v3487 = vpop.f32.mrb[0].mxu0
        %v3488 = vadd.f32 0.0, %v3487
        %v3489 = vpop.f32.mrb[0].mxu0
        %3490 = vmatprep.mubr.f32.mxu0 0.0
        %3491 = vmatmul.mubr.f32.gmra.mrb[0].mxu0 %v3144
        %v3492 = vpop.f32.mrb[0].mxu0
        %v3493 = vadd.f32 0.0, %v3492
        %v3494 = vpop.f32.mrb[0].mxu0
        %3495 = vmatprep.mubr.f32.mxu0 0.0
        %3496 = vmatmul.mubr.f32.gmra.mrb[0].mxu0 %v3147
        %v3497 = vpop.f32.mrb[0].mxu0
        %v3498 = vadd.f32 0.0, %v3497
        %v3499 = vpop.f32.mrb[0].mxu0
        %3500 = vmatprep.mubr.f32.mxu0 0.0
        %3501 = vmatmul.mubr.f32.gmra.mrb[0].mxu0 %v3150
        %v3502 = vpop.f32.mrb[0].mxu0
        %v3503 = vadd.f32 0.0, %v3502
        %v3504 = vpop.f32.mrb[0].mxu0
        %3505 = vmatprep.mubr.f32.mxu0 0.0
        %3506 = vmatmul.mubr.f32.gmra.mrb[0].mxu0 %v3153
        %v3507 = vpop.f32.mrb[0].mxu0
        %v3508 = vadd.f32 0.0, %v3507
        %v3509 = vpop.f32.mrb[0].mxu0
        %3510 = vmatprep.mubr.f32.mxu0 0.0
        %3511 = vmatmul.mubr.f32.gmra.mrb[0].mxu0 %v3399
        %v3512 = vpop.f32.mrb[0].mxu0
        %v3513 = vadd.f32 0.0, %v3512
        %v3514 = vpop.f32.mrb[0].mxu0
        %3515 = vdwg.mxu0
        %v3516 = vadd.f32 %v3340, %v3468
        %v3517 = vadd.f32 %v3345, %v3473
        %v3518 = vadd.f32 %v3350, %v3478
        %v3519 = vadd.f32 %v3355, %v3483
        %v3520 = vadd.f32 %v3360, %v3488
        %v3521 = vadd.f32 %v3365, %v3493
        %v3522 = vadd.f32 %v3370, %v3498
        %v3523 = vadd.f32 %v3375, %v3503
        %v3524 = vadd.f32 %v3380, %v3508
        %v3525 = vadd.f32 %v3385, %v3513
        %v3526 = vld [vmem:[%s6] sm:$0x1]
        %v3528 = vlaneseq
        %v3529 = vshrl.u32 %v3528, 7
        %v3530 = vsub.s32 0, %v3529
        %v3531 = vrot.slane %v3526, %v3530
        %v3533 = vadd.f32 %v3516, %v3531
        %v3534 = vadd.f32 %v3517, %v3531
        %v3535 = vadd.f32 %v3518, %v3531
        %v3536 = vadd.f32 %v3519, %v3531
        %v3537 = vadd.f32 %v3520, %v3531
        %v3538 = vadd.f32 %v3521, %v3531
        %v3539 = vadd.f32 %v3522, %v3531
        %v3540 = vadd.f32 %v3523, %v3531
        %v3541 = vadd.f32 %v3524, %v3531
        %v3542 = vadd.f32 %v3525, %v3531
        %v3543 = vmax.f32 %v3533, 0.0
        %v3544 = vmax.f32 %v3534, 0.0
        %v3545 = vmax.f32 %v3535, 0.0
        %v3546 = vmax.f32 %v3536, 0.0
        %v3547 = vmax.f32 %v3537, 0.0
        %v3548 = vmax.f32 %v3538, 0.0
        %v3549 = vmax.f32 %v3539, 0.0
        %v3550 = vmax.f32 %v3540, 0.0
        %v3551 = vmax.f32 %v3541, 0.0
        %v3552 = vmax.f32 %v3542, 0.0
        %v3553 = vld [vmem:[%s7] sm:$0xff]
        %v3554 = vld [vmem:[%s7 + $0x8] sm:$0xff]
        %v3555 = vld [vmem:[%s7 + $0x10] sm:$0xff]
        %v3556 = vld [vmem:[%s7 + $0x18] sm:$0xff]
        %v3557 = vld [vmem:[%s7 + $0x20] sm:$0xff]
        %v3558 = vld [vmem:[%s7 + $0x28] sm:$0xff]
        %v3559 = vld [vmem:[%s7 + $0x30] sm:$0xff]
        %v3560 = vld [vmem:[%s7 + $0x38] sm:$0xff]
        %v3561 = vld [vmem:[%s7 + $0x40] sm:$0xff]
        %v3562 = vld [vmem:[%s7 + $0x48] sm:$0xff]
        %v3563 = vld [vmem:[%s7 + $0x50] sm:$0xff]
        %v3564 = vld [vmem:[%s7 + $0x58] sm:$0xff]
        %v3565 = vld [vmem:[%s7 + $0x60] sm:$0xff]
        %v3566 = vld [vmem:[%s7 + $0x68] sm:$0xff]
        %v3567 = vld [vmem:[%s7 + $0x70] sm:$0xff]
        %vm3568 = vcmask 982016
        %v3570 = vsel %vm3568, %v3543, 0
        %v3573 = vsel %vm3568, %v3544, 0
        %v3576 = vsel %vm3568, %v3545, 0
        %v3579 = vsel %vm3568, %v3546, 0
        %v3582 = vsel %vm3568, %v3547, 0
        %v3585 = vsel %vm3568, %v3548, 0
        %v3588 = vsel %vm3568, %v3549, 0
        %v3591 = vsel %vm3568, %v3550, 0
        %v3594 = vsel %vm3568, %v3551, 0
        %v3597 = vsel %vm3568, %v3552, 0
        %3599 = vmatprep.subr.mxu0 0.0
        %3600 = vmatpush1.msra.mxu0 %v3553
        %3601 = vmatprep.subr.mxu0 0.0
        %3602 = vmatpush1.msra.mxu0 %v3554
        %3603 = vmatprep.subr.mxu0 0.0
        %3604 = vmatpush1.msra.mxu0 %v3555
        %3605 = vmatprep.subr.mxu0 0.0
        %3606 = vmatpush1.msra.mxu0 %v3556
        %3607 = vmatprep.subr.mxu0 0.0
        %3608 = vmatpush1.msra.mxu0 %v3557
        %3609 = vmatprep.subr.mxu0 0.0
        %3610 = vmatpush1.msra.mxu0 %v3558
        %3611 = vmatprep.subr.mxu0 0.0
        %3612 = vmatpush1.msra.mxu0 %v3559
        %3613 = vmatprep.subr.mxu0 0.0
        %3614 = vmatpush1.msra.mxu0 %v3560
        %3615 = vmatprep.subr.mxu0 0.0
        %3616 = vmatpush1.msra.mxu0 %v3561
        %3617 = vmatprep.subr.mxu0 0.0
        %3618 = vmatpush1.msra.mxu0 %v3562
        %3619 = vmatprep.subr.mxu0 0.0
        %3620 = vmatpush1.msra.mxu0 %v3563
        %3621 = vmatprep.subr.mxu0 0.0
        %3622 = vmatpush1.msra.mxu0 %v3564
        %3623 = vmatprep.subr.mxu0 0.0
        %3624 = vmatpush1.msra.mxu0 %v3565
        %3625 = vmatprep.subr.mxu0 0.0
        %3626 = vmatpush1.msra.mxu0 %v3566
        %3627 = vmatprep.subr.mxu0 0.0
        %3628 = vmatpush1.msra.mxu0 %v3567
        %3629 = vmatprep.subr.mxu0 0.0
        %3630 = vmatpush1.msra.mxu0 0.0
        %3631 = vmatprep.subr.mxu0 0.0
        %3632 = vmatpush1.msra.mxu0 0.0
        %3633 = vmatprep.subr.mxu0 0.0
        %3634 = vmatpush1.msra.mxu0 0.0
        %3635 = vmatprep.subr.mxu0 0.0
        %3636 = vmatpush1.msra.mxu0 0.0
        %3637 = vmatprep.subr.mxu0 0.0
        %3638 = vmatpush1.msra.mxu0 0.0
        %3639 = vmatprep.subr.mxu0 0.0
        %3640 = vmatpush1.msra.mxu0 0.0
        %3641 = vmatprep.subr.mxu0 0.0
        %3642 = vmatpush1.msra.mxu0 0.0
        %3643 = vmatprep.subr.mxu0 0.0
        %3644 = vmatpush1.msra.mxu0 0.0
        %3645 = vmatprep.subr.mxu0 0.0
        %3646 = vmatpush1.msra.mxu0 0.0
        %3647 = vmatprep.subr.mxu0 0.0
        %3648 = vmatpush1.msra.mxu0 0.0
        %3649 = vmatprep.subr.mxu0 0.0
        %3650 = vmatpush1.msra.mxu0 0.0
        %3651 = vmatprep.subr.mxu0 0.0
        %3652 = vmatpush1.msra.mxu0 0.0
        %3653 = vmatprep.subr.mxu0 0.0
        %3654 = vmatpush1.msra.mxu0 0.0
        %3655 = vmatprep.subr.mxu0 0.0
        %3656 = vmatpush1.msra.mxu0 0.0
        %3657 = vmatprep.subr.mxu0 0.0
        %3658 = vmatpush1.msra.mxu0 0.0
        %3659 = vmatprep.subr.mxu0 0.0
        %3660 = vmatpush1.msra.mxu0 0.0
        %3661 = vmatprep.subr.mxu0 0.0
        %3662 = vmatpush1.msra.mxu0 0.0
        %3663 = vmatprep.mubr.f32.mxu0 0.0
        %3664 = vmatmul.mubr.f32.gmra.mrb[0].mxu0 %v3570
        %v3665 = vpop.f32.mrb[0].mxu0
        %v3666 = vadd.f32 0.0, %v3665
        %v3667 = vpop.f32.mrb[0].mxu0
        %3668 = vmatprep.mubr.f32.mxu0 0.0
        %3669 = vmatmul.mubr.f32.gmra.mrb[0].mxu0 %v3573
        %v3670 = vpop.f32.mrb[0].mxu0
        %v3671 = vadd.f32 0.0, %v3670
        %v3672 = vpop.f32.mrb[0].mxu0
        %3673 = vmatprep.mubr.f32.mxu0 0.0
        %3674 = vmatmul.mubr.f32.gmra.mrb[0].mxu0 %v3576
        %v3675 = vpop.f32.mrb[0].mxu0
        %v3676 = vadd.f32 0.0, %v3675
        %v3677 = vpop.f32.mrb[0].mxu0
        %3678 = vmatprep.mubr.f32.mxu0 0.0
        %3679 = vmatmul.mubr.f32.gmra.mrb[0].mxu0 %v3579
        %v3680 = vpop.f32.mrb[0].mxu0
        %v3681 = vadd.f32 0.0, %v3680
        %v3682 = vpop.f32.mrb[0].mxu0
        %3683 = vmatprep.mubr.f32.mxu0 0.0
        %3684 = vmatmul.mubr.f32.gmra.mrb[0].mxu0 %v3582
        %v3685 = vpop.f32.mrb[0].mxu0
        %v3686 = vadd.f32 0.0, %v3685
        %v3687 = vpop.f32.mrb[0].mxu0
        %3688 = vmatprep.mubr.f32.mxu0 0.0
        %3689 = vmatmul.mubr.f32.gmra.mrb[0].mxu0 %v3585
        %v3690 = vpop.f32.mrb[0].mxu0
        %v3691 = vadd.f32 0.0, %v3690
        %v3692 = vpop.f32.mrb[0].mxu0
        %3693 = vmatprep.mubr.f32.mxu0 0.0
        %3694 = vmatmul.mubr.f32.gmra.mrb[0].mxu0 %v3588
        %v3695 = vpop.f32.mrb[0].mxu0
        %v3696 = vadd.f32 0.0, %v3695
        %v3697 = vpop.f32.mrb[0].mxu0
        %3698 = vmatprep.mubr.f32.mxu0 0.0
        %3699 = vmatmul.mubr.f32.gmra.mrb[0].mxu0 %v3591
        %v3700 = vpop.f32.mrb[0].mxu0
        %v3701 = vadd.f32 0.0, %v3700
        %v3702 = vpop.f32.mrb[0].mxu0
        %3703 = vmatprep.mubr.f32.mxu0 0.0
        %3704 = vmatmul.mubr.f32.gmra.mrb[0].mxu0 %v3594
        %v3705 = vpop.f32.mrb[0].mxu0
        %v3706 = vadd.f32 0.0, %v3705
        %v3707 = vpop.f32.mrb[0].mxu0
        %3708 = vmatprep.mubr.f32.mxu0 0.0
        %3709 = vmatmul.mubr.f32.gmra.mrb[0].mxu0 %v3597
        %v3710 = vpop.f32.mrb[0].mxu0
        %v3711 = vadd.f32 0.0, %v3710
        %v3712 = vpop.f32.mrb[0].mxu0
        %3713 = vdwg.mxu0
        %s3714 = scalar_lea.vmem %s7, 120
        %v3715 = vld [vmem:[%s3714] sm:$0xff]
        %v3716 = vld [vmem:[%s3714 + $0x8] sm:$0xff]
        %v3717 = vld [vmem:[%s3714 + $0x10] sm:$0xff]
        %v3718 = vld [vmem:[%s3714 + $0x18] sm:$0xff]
        %v3719 = vld [vmem:[%s3714 + $0x20] sm:$0xff]
        %v3720 = vld [vmem:[%s3714 + $0x28] sm:$0xff]
        %v3721 = vld [vmem:[%s3714 + $0x30] sm:$0xff]
        %v3722 = vld [vmem:[%s3714 + $0x38] sm:$0xff]
        %v3723 = vld [vmem:[%s3714 + $0x40] sm:$0xff]
        %v3724 = vld [vmem:[%s3714 + $0x48] sm:$0xff]
        %v3725 = vld [vmem:[%s3714 + $0x50] sm:$0xff]
        %v3726 = vld [vmem:[%s3714 + $0x58] sm:$0xff]
        %v3727 = vld [vmem:[%s3714 + $0x60] sm:$0xff]
        %v3728 = vld [vmem:[%s3714 + $0x68] sm:$0xff]
        %v3729 = vld [vmem:[%s3714 + $0x70] sm:$0xff]
        %3730 = vmatprep.subr.mxu0 0.0
        %3731 = vmatpush1.msra.mxu0 %v3715
        %3732 = vmatprep.subr.mxu0 0.0
        %3733 = vmatpush1.msra.mxu0 %v3716
        %3734 = vmatprep.subr.mxu0 0.0
        %3735 = vmatpush1.msra.mxu0 %v3717
        %3736 = vmatprep.subr.mxu0 0.0
        %3737 = vmatpush1.msra.mxu0 %v3718
        %3738 = vmatprep.subr.mxu0 0.0
        %3739 = vmatpush1.msra.mxu0 %v3719
        %3740 = vmatprep.subr.mxu0 0.0
        %3741 = vmatpush1.msra.mxu0 %v3720
        %3742 = vmatprep.subr.mxu0 0.0
        %3743 = vmatpush1.msra.mxu0 %v3721
        %3744 = vmatprep.subr.mxu0 0.0
        %3745 = vmatpush1.msra.mxu0 %v3722
        %3746 = vmatprep.subr.mxu0 0.0
        %3747 = vmatpush1.msra.mxu0 %v3723
        %3748 = vmatprep.subr.mxu0 0.0
        %3749 = vmatpush1.msra.mxu0 %v3724
        %3750 = vmatprep.subr.mxu0 0.0
        %3751 = vmatpush1.msra.mxu0 %v3725
        %3752 = vmatprep.subr.mxu0 0.0
        %3753 = vmatpush1.msra.mxu0 %v3726
        %3754 = vmatprep.subr.mxu0 0.0
        %3755 = vmatpush1.msra.mxu0 %v3727
        %3756 = vmatprep.subr.mxu0 0.0
        %3757 = vmatpush1.msra.mxu0 %v3728
        %3758 = vmatprep.subr.mxu0 0.0
        %3759 = vmatpush1.msra.mxu0 %v3729
        %3760 = vmatprep.subr.mxu0 0.0
        %3761 = vmatpush1.msra.mxu0 0.0
        %3762 = vmatprep.subr.mxu0 0.0
        %3763 = vmatpush1.msra.mxu0 0.0
        %3764 = vmatprep.subr.mxu0 0.0
        %3765 = vmatpush1.msra.mxu0 0.0
        %3766 = vmatprep.subr.mxu0 0.0
        %3767 = vmatpush1.msra.mxu0 0.0
        %3768 = vmatprep.subr.mxu0 0.0
        %3769 = vmatpush1.msra.mxu0 0.0
        %3770 = vmatprep.subr.mxu0 0.0
        %3771 = vmatpush1.msra.mxu0 0.0
        %3772 = vmatprep.subr.mxu0 0.0
        %3773 = vmatpush1.msra.mxu0 0.0
        %3774 = vmatprep.subr.mxu0 0.0
        %3775 = vmatpush1.msra.mxu0 0.0
        %3776 = vmatprep.subr.mxu0 0.0
        %3777 = vmatpush1.msra.mxu0 0.0
        %3778 = vmatprep.subr.mxu0 0.0
        %3779 = vmatpush1.msra.mxu0 0.0
        %3780 = vmatprep.subr.mxu0 0.0
        %3781 = vmatpush1.msra.mxu0 0.0
        %3782 = vmatprep.subr.mxu0 0.0
        %3783 = vmatpush1.msra.mxu0 0.0
        %3784 = vmatprep.subr.mxu0 0.0
        %3785 = vmatpush1.msra.mxu0 0.0
        %3786 = vmatprep.subr.mxu0 0.0
        %3787 = vmatpush1.msra.mxu0 0.0
        %3788 = vmatprep.subr.mxu0 0.0
        %3789 = vmatpush1.msra.mxu0 0.0
        %3790 = vmatprep.subr.mxu0 0.0
        %3791 = vmatpush1.msra.mxu0 0.0
        %3792 = vmatprep.subr.mxu0 0.0
        %3793 = vmatpush1.msra.mxu0 0.0
        %3794 = vmatprep.mubr.f32.mxu0 0.0
        %3795 = vmatmul.mubr.f32.gmra.mrb[0].mxu0 %v3570
        %v3796 = vpop.f32.mrb[0].mxu0
        %v3797 = vadd.f32 0.0, %v3796
        %v3798 = vpop.f32.mrb[0].mxu0
        %3799 = vmatprep.mubr.f32.mxu0 0.0
        %3800 = vmatmul.mubr.f32.gmra.mrb[0].mxu0 %v3573
        %v3801 = vpop.f32.mrb[0].mxu0
        %v3802 = vadd.f32 0.0, %v3801
        %v3803 = vpop.f32.mrb[0].mxu0
        %3804 = vmatprep.mubr.f32.mxu0 0.0
        %3805 = vmatmul.mubr.f32.gmra.mrb[0].mxu0 %v3576
        %v3806 = vpop.f32.mrb[0].mxu0
        %v3807 = vadd.f32 0.0, %v3806
        %v3808 = vpop.f32.mrb[0].mxu0
        %3809 = vmatprep.mubr.f32.mxu0 0.0
        %3810 = vmatmul.mubr.f32.gmra.mrb[0].mxu0 %v3579
        %v3811 = vpop.f32.mrb[0].mxu0
        %v3812 = vadd.f32 0.0, %v3811
        %v3813 = vpop.f32.mrb[0].mxu0
        %3814 = vmatprep.mubr.f32.mxu0 0.0
        %3815 = vmatmul.mubr.f32.gmra.mrb[0].mxu0 %v3582
        %v3816 = vpop.f32.mrb[0].mxu0
        %v3817 = vadd.f32 0.0, %v3816
        %v3818 = vpop.f32.mrb[0].mxu0
        %3819 = vmatprep.mubr.f32.mxu0 0.0
        %3820 = vmatmul.mubr.f32.gmra.mrb[0].mxu0 %v3585
        %v3821 = vpop.f32.mrb[0].mxu0
        %v3822 = vadd.f32 0.0, %v3821
        %v3823 = vpop.f32.mrb[0].mxu0
        %3824 = vmatprep.mubr.f32.mxu0 0.0
        %3825 = vmatmul.mubr.f32.gmra.mrb[0].mxu0 %v3588
        %v3826 = vpop.f32.mrb[0].mxu0
        %v3827 = vadd.f32 0.0, %v3826
        %v3828 = vpop.f32.mrb[0].mxu0
        %3829 = vmatprep.mubr.f32.mxu0 0.0
        %3830 = vmatmul.mubr.f32.gmra.mrb[0].mxu0 %v3591
        %v3831 = vpop.f32.mrb[0].mxu0
        %v3832 = vadd.f32 0.0, %v3831
        %v3833 = vpop.f32.mrb[0].mxu0
        %3834 = vmatprep.mubr.f32.mxu0 0.0
        %3835 = vmatmul.mubr.f32.gmra.mrb[0].mxu0 %v3594
        %v3836 = vpop.f32.mrb[0].mxu0
        %v3837 = vadd.f32 0.0, %v3836
        %v3838 = vpop.f32.mrb[0].mxu0
        %3839 = vmatprep.mubr.f32.mxu0 0.0
        %3840 = vmatmul.mubr.f32.gmra.mrb[0].mxu0 %v3597
        %v3841 = vpop.f32.mrb[0].mxu0
        %v3842 = vadd.f32 0.0, %v3841
        %v3843 = vpop.f32.mrb[0].mxu0
        %3844 = vdwg.mxu0
        %v3845 = vmax.f32 %v3666, %v3797
        %v3846 = vmax.f32 %v3671, %v3802
        %v3847 = vmax.f32 %v3676, %v3807
        %v3848 = vmax.f32 %v3681, %v3812
        %v3849 = vmax.f32 %v3686, %v3817
        %v3850 = vmax.f32 %v3691, %v3822
        %v3851 = vmax.f32 %v3696, %v3827
        %v3852 = vmax.f32 %v3701, %v3832
        %v3853 = vmax.f32 %v3706, %v3837
        %v3854 = vmax.f32 %v3711, %v3842
        %v3855 = vld [vmem:[#allocation2] sm:$0xff]
        %v3856 = vld [vmem:[#allocation2 + $0x8] sm:$0xff]
        %v3857 = vld [vmem:[#allocation2 + $0x10] sm:$0xff]
        %v3858 = vld [vmem:[#allocation2 + $0x18] sm:$0xff]
        %v3859 = vld [vmem:[#allocation2 + $0x20] sm:$0xff]
        %vm3860 = vcmask 654336
        %v3862 = vsel %vm3860, %v3855, 0
        %v3865 = vsel %vm3860, %v3856, 0
        %v3868 = vsel %vm3860, %v3857, 0
        %v3871 = vsel %vm3860, %v3858, 0
        %v3874 = vsel %vm3860, %v3859, 0
        %3876 = vmatprep.subr.mxu0 0.0
        %3877 = vmatpush1.msra.mxu0 %v3845
        %3878 = vmatprep.subr.mxu0 0.0
        %3879 = vmatpush1.msra.mxu0 %v3846
        %3880 = vmatprep.subr.mxu0 0.0
        %3881 = vmatpush1.msra.mxu0 %v3847
        %3882 = vmatprep.subr.mxu0 0.0
        %3883 = vmatpush1.msra.mxu0 %v3848
        %3884 = vmatprep.subr.mxu0 0.0
        %3885 = vmatpush1.msra.mxu0 %v3849
        %3886 = vmatprep.subr.mxu0 0.0
        %3887 = vmatpush1.msra.mxu0 %v3850
        %3888 = vmatprep.subr.mxu0 0.0
        %3889 = vmatpush1.msra.mxu0 %v3851
        %3890 = vmatprep.subr.mxu0 0.0
        %3891 = vmatpush1.msra.mxu0 %v3852
        %3892 = vmatprep.subr.mxu0 0.0
        %3893 = vmatpush1.msra.mxu0 %v3853
        %3894 = vmatprep.subr.mxu0 0.0
        %3895 = vmatpush1.msra.mxu0 %v3854
        %3896 = vmatprep.subr.mxu0 0.0
        %3897 = vmatpush1.msra.mxu0 0.0
        %3898 = vmatprep.subr.mxu0 0.0
        %3899 = vmatpush1.msra.mxu0 0.0
        %3900 = vmatprep.subr.mxu0 0.0
        %3901 = vmatpush1.msra.mxu0 0.0
        %3902 = vmatprep.subr.mxu0 0.0
        %3903 = vmatpush1.msra.mxu0 0.0
        %3904 = vmatprep.subr.mxu0 0.0
        %3905 = vmatpush1.msra.mxu0 0.0
        %3906 = vmatprep.subr.mxu0 0.0
        %3907 = vmatpush1.msra.mxu0 0.0
        %3908 = vmatprep.subr.mxu0 0.0
        %3909 = vmatpush1.msra.mxu0 0.0
        %3910 = vmatprep.subr.mxu0 0.0
        %3911 = vmatpush1.msra.mxu0 0.0
        %3912 = vmatprep.subr.mxu0 0.0
        %3913 = vmatpush1.msra.mxu0 0.0
        %3914 = vmatprep.subr.mxu0 0.0
        %3915 = vmatpush1.msra.mxu0 0.0
        %3916 = vmatprep.subr.mxu0 0.0
        %3917 = vmatpush1.msra.mxu0 0.0
        %3918 = vmatprep.subr.mxu0 0.0
        %3919 = vmatpush1.msra.mxu0 0.0
        %3920 = vmatprep.subr.mxu0 0.0
        %3921 = vmatpush1.msra.mxu0 0.0
        %3922 = vmatprep.subr.mxu0 0.0
        %3923 = vmatpush1.msra.mxu0 0.0
        %3924 = vmatprep.subr.mxu0 0.0
        %3925 = vmatpush1.msra.mxu0 0.0
        %3926 = vmatprep.subr.mxu0 0.0
        %3927 = vmatpush1.msra.mxu0 0.0
        %3928 = vmatprep.subr.mxu0 0.0
        %3929 = vmatpush1.msra.mxu0 0.0
        %3930 = vmatprep.subr.mxu0 0.0
        %3931 = vmatpush1.msra.mxu0 0.0
        %3932 = vmatprep.subr.mxu0 0.0
        %3933 = vmatpush1.msra.mxu0 0.0
        %3934 = vmatprep.subr.mxu0 0.0
        %3935 = vmatpush1.msra.mxu0 0.0
        %3936 = vmatprep.subr.mxu0 0.0
        %3937 = vmatpush1.msra.mxu0 0.0
        %3938 = vmatprep.subr.mxu0 0.0
        %3939 = vmatpush1.msra.mxu0 0.0
        %3940 = vmatprep.mubr.f32.mxu0 0.0
        %3941 = vmatmul.mubr.f32.gmra.mrb[0].mxu0 %v3862
        %v3942 = vpop.f32.mrb[0].mxu0
        %v3943 = vadd.f32 0.0, %v3942
        %v3944 = vpop.f32.mrb[0].mxu0
        %3945 = vmatprep.mubr.f32.mxu0 0.0
        %3946 = vmatmul.mubr.f32.gmra.mrb[0].mxu0 %v3865
        %v3947 = vpop.f32.mrb[0].mxu0
        %v3948 = vadd.f32 0.0, %v3947
        %v3949 = vpop.f32.mrb[0].mxu0
        %3950 = vmatprep.mubr.f32.mxu0 0.0
        %3951 = vmatmul.mubr.f32.gmra.mrb[0].mxu0 %v3868
        %v3952 = vpop.f32.mrb[0].mxu0
        %v3953 = vadd.f32 0.0, %v3952
        %v3954 = vpop.f32.mrb[0].mxu0
        %3955 = vmatprep.mubr.f32.mxu0 0.0
        %3956 = vmatmul.mubr.f32.gmra.mrb[0].mxu0 %v3871
        %v3957 = vpop.f32.mrb[0].mxu0
        %v3958 = vadd.f32 0.0, %v3957
        %v3959 = vpop.f32.mrb[0].mxu0
        %3960 = vmatprep.mubr.f32.mxu0 0.0
        %3961 = vmatmul.mubr.f32.gmra.mrb[0].mxu0 %v3874
        %v3962 = vpop.f32.mrb[0].mxu0
        %v3963 = vadd.f32 0.0, %v3962
        %v3964 = vpop.f32.mrb[0].mxu0
        %3965 = vdwg.mxu0
        %s3966 = scalar_lea.vmem [#allocation2], 40
        %v3967 = vld [vmem:[%s3966] sm:$0xff]
        %v3968 = vld [vmem:[%s3966 + $0x8] sm:$0xff]
        %v3969 = vld [vmem:[%s3966 + $0x10] sm:$0xff]
        %v3970 = vld [vmem:[%s3966 + $0x18] sm:$0xff]
        %v3971 = vld [vmem:[%s3966 + $0x20] sm:$0xff]
        %v3973 = vsel %vm3860, %v3967, 0
        %v3976 = vsel %vm3860, %v3968, 0
        %v3979 = vsel %vm3860, %v3969, 0
        %v3982 = vsel %vm3860, %v3970, 0
        %v3985 = vsel %vm3860, %v3971, 0
        %3987 = vmatprep.subr.mxu0 0.0
        %3988 = vmatpush1.msra.mxu0 %v3845
        %3989 = vmatprep.subr.mxu0 0.0
        %3990 = vmatpush1.msra.mxu0 %v3846
        %3991 = vmatprep.subr.mxu0 0.0
        %3992 = vmatpush1.msra.mxu0 %v3847
        %3993 = vmatprep.subr.mxu0 0.0
        %3994 = vmatpush1.msra.mxu0 %v3848
        %3995 = vmatprep.subr.mxu0 0.0
        %3996 = vmatpush1.msra.mxu0 %v3849
        %3997 = vmatprep.subr.mxu0 0.0
        %3998 = vmatpush1.msra.mxu0 %v3850
        %3999 = vmatprep.subr.mxu0 0.0
        %4000 = vmatpush1.msra.mxu0 %v3851
        %4001 = vmatprep.subr.mxu0 0.0
        %4002 = vmatpush1.msra.mxu0 %v3852
        %4003 = vmatprep.subr.mxu0 0.0
        %4004 = vmatpush1.msra.mxu0 %v3853
        %4005 = vmatprep.subr.mxu0 0.0
        %4006 = vmatpush1.msra.mxu0 %v3854
        %4007 = vmatprep.subr.mxu0 0.0
        %4008 = vmatpush1.msra.mxu0 0.0
        %4009 = vmatprep.subr.mxu0 0.0
        %4010 = vmatpush1.msra.mxu0 0.0
        %4011 = vmatprep.subr.mxu0 0.0
        %4012 = vmatpush1.msra.mxu0 0.0
        %4013 = vmatprep.subr.mxu0 0.0
        %4014 = vmatpush1.msra.mxu0 0.0
        %4015 = vmatprep.subr.mxu0 0.0
        %4016 = vmatpush1.msra.mxu0 0.0
        %4017 = vmatprep.subr.mxu0 0.0
        %4018 = vmatpush1.msra.mxu0 0.0
        %4019 = vmatprep.subr.mxu0 0.0
        %4020 = vmatpush1.msra.mxu0 0.0
        %4021 = vmatprep.subr.mxu0 0.0
        %4022 = vmatpush1.msra.mxu0 0.0
        %4023 = vmatprep.subr.mxu0 0.0
        %4024 = vmatpush1.msra.mxu0 0.0
        %4025 = vmatprep.subr.mxu0 0.0
        %4026 = vmatpush1.msra.mxu0 0.0
        %4027 = vmatprep.subr.mxu0 0.0
        %4028 = vmatpush1.msra.mxu0 0.0
        %4029 = vmatprep.subr.mxu0 0.0
        %4030 = vmatpush1.msra.mxu0 0.0
        %4031 = vmatprep.subr.mxu0 0.0
        %4032 = vmatpush1.msra.mxu0 0.0
        %4033 = vmatprep.subr.mxu0 0.0
        %4034 = vmatpush1.msra.mxu0 0.0
        %4035 = vmatprep.subr.mxu0 0.0
        %4036 = vmatpush1.msra.mxu0 0.0
        %4037 = vmatprep.subr.mxu0 0.0
        %4038 = vmatpush1.msra.mxu0 0.0
        %4039 = vmatprep.subr.mxu0 0.0
        %4040 = vmatpush1.msra.mxu0 0.0
        %4041 = vmatprep.subr.mxu0 0.0
        %4042 = vmatpush1.msra.mxu0 0.0
        %4043 = vmatprep.subr.mxu0 0.0
        %4044 = vmatpush1.msra.mxu0 0.0
        %4045 = vmatprep.subr.mxu0 0.0
        %4046 = vmatpush1.msra.mxu0 0.0
        %4047 = vmatprep.subr.mxu0 0.0
        %4048 = vmatpush1.msra.mxu0 0.0
        %4049 = vmatprep.subr.mxu0 0.0
        %4050 = vmatpush1.msra.mxu0 0.0
        %4051 = vmatprep.mubr.f32.mxu0 0.0
        %4052 = vmatmul.mubr.f32.gmra.mrb[0].mxu0 %v3973
        %v4053 = vpop.f32.mrb[0].mxu0
        %v4054 = vadd.f32 0.0, %v4053
        %v4055 = vpop.f32.mrb[0].mxu0
        %4056 = vmatprep.mubr.f32.mxu0 0.0
        %4057 = vmatmul.mubr.f32.gmra.mrb[0].mxu0 %v3976
        %v4058 = vpop.f32.mrb[0].mxu0
        %v4059 = vadd.f32 0.0, %v4058
        %v4060 = vpop.f32.mrb[0].mxu0
        %4061 = vmatprep.mubr.f32.mxu0 0.0
        %4062 = vmatmul.mubr.f32.gmra.mrb[0].mxu0 %v3979
        %v4063 = vpop.f32.mrb[0].mxu0
        %v4064 = vadd.f32 0.0, %v4063
        %v4065 = vpop.f32.mrb[0].mxu0
        %4066 = vmatprep.mubr.f32.mxu0 0.0
        %4067 = vmatmul.mubr.f32.gmra.mrb[0].mxu0 %v3982
        %v4068 = vpop.f32.mrb[0].mxu0
        %v4069 = vadd.f32 0.0, %v4068
        %v4070 = vpop.f32.mrb[0].mxu0
        %4071 = vmatprep.mubr.f32.mxu0 0.0
        %4072 = vmatmul.mubr.f32.gmra.mrb[0].mxu0 %v3985
        %v4073 = vpop.f32.mrb[0].mxu0
        %v4074 = vadd.f32 0.0, %v4073
        %v4075 = vpop.f32.mrb[0].mxu0
        %4076 = vdwg.mxu0
        %v4077 = vmax.f32 %v3943, %v4054
        %v4078 = vmax.f32 %v3948, %v4059
        %v4079 = vmax.f32 %v3953, %v4064
        %v4080 = vmax.f32 %v3958, %v4069
        %v4081 = vmax.f32 %v3963, %v4074
        %v4082 = vld [vmem:[%s9] sm:$0xff]
        %v4083 = vld [vmem:[%s9 + $0x8] sm:$0xff]
        %v4084 = vld [vmem:[%s9 + $0x10] sm:$0xff]
        %v4085 = vld [vmem:[%s9 + $0x18] sm:$0xff]
        %v4086 = vld [vmem:[%s9 + $0x20] sm:$0xff]
        %v4087 = vld [vmem:[%s9 + $0x28] sm:$0xff]
        %v4088 = vld [vmem:[%s9 + $0x30] sm:$0xff]
        %v4089 = vld [vmem:[%s9 + $0x38] sm:$0xff]
        %v4090 = vld [vmem:[%s9 + $0x40] sm:$0xff]
        %v4091 = vld [vmem:[%s9 + $0x48] sm:$0xff]
        %v4092 = vld [vmem:[%s9 + $0x50] sm:$0xff]
        %v4093 = vld [vmem:[%s9 + $0x58] sm:$0xff]
        %v4094 = vld [vmem:[%s9 + $0x60] sm:$0xff]
        %v4095 = vld [vmem:[%s9 + $0x68] sm:$0xff]
        %v4096 = vld [vmem:[%s9 + $0x70] sm:$0xf]
        %v4097 = vld [vmem:[%s9 + $0x78] sm:$0xf]
        %s4098 = scalar_lea.vmem %s9, 128
        %v4099 = vld [vmem:[%s4098] sm:$0xff]
        %v4100 = vld [vmem:[%s4098 + $0x8] sm:$0xff]
        %v4101 = vld [vmem:[%s4098 + $0x10] sm:$0xff]
        %v4102 = vld [vmem:[%s4098 + $0x18] sm:$0xff]
        %v4103 = vld [vmem:[%s4098 + $0x20] sm:$0xff]
        %v4104 = vld [vmem:[%s4098 + $0x28] sm:$0xff]
        %v4105 = vld [vmem:[%s4098 + $0x30] sm:$0xff]
        %v4106 = vld [vmem:[%s4098 + $0x38] sm:$0xff]
        %v4107 = vld [vmem:[%s4098 + $0x40] sm:$0xff]
        %v4108 = vld [vmem:[%s4098 + $0x48] sm:$0xff]
        %v4109 = vld [vmem:[%s4098 + $0x50] sm:$0xff]
        %v4110 = vld [vmem:[%s4098 + $0x58] sm:$0xff]
        %v4111 = vld [vmem:[%s4098 + $0x60] sm:$0xff]
        %v4112 = vld [vmem:[%s4098 + $0x68] sm:$0xff]
        %v4113 = vld [vmem:[%s4098 + $0x70] sm:$0xf]
        %v4114 = vld [vmem:[%s4098 + $0x78] sm:$0xf]
        %vm4115 = vcmask 490496
        %v4117 = vsel %vm4115, %v4078, 0
        %v4120 = vsel %vm571, %v4113, 0
        %v4123 = vsel %vm571, %v4114, 0
        %4125 = vmatprep.subr.mxu0 %v4100
        %4126 = vmatpush1.msra.mxu0 %v4099
        %4127 = vmatprep.subr.mxu0 %v4102
        %4128 = vmatpush1.msra.mxu0 %v4101
        %4129 = vmatprep.subr.mxu0 %v4104
        %4130 = vmatpush1.msra.mxu0 %v4103
        %4131 = vmatprep.subr.mxu0 %v4106
        %4132 = vmatpush1.msra.mxu0 %v4105
        %4133 = vmatprep.subr.mxu0 %v4108
        %4134 = vmatpush1.msra.mxu0 %v4107
        %4135 = vmatprep.subr.mxu0 %v4110
        %4136 = vmatpush1.msra.mxu0 %v4109
        %4137 = vmatprep.subr.mxu0 %v4112
        %4138 = vmatpush1.msra.mxu0 %v4111
        %4139 = vmatprep.subr.mxu0 %v4123
        %4140 = vmatpush1.msra.mxu0 %v4120
        %4141 = vmatprep.subr.mxu0 0.0
        %4142 = vmatpush1.msra.mxu0 0.0
        %4143 = vmatprep.subr.mxu0 0.0
        %4144 = vmatpush1.msra.mxu0 0.0
        %4145 = vmatprep.subr.mxu0 0.0
        %4146 = vmatpush1.msra.mxu0 0.0
        %4147 = vmatprep.subr.mxu0 0.0
        %4148 = vmatpush1.msra.mxu0 0.0
        %4149 = vmatprep.subr.mxu0 0.0
        %4150 = vmatpush1.msra.mxu0 0.0
        %4151 = vmatprep.subr.mxu0 0.0
        %4152 = vmatpush1.msra.mxu0 0.0
        %4153 = vmatprep.subr.mxu0 0.0
        %4154 = vmatpush1.msra.mxu0 0.0
        %4155 = vmatprep.subr.mxu0 0.0
        %4156 = vmatpush1.msra.mxu0 0.0
        %4157 = vmatprep.subr.mxu0 0.0
        %4158 = vmatpush1.msra.mxu0 0.0
        %4159 = vmatprep.subr.mxu0 0.0
        %4160 = vmatpush1.msra.mxu0 0.0
        %4161 = vmatprep.subr.mxu0 0.0
        %4162 = vmatpush1.msra.mxu0 0.0
        %4163 = vmatprep.subr.mxu0 0.0
        %4164 = vmatpush1.msra.mxu0 0.0
        %4165 = vmatprep.subr.mxu0 0.0
        %4166 = vmatpush1.msra.mxu0 0.0
        %4167 = vmatprep.subr.mxu0 0.0
        %4168 = vmatpush1.msra.mxu0 0.0
        %4169 = vmatprep.subr.mxu0 0.0
        %4170 = vmatpush1.msra.mxu0 0.0
        %4171 = vmatprep.subr.mxu0 0.0
        %4172 = vmatpush1.msra.mxu0 0.0
        %4173 = vmatprep.subr.mxu0 0.0
        %4174 = vmatpush1.msra.mxu0 0.0
        %4175 = vmatprep.subr.mxu0 0.0
        %4176 = vmatpush1.msra.mxu0 0.0
        %4177 = vmatprep.subr.mxu0 0.0
        %4178 = vmatpush1.msra.mxu0 0.0
        %4179 = vmatprep.subr.mxu0 0.0
        %4180 = vmatpush1.msra.mxu0 0.0
        %4181 = vmatprep.subr.mxu0 0.0
        %4182 = vmatpush1.msra.mxu0 0.0
        %4183 = vmatprep.subr.mxu0 0.0
        %4184 = vmatpush1.msra.mxu0 0.0
        %4185 = vmatprep.subr.mxu0 0.0
        %4186 = vmatpush1.msra.mxu0 0.0
        %4187 = vmatprep.subr.mxu0 0.0
        %4188 = vmatpush1.msra.mxu0 0.0
        %4189 = vmatprep.mubr.f32.mxu0 0.0
        %4190 = vmatmul.mubr.f32.gmra.mrb[0].mxu0 %v4117
        %v4191 = vpop.f32.mrb[0].mxu0
        %v4192 = vadd.f32 0.0, %v4191
        %v4193 = vpop.f32.mrb[0].mxu0
        %v4194 = vadd.f32 0.0, %v4193
        %4195 = vdwg.mxu0
        %v4197 = vsel %vm4115, %v4077, 0
        %v4200 = vsel %vm571, %v4096, 0
        %v4203 = vsel %vm571, %v4097, 0
        %4205 = vmatprep.subr.mxu0 %v4083
        %4206 = vmatpush1.msra.mxu0 %v4082
        %4207 = vmatprep.subr.mxu0 %v4085
        %4208 = vmatpush1.msra.mxu0 %v4084
        %4209 = vmatprep.subr.mxu0 %v4087
        %4210 = vmatpush1.msra.mxu0 %v4086
        %4211 = vmatprep.subr.mxu0 %v4089
        %4212 = vmatpush1.msra.mxu0 %v4088
        %4213 = vmatprep.subr.mxu0 %v4091
        %4214 = vmatpush1.msra.mxu0 %v4090
        %4215 = vmatprep.subr.mxu0 %v4093
        %4216 = vmatpush1.msra.mxu0 %v4092
        %4217 = vmatprep.subr.mxu0 %v4095
        %4218 = vmatpush1.msra.mxu0 %v4094
        %4219 = vmatprep.subr.mxu0 %v4203
        %4220 = vmatpush1.msra.mxu0 %v4200
        %4221 = vmatprep.subr.mxu0 0.0
        %4222 = vmatpush1.msra.mxu0 0.0
        %4223 = vmatprep.subr.mxu0 0.0
        %4224 = vmatpush1.msra.mxu0 0.0
        %4225 = vmatprep.subr.mxu0 0.0
        %4226 = vmatpush1.msra.mxu0 0.0
        %4227 = vmatprep.subr.mxu0 0.0
        %4228 = vmatpush1.msra.mxu0 0.0
        %4229 = vmatprep.subr.mxu0 0.0
        %4230 = vmatpush1.msra.mxu0 0.0
        %4231 = vmatprep.subr.mxu0 0.0
        %4232 = vmatpush1.msra.mxu0 0.0
        %4233 = vmatprep.subr.mxu0 0.0
        %4234 = vmatpush1.msra.mxu0 0.0
        %4235 = vmatprep.subr.mxu0 0.0
        %4236 = vmatpush1.msra.mxu0 0.0
        %4237 = vmatprep.subr.mxu0 0.0
        %4238 = vmatpush1.msra.mxu0 0.0
        %4239 = vmatprep.subr.mxu0 0.0
        %4240 = vmatpush1.msra.mxu0 0.0
        %4241 = vmatprep.subr.mxu0 0.0
        %4242 = vmatpush1.msra.mxu0 0.0
        %4243 = vmatprep.subr.mxu0 0.0
        %4244 = vmatpush1.msra.mxu0 0.0
        %4245 = vmatprep.subr.mxu0 0.0
        %4246 = vmatpush1.msra.mxu0 0.0
        %4247 = vmatprep.subr.mxu0 0.0
        %4248 = vmatpush1.msra.mxu0 0.0
        %4249 = vmatprep.subr.mxu0 0.0
        %4250 = vmatpush1.msra.mxu0 0.0
        %4251 = vmatprep.subr.mxu0 0.0
        %4252 = vmatpush1.msra.mxu0 0.0
        %4253 = vmatprep.subr.mxu0 0.0
        %4254 = vmatpush1.msra.mxu0 0.0
        %4255 = vmatprep.subr.mxu0 0.0
        %4256 = vmatpush1.msra.mxu0 0.0
        %4257 = vmatprep.subr.mxu0 0.0
        %4258 = vmatpush1.msra.mxu0 0.0
        %4259 = vmatprep.subr.mxu0 0.0
        %4260 = vmatpush1.msra.mxu0 0.0
        %4261 = vmatprep.subr.mxu0 0.0
        %4262 = vmatpush1.msra.mxu0 0.0
        %4263 = vmatprep.subr.mxu0 0.0
        %4264 = vmatpush1.msra.mxu0 0.0
        %4265 = vmatprep.subr.mxu0 0.0
        %4266 = vmatpush1.msra.mxu0 0.0
        %4267 = vmatprep.subr.mxu0 0.0
        %4268 = vmatpush1.msra.mxu0 0.0
        %4269 = vmatprep.mubr.f32.mxu0 0.0
        %4270 = vmatmul.mubr.f32.gmra.mrb[0].mxu0 %v4197
        %v4271 = vpop.f32.mrb[0].mxu0
        %v4272 = vadd.f32 %v4192, %v4271
        %v4273 = vpop.f32.mrb[0].mxu0
        %v4274 = vadd.f32 %v4194, %v4273
        %4275 = vdwg.mxu0
        %s4276 = scalar_lea.vmem %s9, 256
        %v4277 = vld [vmem:[%s4276] sm:$0xff]
        %v4278 = vld [vmem:[%s4276 + $0x8] sm:$0xff]
        %v4279 = vld [vmem:[%s4276 + $0x10] sm:$0xff]
        %v4280 = vld [vmem:[%s4276 + $0x18] sm:$0xff]
        %v4281 = vld [vmem:[%s4276 + $0x20] sm:$0xff]
        %v4282 = vld [vmem:[%s4276 + $0x28] sm:$0xff]
        %v4283 = vld [vmem:[%s4276 + $0x30] sm:$0xff]
        %v4284 = vld [vmem:[%s4276 + $0x38] sm:$0xff]
        %v4285 = vld [vmem:[%s4276 + $0x40] sm:$0xff]
        %v4286 = vld [vmem:[%s4276 + $0x48] sm:$0xff]
        %v4287 = vld [vmem:[%s4276 + $0x50] sm:$0xff]
        %v4288 = vld [vmem:[%s4276 + $0x58] sm:$0xff]
        %v4289 = vld [vmem:[%s4276 + $0x60] sm:$0xff]
        %v4290 = vld [vmem:[%s4276 + $0x68] sm:$0xff]
        %v4291 = vld [vmem:[%s4276 + $0x70] sm:$0xf]
        %v4292 = vld [vmem:[%s4276 + $0x78] sm:$0xf]
        %v4294 = vsel %vm4115, %v4079, 0
        %v4297 = vsel %vm571, %v4291, 0
        %v4300 = vsel %vm571, %v4292, 0
        %4302 = vmatprep.subr.mxu0 %v4278
        %4303 = vmatpush1.msra.mxu0 %v4277
        %4304 = vmatprep.subr.mxu0 %v4280
        %4305 = vmatpush1.msra.mxu0 %v4279
        %4306 = vmatprep.subr.mxu0 %v4282
        %4307 = vmatpush1.msra.mxu0 %v4281
        %4308 = vmatprep.subr.mxu0 %v4284
        %4309 = vmatpush1.msra.mxu0 %v4283
        %4310 = vmatprep.subr.mxu0 %v4286
        %4311 = vmatpush1.msra.mxu0 %v4285
        %4312 = vmatprep.subr.mxu0 %v4288
        %4313 = vmatpush1.msra.mxu0 %v4287
        %4314 = vmatprep.subr.mxu0 %v4290
        %4315 = vmatpush1.msra.mxu0 %v4289
        %4316 = vmatprep.subr.mxu0 %v4300
        %4317 = vmatpush1.msra.mxu0 %v4297
        %4318 = vmatprep.subr.mxu0 0.0
        %4319 = vmatpush1.msra.mxu0 0.0
        %4320 = vmatprep.subr.mxu0 0.0
        %4321 = vmatpush1.msra.mxu0 0.0
        %4322 = vmatprep.subr.mxu0 0.0
        %4323 = vmatpush1.msra.mxu0 0.0
        %4324 = vmatprep.subr.mxu0 0.0
        %4325 = vmatpush1.msra.mxu0 0.0
        %4326 = vmatprep.subr.mxu0 0.0
        %4327 = vmatpush1.msra.mxu0 0.0
        %4328 = vmatprep.subr.mxu0 0.0
        %4329 = vmatpush1.msra.mxu0 0.0
        %4330 = vmatprep.subr.mxu0 0.0
        %4331 = vmatpush1.msra.mxu0 0.0
        %4332 = vmatprep.subr.mxu0 0.0
        %4333 = vmatpush1.msra.mxu0 0.0
        %4334 = vmatprep.subr.mxu0 0.0
        %4335 = vmatpush1.msra.mxu0 0.0
        %4336 = vmatprep.subr.mxu0 0.0
        %4337 = vmatpush1.msra.mxu0 0.0
        %4338 = vmatprep.subr.mxu0 0.0
        %4339 = vmatpush1.msra.mxu0 0.0
        %4340 = vmatprep.subr.mxu0 0.0
        %4341 = vmatpush1.msra.mxu0 0.0
        %4342 = vmatprep.subr.mxu0 0.0
        %4343 = vmatpush1.msra.mxu0 0.0
        %4344 = vmatprep.subr.mxu0 0.0
        %4345 = vmatpush1.msra.mxu0 0.0
        %4346 = vmatprep.subr.mxu0 0.0
        %4347 = vmatpush1.msra.mxu0 0.0
        %4348 = vmatprep.subr.mxu0 0.0
        %4349 = vmatpush1.msra.mxu0 0.0
        %4350 = vmatprep.subr.mxu0 0.0
        %4351 = vmatpush1.msra.mxu0 0.0
        %4352 = vmatprep.subr.mxu0 0.0
        %4353 = vmatpush1.msra.mxu0 0.0
        %4354 = vmatprep.subr.mxu0 0.0
        %4355 = vmatpush1.msra.mxu0 0.0
        %4356 = vmatprep.subr.mxu0 0.0
        %4357 = vmatpush1.msra.mxu0 0.0
        %4358 = vmatprep.subr.mxu0 0.0
        %4359 = vmatpush1.msra.mxu0 0.0
        %4360 = vmatprep.subr.mxu0 0.0
        %4361 = vmatpush1.msra.mxu0 0.0
        %4362 = vmatprep.subr.mxu0 0.0
        %4363 = vmatpush1.msra.mxu0 0.0
        %4364 = vmatprep.subr.mxu0 0.0
        %4365 = vmatpush1.msra.mxu0 0.0
        %4366 = vmatprep.mubr.f32.mxu0 0.0
        %4367 = vmatmul.mubr.f32.gmra.mrb[0].mxu0 %v4294
        %v4368 = vpop.f32.mrb[0].mxu0
        %v4369 = vadd.f32 0.0, %v4368
        %v4370 = vpop.f32.mrb[0].mxu0
        %v4371 = vadd.f32 0.0, %v4370
        %4372 = vdwg.mxu0
        %v4373 = vadd.f32 %v4272, %v4369
        %v4374 = vadd.f32 %v4274, %v4371
        %s4375 = scalar_lea.vmem %s9, 384
        %v4376 = vld [vmem:[%s4375] sm:$0xff]
        %v4377 = vld [vmem:[%s4375 + $0x8] sm:$0xff]
        %v4378 = vld [vmem:[%s4375 + $0x10] sm:$0xff]
        %v4379 = vld [vmem:[%s4375 + $0x18] sm:$0xff]
        %v4380 = vld [vmem:[%s4375 + $0x20] sm:$0xff]
        %v4381 = vld [vmem:[%s4375 + $0x28] sm:$0xff]
        %v4382 = vld [vmem:[%s4375 + $0x30] sm:$0xff]
        %v4383 = vld [vmem:[%s4375 + $0x38] sm:$0xff]
        %v4384 = vld [vmem:[%s4375 + $0x40] sm:$0xff]
        %v4385 = vld [vmem:[%s4375 + $0x48] sm:$0xff]
        %v4386 = vld [vmem:[%s4375 + $0x50] sm:$0xff]
        %v4387 = vld [vmem:[%s4375 + $0x58] sm:$0xff]
        %v4388 = vld [vmem:[%s4375 + $0x60] sm:$0xff]
        %v4389 = vld [vmem:[%s4375 + $0x68] sm:$0xff]
        %v4390 = vld [vmem:[%s4375 + $0x70] sm:$0xf]
        %v4391 = vld [vmem:[%s4375 + $0x78] sm:$0xf]
        %v4393 = vsel %vm4115, %v4080, 0
        %v4396 = vsel %vm571, %v4390, 0
        %v4399 = vsel %vm571, %v4391, 0
        %4401 = vmatprep.subr.mxu0 %v4377
        %4402 = vmatpush1.msra.mxu0 %v4376
        %4403 = vmatprep.subr.mxu0 %v4379
        %4404 = vmatpush1.msra.mxu0 %v4378
        %4405 = vmatprep.subr.mxu0 %v4381
        %4406 = vmatpush1.msra.mxu0 %v4380
        %4407 = vmatprep.subr.mxu0 %v4383
        %4408 = vmatpush1.msra.mxu0 %v4382
        %4409 = vmatprep.subr.mxu0 %v4385
        %4410 = vmatpush1.msra.mxu0 %v4384
        %4411 = vmatprep.subr.mxu0 %v4387
        %4412 = vmatpush1.msra.mxu0 %v4386
        %4413 = vmatprep.subr.mxu0 %v4389
        %4414 = vmatpush1.msra.mxu0 %v4388
        %4415 = vmatprep.subr.mxu0 %v4399
        %4416 = vmatpush1.msra.mxu0 %v4396
        %4417 = vmatprep.subr.mxu0 0.0
        %4418 = vmatpush1.msra.mxu0 0.0
        %4419 = vmatprep.subr.mxu0 0.0
        %4420 = vmatpush1.msra.mxu0 0.0
        %4421 = vmatprep.subr.mxu0 0.0
        %4422 = vmatpush1.msra.mxu0 0.0
        %4423 = vmatprep.subr.mxu0 0.0
        %4424 = vmatpush1.msra.mxu0 0.0
        %4425 = vmatprep.subr.mxu0 0.0
        %4426 = vmatpush1.msra.mxu0 0.0
        %4427 = vmatprep.subr.mxu0 0.0
        %4428 = vmatpush1.msra.mxu0 0.0
        %4429 = vmatprep.subr.mxu0 0.0
        %4430 = vmatpush1.msra.mxu0 0.0
        %4431 = vmatprep.subr.mxu0 0.0
        %4432 = vmatpush1.msra.mxu0 0.0
        %4433 = vmatprep.subr.mxu0 0.0
        %4434 = vmatpush1.msra.mxu0 0.0
        %4435 = vmatprep.subr.mxu0 0.0
        %4436 = vmatpush1.msra.mxu0 0.0
        %4437 = vmatprep.subr.mxu0 0.0
        %4438 = vmatpush1.msra.mxu0 0.0
        %4439 = vmatprep.subr.mxu0 0.0
        %4440 = vmatpush1.msra.mxu0 0.0
        %4441 = vmatprep.subr.mxu0 0.0
        %4442 = vmatpush1.msra.mxu0 0.0
        %4443 = vmatprep.subr.mxu0 0.0
        %4444 = vmatpush1.msra.mxu0 0.0
        %4445 = vmatprep.subr.mxu0 0.0
        %4446 = vmatpush1.msra.mxu0 0.0
        %4447 = vmatprep.subr.mxu0 0.0
        %4448 = vmatpush1.msra.mxu0 0.0
        %4449 = vmatprep.subr.mxu0 0.0
        %4450 = vmatpush1.msra.mxu0 0.0
        %4451 = vmatprep.subr.mxu0 0.0
        %4452 = vmatpush1.msra.mxu0 0.0
        %4453 = vmatprep.subr.mxu0 0.0
        %4454 = vmatpush1.msra.mxu0 0.0
        %4455 = vmatprep.subr.mxu0 0.0
        %4456 = vmatpush1.msra.mxu0 0.0
        %4457 = vmatprep.subr.mxu0 0.0
        %4458 = vmatpush1.msra.mxu0 0.0
        %4459 = vmatprep.subr.mxu0 0.0
        %4460 = vmatpush1.msra.mxu0 0.0
        %4461 = vmatprep.subr.mxu0 0.0
        %4462 = vmatpush1.msra.mxu0 0.0
        %4463 = vmatprep.subr.mxu0 0.0
        %4464 = vmatpush1.msra.mxu0 0.0
        %4465 = vmatprep.mubr.f32.mxu0 0.0
        %4466 = vmatmul.mubr.f32.gmra.mrb[0].mxu0 %v4393
        %v4467 = vpop.f32.mrb[0].mxu0
        %v4468 = vadd.f32 0.0, %v4467
        %v4469 = vpop.f32.mrb[0].mxu0
        %v4470 = vadd.f32 0.0, %v4469
        %4471 = vdwg.mxu0
        %v4472 = vadd.f32 %v4373, %v4468
        %v4473 = vadd.f32 %v4374, %v4470
        %s4474 = scalar_lea.vmem %s9, 512
        %v4475 = vld [vmem:[%s4474] sm:$0xff]
        %v4476 = vld [vmem:[%s4474 + $0x8] sm:$0xff]
        %v4477 = vld [vmem:[%s4474 + $0x10] sm:$0xff]
        %v4478 = vld [vmem:[%s4474 + $0x18] sm:$0xff]
        %v4479 = vld [vmem:[%s4474 + $0x20] sm:$0xff]
        %v4480 = vld [vmem:[%s4474 + $0x28] sm:$0xff]
        %v4481 = vld [vmem:[%s4474 + $0x30] sm:$0xff]
        %v4482 = vld [vmem:[%s4474 + $0x38] sm:$0xff]
        %v4483 = vld [vmem:[%s4474 + $0x40] sm:$0xff]
        %v4484 = vld [vmem:[%s4474 + $0x48] sm:$0xff]
        %v4485 = vld [vmem:[%s4474 + $0x50] sm:$0xff]
        %v4486 = vld [vmem:[%s4474 + $0x58] sm:$0xff]
        %v4487 = vld [vmem:[%s4474 + $0x60] sm:$0xff]
        %v4488 = vld [vmem:[%s4474 + $0x68] sm:$0xff]
        %v4489 = vld [vmem:[%s4474 + $0x70] sm:$0xf]
        %v4490 = vld [vmem:[%s4474 + $0x78] sm:$0xf]
        %v4492 = vsel %vm4115, %v4081, 0
        %v4495 = vsel %vm571, %v4489, 0
        %v4498 = vsel %vm571, %v4490, 0
        %4500 = vmatprep.subr.mxu0 %v4476
        %4501 = vmatpush1.msra.mxu0 %v4475
        %4502 = vmatprep.subr.mxu0 %v4478
        %4503 = vmatpush1.msra.mxu0 %v4477
        %4504 = vmatprep.subr.mxu0 %v4480
        %4505 = vmatpush1.msra.mxu0 %v4479
        %4506 = vmatprep.subr.mxu0 %v4482
        %4507 = vmatpush1.msra.mxu0 %v4481
        %4508 = vmatprep.subr.mxu0 %v4484
        %4509 = vmatpush1.msra.mxu0 %v4483
        %4510 = vmatprep.subr.mxu0 %v4486
        %4511 = vmatpush1.msra.mxu0 %v4485
        %4512 = vmatprep.subr.mxu0 %v4488
        %4513 = vmatpush1.msra.mxu0 %v4487
        %4514 = vmatprep.subr.mxu0 %v4498
        %4515 = vmatpush1.msra.mxu0 %v4495
        %4516 = vmatprep.subr.mxu0 0.0
        %4517 = vmatpush1.msra.mxu0 0.0
        %4518 = vmatprep.subr.mxu0 0.0
        %4519 = vmatpush1.msra.mxu0 0.0
        %4520 = vmatprep.subr.mxu0 0.0
        %4521 = vmatpush1.msra.mxu0 0.0
        %4522 = vmatprep.subr.mxu0 0.0
        %4523 = vmatpush1.msra.mxu0 0.0
        %4524 = vmatprep.subr.mxu0 0.0
        %4525 = vmatpush1.msra.mxu0 0.0
        %4526 = vmatprep.subr.mxu0 0.0
        %4527 = vmatpush1.msra.mxu0 0.0
        %4528 = vmatprep.subr.mxu0 0.0
        %4529 = vmatpush1.msra.mxu0 0.0
        %4530 = vmatprep.subr.mxu0 0.0
        %4531 = vmatpush1.msra.mxu0 0.0
        %4532 = vmatprep.subr.mxu0 0.0
        %4533 = vmatpush1.msra.mxu0 0.0
        %4534 = vmatprep.subr.mxu0 0.0
        %4535 = vmatpush1.msra.mxu0 0.0
        %4536 = vmatprep.subr.mxu0 0.0
        %4537 = vmatpush1.msra.mxu0 0.0
        %4538 = vmatprep.subr.mxu0 0.0
        %4539 = vmatpush1.msra.mxu0 0.0
        %4540 = vmatprep.subr.mxu0 0.0
        %4541 = vmatpush1.msra.mxu0 0.0
        %4542 = vmatprep.subr.mxu0 0.0
        %4543 = vmatpush1.msra.mxu0 0.0
        %4544 = vmatprep.subr.mxu0 0.0
        %4545 = vmatpush1.msra.mxu0 0.0
        %4546 = vmatprep.subr.mxu0 0.0
        %4547 = vmatpush1.msra.mxu0 0.0
        %4548 = vmatprep.subr.mxu0 0.0
        %4549 = vmatpush1.msra.mxu0 0.0
        %4550 = vmatprep.subr.mxu0 0.0
        %4551 = vmatpush1.msra.mxu0 0.0
        %4552 = vmatprep.subr.mxu0 0.0
        %4553 = vmatpush1.msra.mxu0 0.0
        %4554 = vmatprep.subr.mxu0 0.0
        %4555 = vmatpush1.msra.mxu0 0.0
        %4556 = vmatprep.subr.mxu0 0.0
        %4557 = vmatpush1.msra.mxu0 0.0
        %4558 = vmatprep.subr.mxu0 0.0
        %4559 = vmatpush1.msra.mxu0 0.0
        %4560 = vmatprep.subr.mxu0 0.0
        %4561 = vmatpush1.msra.mxu0 0.0
        %4562 = vmatprep.subr.mxu0 0.0
        %4563 = vmatpush1.msra.mxu0 0.0
        %4564 = vmatprep.mubr.f32.mxu0 0.0
        %4565 = vmatmul.mubr.f32.gmra.mrb[0].mxu0 %v4492
        %v4566 = vpop.f32.mrb[0].mxu0
        %v4567 = vadd.f32 0.0, %v4566
        %v4568 = vpop.f32.mrb[0].mxu0
        %v4569 = vadd.f32 0.0, %v4568
        %4570 = vdwg.mxu0
        %v4571 = vadd.f32 %v4472, %v4567
        %v4572 = vadd.f32 %v4473, %v4569
        %v4573 = vld [vmem:[%s10] sm:$0x3]
        %v4575 = vlaneseq
        %v4576 = vshrl.u32 %v4575, 7
        %v4577 = vsub.s32 0, %v4576
        %v4578 = vrot.slane %v4573, %v4577
        %v4579 = vlaneseq
        %v4580 = vshrl.u32 %v4579, 7
        %v4581 = vsub.s32 1, %v4580
        %v4582 = vrot.slane %v4573, %v4581
        %v4585 = vadd.f32 %v4571, %v4578
        %v4586 = vadd.f32 %v4572, %v4582
        %v4587 = vmax.f32 %v4585, 0.0
        %v4588 = vmax.f32 %v4586, 0.0
        %v4589 = vld [vmem:[%s11] sm:$0xff]
        %v4590 = vld [vmem:[%s11 + $0x8] sm:$0xff]
        %v4591 = vld [vmem:[%s11 + $0x10] sm:$0xff]
        %v4592 = vld [vmem:[%s11 + $0x18] sm:$0xff]
        %v4593 = vld [vmem:[%s11 + $0x20] sm:$0xff]
        %v4594 = vld [vmem:[%s11 + $0x28] sm:$0xff]
        %v4595 = vld [vmem:[%s11 + $0x30] sm:$0xff]
        %v4596 = vld [vmem:[%s11 + $0x38] sm:$0xff]
        %v4597 = vld [vmem:[%s11 + $0x40] sm:$0xff]
        %v4598 = vld [vmem:[%s11 + $0x48] sm:$0xff]
        %v4599 = vld [vmem:[%s11 + $0x50] sm:$0xff]
        %v4600 = vld [vmem:[%s11 + $0x58] sm:$0xff]
        %v4601 = vld [vmem:[%s11 + $0x60] sm:$0xff]
        %v4602 = vld [vmem:[%s11 + $0x68] sm:$0xff]
        %v4603 = vld [vmem:[%s11 + $0x70] sm:$0xff]
        %v4604 = vld [vmem:[%s11 + $0x78] sm:$0xff]
        %v4605 = vld [vmem:[%s11 + $0x80] sm:$0xff]
        %v4606 = vld [vmem:[%s11 + $0x88] sm:$0xff]
        %v4607 = vld [vmem:[%s11 + $0x90] sm:$0x3f]
        %v4608 = vld [vmem:[%s12] sm:$0x1]
        %v4610 = vlaneseq
        %v4611 = vshrl.u32 %v4610, 7
        %v4612 = vsub.s32 0, %v4611
        %v4613 = vrot.slane %v4608, %v4612
        %vm4615 = vcmask 179200
        %v4617 = vsel %vm4615, %v4588, 0
        %vm4619 = vcmask 1045504
        %v4621 = vsel %vm4619, %v4607, 0
        %4623 = vmatprep.subr.mxu0 0.0
        %4624 = vmatpush1.msra.mxu0 %v4589
        %4625 = vmatprep.subr.mxu0 0.0
        %4626 = vmatpush1.msra.mxu0 %v4590
        %4627 = vmatprep.subr.mxu0 0.0
        %4628 = vmatpush1.msra.mxu0 %v4591
        %4629 = vmatprep.subr.mxu0 0.0
        %4630 = vmatpush1.msra.mxu0 %v4592
        %4631 = vmatprep.subr.mxu0 0.0
        %4632 = vmatpush1.msra.mxu0 %v4593
        %4633 = vmatprep.subr.mxu0 0.0
        %4634 = vmatpush1.msra.mxu0 %v4594
        %4635 = vmatprep.subr.mxu0 0.0
        %4636 = vmatpush1.msra.mxu0 %v4595
        %4637 = vmatprep.subr.mxu0 0.0
        %4638 = vmatpush1.msra.mxu0 %v4596
        %4639 = vmatprep.subr.mxu0 0.0
        %4640 = vmatpush1.msra.mxu0 %v4597
        %4641 = vmatprep.subr.mxu0 0.0
        %4642 = vmatpush1.msra.mxu0 %v4598
        %4643 = vmatprep.subr.mxu0 0.0
        %4644 = vmatpush1.msra.mxu0 %v4599
        %4645 = vmatprep.subr.mxu0 0.0
        %4646 = vmatpush1.msra.mxu0 %v4600
        %4647 = vmatprep.subr.mxu0 0.0
        %4648 = vmatpush1.msra.mxu0 %v4601
        %4649 = vmatprep.subr.mxu0 0.0
        %4650 = vmatpush1.msra.mxu0 %v4602
        %4651 = vmatprep.subr.mxu0 0.0
        %4652 = vmatpush1.msra.mxu0 %v4603
        %4653 = vmatprep.subr.mxu0 0.0
        %4654 = vmatpush1.msra.mxu0 %v4604
        %4655 = vmatprep.subr.mxu0 0.0
        %4656 = vmatpush1.msra.mxu0 %v4605
        %4657 = vmatprep.subr.mxu0 0.0
        %4658 = vmatpush1.msra.mxu0 %v4606
        %4659 = vmatprep.subr.mxu0 0.0
        %4660 = vmatpush1.msra.mxu0 %v4621
        %4661 = vmatprep.subr.mxu0 0.0
        %4662 = vmatpush1.msra.mxu0 0.0
        %4663 = vmatprep.subr.mxu0 0.0
        %4664 = vmatpush1.msra.mxu0 0.0
        %4665 = vmatprep.subr.mxu0 0.0
        %4666 = vmatpush1.msra.mxu0 0.0
        %4667 = vmatprep.subr.mxu0 0.0
        %4668 = vmatpush1.msra.mxu0 0.0
        %4669 = vmatprep.subr.mxu0 0.0
        %4670 = vmatpush1.msra.mxu0 0.0
        %4671 = vmatprep.subr.mxu0 0.0
        %4672 = vmatpush1.msra.mxu0 0.0
        %4673 = vmatprep.subr.mxu0 0.0
        %4674 = vmatpush1.msra.mxu0 0.0
        %4675 = vmatprep.subr.mxu0 0.0
        %4676 = vmatpush1.msra.mxu0 0.0
        %4677 = vmatprep.subr.mxu0 0.0
        %4678 = vmatpush1.msra.mxu0 0.0
        %4679 = vmatprep.subr.mxu0 0.0
        %4680 = vmatpush1.msra.mxu0 0.0
        %4681 = vmatprep.subr.mxu0 0.0
        %4682 = vmatpush1.msra.mxu0 0.0
        %4683 = vmatprep.subr.mxu0 0.0
        %4684 = vmatpush1.msra.mxu0 0.0
        %4685 = vmatprep.subr.mxu0 0.0
        %4686 = vmatpush1.msra.mxu0 0.0
        %4687 = vmatprep.mubr.f32.mxu0 %v4617
        %4688 = vmatmul.mubr.f32.gmra.mrb[0].mxu0 %v4587
        %v4689 = vpop.f32.mrb[0].mxu0
        %v4690 = vadd.f32 %v4613, %v4689
        %v4691 = vpop.f32.mrb[0].mxu0
        %4692 = vdwg.mxu0
        %4693 = vmax.xlane.f32.xlu0 %v4690
        %v4694 = vpop.xlane.xlu0 %4693
        %v4695 = vsub.f32 %v4690, %v4694
        %v4696 = vmul.f32 %v4695, 1.442695
        %v4697 = vpow.pop %v4696
        %4698 = vadd.xlane.f32.xlu0 %v4697
        %v4699 = vpop.xlane.xlu0 %4698
        %v4700 = vrcp.pop %v4699
        %v4701 = vmul.f32 %v4697, %v4700
        %4702 = vst [vmem:[%s449] sm:$0xff] %v4701
        %s4703 = sand.u32 %s314, 1
        %s4704 = scalar_lea.sflag [#allocation4], %s4703
        %s4705 = sand.u32 %s314, 1
        %s4706 = smul.addr %s4705, 8
        %s4707 = scalar_lea.vmem [#allocation5], %s4706
        // Predicated region
        $region77: #{hal9000_forward.1} parent=71 // pred_check
          %p4708 = pneg %p324
        $region78: #{hal9000_forward.1} parent=71 // pred_check_branch
          %4710 = sbr.rel (%p4708) target = $region80
        $region79: #{hal9000_forward.1} parent=71 // pred_region
          %s4712 = ssub.s32 128, 128
          %4713 = vsyncadd %s4704, %s4712
          %s4714 = smul.addr %s28, 128
          %s4715 = scalar_lea.hbm %s13, %s4714
          %s4717 = sshll.u32 %s4707, 4
          %s4718 = int_to_ptr.vmem [resolvable:$true] %s4717
          %4720 = dma.vmem_to_hbm [thread:$0]  %s4718, 128, %s4715, %s4704
        $region80: #{hal9000_forward.1} parent=71 // pred_fallthru
          _
      $region72: #{hal9000_forward.1} parent=5 // pred_fallthru
        _
      %p4721 = scmp.le.s32.totalorder 2, %s23
      // Predicated region
      $region81: #{hal9000_forward.1} parent=5 // pred_check
        %p4722 = pneg %p4721
      $region82: #{hal9000_forward.1} parent=5 // pred_check_branch
        %4724 = sbr.rel (%p4722) target = $region84
      $region83: #{hal9000_forward.1} parent=5 // pred_region
        %s4725 = ssub.s32 %s23, 2
        // Predicated region
        $region85: #{hal9000_forward.1} parent=83 // pred_check
          %p4726 = pneg %p330
        $region86: #{hal9000_forward.1} parent=83 // pred_check_branch
          %4728 = sbr.rel (%p4726) target = $region88
        $region87: #{hal9000_forward.1} parent=83 // pred_region
          %s4729 = sand.u32 %s315, 1
          %s4730 = scalar_lea.sflag [#allocation4], %s4729
          %s4731 = sand.u32 %s315, 1
          %s4732 = smul.addr %s4731, 8
          %s4733 = scalar_lea.vmem [#allocation5], %s4732
          %4734 = dma.done %s4730, 128
        $region88: #{hal9000_forward.1} parent=83 // pred_fallthru
          _
      $region84: #{hal9000_forward.1} parent=5 // pred_fallthru
        _
    $region6: #{hal9000_forward.1} parent=1 // loop_footer
      %s27 = sadd.s32 1, %s23
    $region7: #{hal9000_forward.1} parent=1 // loop_footer_branch
      %22 = sbr.rel target = $region3
    $region8: #{hal9000_forward.1} parent=1 // loop_exit
      _
    %4735 = vsyncpa [#allocation3], 1
    %s4736 = scalar_lea.sflag [#allocation3], 1
    %4737 = vsyncpa %s4736, 1
    %4738 = vsyncpa [#allocation4], 1
    %s4739 = scalar_lea.sflag [#allocation4], 1
    %4740 = vsyncpa %s4739, 1

</llo_original>
